<compile_context>
chip_gen: v5e
topology: v5e:2x2
jax: 0.10.0
libtpu: 0.0.40
codegen_flags: <defaults>
</compile_context>

<pallas_src>
import functools
import math

import jax
import jax.numpy as jnp
from jax.experimental import pallas as pl
from jax.experimental.pallas import tpu as pltpu  # noqa: F401  (TPU backend)


# ---------------------------------------------------------------------------
# The single fused forward kernel
# ---------------------------------------------------------------------------

def _fused_forward_kernel(
    xp_ref, enc_w_ref, enc_b_ref, emb_ref, mask_ref,
    wqkv_ref, bqkv_ref, sa_wo_ref, sa_bo_ref,
    ca_wq_ref, ca_bq_ref, ca_wkv_ref, ca_bkv_ref, ca_wo_ref, ca_bo_ref,
    ln1_g_ref, ln1_b_ref, ln2_g_ref, ln2_b_ref, ln3_g_ref, ln3_b_ref,
    ffn_w1_ref, ffn_b1_ref, ffn_w2_ref, ffn_b2_ref,
    out_w_ref, out_b_ref,
    feat_ref, logits_ref,
    *, B, T, S, H, Dh, L, P, eps):
    """Whole StudentCandidateV1 forward, everything resident in VMEM."""
    f32 = jnp.float32
    D = H * Dh
    scale = 1.0 / math.sqrt(Dh)

    def layer_norm(z, g, b):
        mu = jnp.mean(z, axis=-1, keepdims=True)
        zc = z - mu
        var = jnp.mean(zc * zc, axis=-1, keepdims=True)
        return zc * jax.lax.rsqrt(var + eps) * g + b

    def softmax(s):
        s = s - jnp.max(s, axis=-1, keepdims=True)
        p = jnp.exp(s)
        return p / jnp.sum(p, axis=-1, keepdims=True)   # exact (parity w/ torch)

    def attend(q_all, k_all, v_all, Sq, Sk, mask3):
        """q_all:(B*Sq,D) k_all,v_all:(B*Sk,D) mask3:(B,Sq,Sk) additive or None."""
        ctx_batches = []
        for b in range(B):
            q_b = q_all[b * Sq:(b + 1) * Sq, :]
            k_b = k_all[b * Sk:(b + 1) * Sk, :]
            v_b = v_all[b * Sk:(b + 1) * Sk, :]
            heads = []
            for h in range(H):
                q = q_b[:, h * Dh:(h + 1) * Dh]
                k = k_b[:, h * Dh:(h + 1) * Dh]
                v = v_b[:, h * Dh:(h + 1) * Dh]
                s = jax.lax.dot_general(
                    q, k, (((1,), (1,)), ((), ())),
                    preferred_element_type=f32) * scale        # (Sq, Sk)
                if mask3 is not None:
                    s = s + mask3[b]
                p = softmax(s)
                heads.append(jnp.dot(p, v, preferred_element_type=f32))
            ctx_batches.append(jnp.concatenate(heads, axis=-1))  # (Sq, D)
        return jnp.concatenate(ctx_batches, axis=0)              # (B*Sq, D)

    # ---- image encoder surrogate: patch-embed matmul + per-frame mean pool ----
    feat = jnp.dot(xp_ref[...], enc_w_ref[...],
                   preferred_element_type=f32) + enc_b_ref[...]   # (N*P, D)
    feat_ref[...] = feat.astype(feat_ref.dtype)
    N = B * T
    memory = jnp.concatenate(
        [jnp.mean(feat[n * P:(n + 1) * P, :], axis=0, keepdims=True)
         for n in range(N)], axis=0)                              # (B*T, D)

    mask = mask_ref[...]              # (B, S, S) additive self-attention mask
    x = emb_ref[...]                  # (B*S, D)  (embed + PE) / sqrt(d_model)

    # ---- stacked post-norm TransformerDecoderLayers (dropout = identity) ----
    for l in range(L):
        # self-attention: fused QKV projection, heads split by 2-D slicing
        qkv = jnp.dot(x, wqkv_ref[l], preferred_element_type=f32) + bqkv_ref[l]
        ctx = attend(qkv[:, :D], qkv[:, D:2 * D], qkv[:, 2 * D:], S, S, mask)
        attn = jnp.dot(ctx, sa_wo_ref[l], preferred_element_type=f32) + sa_bo_ref[l]
        x = layer_norm(x + attn, ln1_g_ref[l], ln1_b_ref[l])

        # cross-attention: Q from x, fused KV from memory, no mask (all-zero)
        q_all = jnp.dot(x, ca_wq_ref[l], preferred_element_type=f32) + ca_bq_ref[l]
        kv = jnp.dot(memory, ca_wkv_ref[l], preferred_element_type=f32) + ca_bkv_ref[l]
        ctx = attend(q_all, kv[:, :D], kv[:, D:], S, T, None)
        attn = jnp.dot(ctx, ca_wo_ref[l], preferred_element_type=f32) + ca_bo_ref[l]
        x = layer_norm(x + attn, ln2_g_ref[l], ln2_b_ref[l])

        # feed-forward (ReLU) + residual + LayerNorm
        h1 = jnp.maximum(
            jnp.dot(x, ffn_w1_ref[l], preferred_element_type=f32) + ffn_b1_ref[l],
            0.0)
        y2 = jnp.dot(h1, ffn_w2_ref[l], preferred_element_type=f32) + ffn_b2_ref[l]
        x = layer_norm(x + y2, ln3_g_ref[l], ln3_b_ref[l])

    # ---- vocab head ----
    logits_ref[...] = (jnp.dot(x, out_w_ref[...], preferred_element_type=f32)
                       + out_b_ref[...]).astype(logits_ref.dtype)


# ---------------------------------------------------------------------------
# Host-side glue (cheap index math / embedding gather only)
# ---------------------------------------------------------------------------

def positional_encoding(d_model, max_len=500):
    position = jnp.arange(max_len, dtype=jnp.float32)[:, None]
    div_term = jnp.exp(jnp.arange(0, d_model, 2, dtype=jnp.float32)
                       * -(math.log(10000.0) / d_model))
    pe = jnp.zeros((max_len, d_model), jnp.float32)
    pe = pe.at[:, 0::2].set(jnp.sin(position * div_term))
    pe = pe.at[:, 1::2].set(jnp.cos(position * div_term))
    return pe  # (max_len, d_model)


def student_candidate_v1_forward(params, x, y, *, n_head, patch_size):
    """x: (B, T, C, H, W) float32 video frames (NCHW per frame); y: (B, S) int32."""
    B, T, C, Himg, Wimg = x.shape
    N = B * T
    ps = patch_size
    Ph, Pw = Himg // ps, Wimg // ps
    P = Ph * Pw
    D = params["embed"].shape[1]
    V = params["out_w"].shape[1]
    L = params["wqkv"].shape[0]
    S = y.shape[1]
    Dh = D // n_head

    # im2col: one row per patch (host reshape/transpose, feeds the fused kernel)
    xp = x.reshape(N, C, Ph, ps, Pw, ps).transpose(0, 2, 4, 1, 3, 5)
    xp = xp.reshape(N * P, C * ps * ps)

    # token embedding + positional encoding + /sqrt(d_model) (matches source)
    emb = params["embed"][y] + params["pe"][None, :S, :]
    emb = (emb / jnp.sqrt(jnp.float32(D))).reshape(B * S, D).astype(jnp.float32)

    # additive self-attention mask: causal + key padding (pad id assumed 0)
    pad = (y == 0)                                           # (B, S)
    causal = jnp.triu(jnp.ones((S, S), dtype=bool), k=1)     # (S, S)
    masked = causal[None, :, :] | pad[:, None, :]            # (B, S, S)
    self_mask = jnp.where(masked, -1e30, 0.0).astype(jnp.float32)

    kernel = functools.partial(_fused_forward_kernel, B=B, T=T, S=S, H=n_head,
                               Dh=Dh, L=L, P=P, eps=1e-5)
    # Single pallas_call, no grid: every operand/output is one whole-array VMEM
    # block (total < 200 KB), so there is no pipeline / per-step overhead.
    feat, logits = pl.pallas_call(
        kernel,
        out_shape=(jax.ShapeDtypeStruct((N * P, D), jnp.float32),
                   jax.ShapeDtypeStruct((B * S, V), jnp.float32)),
    )(xp, params["enc_w"], params["enc_b"], emb, self_mask,
      params["wqkv"], params["bqkv"], params["sa_wo"], params["sa_bo"],
      params["ca_wq"], params["ca_bq"], params["ca_wkv"], params["ca_bkv"],
      params["ca_wo"], params["ca_bo"],
      params["ln1_g"], params["ln1_b"], params["ln2_g"], params["ln2_b"],
      params["ln3_g"], params["ln3_b"],
      params["ffn_w1"], params["ffn_b1"], params["ffn_w2"], params["ffn_b2"],
      params["out_w"], params["out_b"])

    # NCHW fmap to match the timm/PyTorch convention (host XLA op, one-off).
    fmap = feat.reshape(N, Ph, Pw, D).transpose(0, 3, 1, 2)
    logits = logits.reshape(B, S, V)
    return [fmap, logits]   # image_enc_fmaps + [out]


# ---------------------------------------------------------------------------
# Deterministic parameter initialization (per-layer weights stacked on axis 0)
# ---------------------------------------------------------------------------

def init_params(key, *, d_model, n_head, d_ffn, num_layers, vocab, in_chan,
                patch_size):
    D, F, L, V = d_model, d_ffn, num_layers, vocab
    K = in_chan * patch_size * patch_size

    def nrm(k, shape, scale=0.02):
        return scale * jax.random.normal(k, shape, dtype=jnp.float32)

    ks = iter(jax.random.split(key, 16))
    params = {
        "enc_w": nrm(next(ks), (K, D)),
        "enc_b": nrm(next(ks), (1, D)),
        "embed": nrm(next(ks), (V, D), scale=1.0),
        "out_w": nrm(next(ks), (D, V)),
        "out_b": jnp.zeros((1, V), jnp.float32),
        "pe": positional_encoding(D),
        # fused QKV projection (columns: [q | k | v], head-contiguous inside)
        "wqkv": nrm(next(ks), (L, D, 3 * D)),
        "bqkv": jnp.zeros((L, 1, 3 * D), jnp.float32),
        "sa_wo": nrm(next(ks), (L, D, D)),
        "sa_bo": jnp.zeros((L, 1, D), jnp.float32),
        "ca_wq": nrm(next(ks), (L, D, D)),
        "ca_bq": jnp.zeros((L, 1, D), jnp.float32),
        # fused cross KV projection (columns: [k | v])
        "ca_wkv": nrm(next(ks), (L, D, 2 * D)),
        "ca_bkv": jnp.zeros((L, 1, 2 * D), jnp.float32),
        "ca_wo": nrm(next(ks), (L, D, D)),
        "ca_bo": jnp.zeros((L, 1, D), jnp.float32),
        "ffn_w1": nrm(next(ks), (L, D, F)),
        "ffn_b1": jnp.zeros((L, 1, F), jnp.float32),
        "ffn_w2": nrm(next(ks), (L, F, D)),
        "ffn_b2": jnp.zeros((L, 1, D), jnp.float32),
    }
    for i in (1, 2, 3):
        params[f"ln{i}_g"] = jnp.ones((L, 1, D), jnp.float32)
        params[f"ln{i}_b"] = jnp.zeros((L, 1, D), jnp.float32)
    return params


# ---------------------------------------------------------------------------
# Main
# ---------------------------------------------------------------------------

if __name__ == "__main__":
    # Small config consistent with the module's constructor arguments.
    B, T, C, H, W = 2, 2, 3, 16, 16
    d_model, n_head, d_ffn = 32, 4, 64
    num_decoder_layers = 2
    vocab_length = 64
    seq_len = 8
    patch_size = 4
    cls_token_id, sep_token_id = 1, 2

    root = jax.random.PRNGKey(0)
    k_param, k_x, k_y = jax.random.split(root, 3)

    params = init_params(k_param, d_model=d_model, n_head=n_head, d_ffn=d_ffn,
                         num_layers=num_decoder_layers, vocab=vocab_length,
                         in_chan=C, patch_size=patch_size)

    x = jax.random.normal(k_x, (B, T, C, H, W), dtype=jnp.float32)
    y = jax.random.randint(k_y, (B, seq_len), 3, vocab_length, dtype=jnp.int32)
    y = y.at[:, 0].set(cls_token_id)        # start token
    y = y.at[0, -1].set(0)                  # one padded position exercises pad mask

    fwd = jax.jit(functools.partial(student_candidate_v1_forward,
                                    n_head=n_head, patch_size=patch_size))
    outputs = jax.block_until_ready(fwd(params, x, y))

    fmap, logits = outputs
    assert fmap.shape == (B * T, d_model, H // patch_size, W // patch_size)
    assert logits.shape == (B, seq_len, vocab_length)
    assert bool(jnp.all(jnp.isfinite(logits)))
    print("KERNEL_OK")
</pallas_src>

<mosaic_0001>
module attributes {stable_mosaic.version = 11 : i64} {
  func.func @_fused_forward_kernel(%arg0: memref<64x48xf32, #tpu.memory_space<vmem>>, %arg1: memref<48x32xf32, #tpu.memory_space<vmem>>, %arg2: memref<1x32xf32, #tpu.memory_space<vmem>>, %arg3: memref<16x32xf32, #tpu.memory_space<vmem>>, %arg4: memref<2x8x8xf32, #tpu.memory_space<vmem>>, %arg5: memref<2x32x96xf32, #tpu.memory_space<vmem>>, %arg6: memref<2x1x96xf32, #tpu.memory_space<vmem>>, %arg7: memref<2x32x32xf32, #tpu.memory_space<vmem>>, %arg8: memref<2x1x32xf32, #tpu.memory_space<vmem>>, %arg9: memref<2x32x32xf32, #tpu.memory_space<vmem>>, %arg10: memref<2x1x32xf32, #tpu.memory_space<vmem>>, %arg11: memref<2x32x64xf32, #tpu.memory_space<vmem>>, %arg12: memref<2x1x64xf32, #tpu.memory_space<vmem>>, %arg13: memref<2x32x32xf32, #tpu.memory_space<vmem>>, %arg14: memref<2x1x32xf32, #tpu.memory_space<vmem>>, %arg15: memref<2x1x32xf32, #tpu.memory_space<vmem>>, %arg16: memref<2x1x32xf32, #tpu.memory_space<vmem>>, %arg17: memref<2x1x32xf32, #tpu.memory_space<vmem>>, %arg18: memref<2x1x32xf32, #tpu.memory_space<vmem>>, %arg19: memref<2x1x32xf32, #tpu.memory_space<vmem>>, %arg20: memref<2x1x32xf32, #tpu.memory_space<vmem>>, %arg21: memref<2x32x64xf32, #tpu.memory_space<vmem>>, %arg22: memref<2x1x64xf32, #tpu.memory_space<vmem>>, %arg23: memref<2x64x32xf32, #tpu.memory_space<vmem>>, %arg24: memref<2x1x32xf32, #tpu.memory_space<vmem>>, %arg25: memref<32x64xf32, #tpu.memory_space<vmem>>, %arg26: memref<1x64xf32, #tpu.memory_space<vmem>>, %arg27: memref<64x32xf32, #tpu.memory_space<vmem>>, %arg28: memref<16x64xf32, #tpu.memory_space<vmem>>) attributes {dimension_semantics = [], scalar_prefetch = 0 : i64, scratch_operands = 0 : i64, tpu.core_type = #tpu.core_type<tc>} {
    %c0 = arith.constant 0 : index
    %c0_0 = arith.constant 0 : index
    %0 = vector.load %arg0[%c0, %c0_0] : memref<64x48xf32, #tpu.memory_space<vmem>>, vector<64x48xf32>
    %c0_1 = arith.constant 0 : index
    %c0_2 = arith.constant 0 : index
    %1 = vector.load %arg1[%c0_1, %c0_2] : memref<48x32xf32, #tpu.memory_space<vmem>>, vector<48x32xf32>
    %cst = arith.constant dense<0.000000e+00> : vector<64x32xf32>
    %2 = tpu.matmul %0, %1, %cst {dimension_numbers = #tpu.dot_dimension_numbers<[1], [0], [0], [1], [0, 0, 1, 1], [], []>} : vector<64x48xf32>, vector<48x32xf32>, vector<64x32xf32> -> vector<64x32xf32>
    %c0_3 = arith.constant 0 : index
    %c0_4 = arith.constant 0 : index
    %3 = vector.load %arg2[%c0_3, %c0_4] : memref<1x32xf32, #tpu.memory_space<vmem>>, vector<1x32xf32>
    %4 = vector.broadcast %3 : vector<1x32xf32> to vector<64x32xf32>
    %5 = arith.addf %2, %4 : vector<64x32xf32>
    %c0_5 = arith.constant 0 : index
    %c0_6 = arith.constant 0 : index
    %6 = vector.load %arg27[%c0_5, %c0_6] : memref<64x32xf32, #tpu.memory_space<vmem>>, vector<64x32xf32>
    tpu.vector_store %arg27[%c0_5, %c0_6], %5 {strides = array<i32>} : memref<64x32xf32, #tpu.memory_space<vmem>>, vector<64x32xf32>,
    %7 = vector.extract_strided_slice %5 {offsets = [0, 0], sizes = [16, 32], strides = [1, 1]} : vector<64x32xf32> to vector<16x32xf32>
    %cst_7 = arith.constant dense<0.000000e+00> : vector<32xf32>
    %8 = vector.multi_reduction <add>, %7, %cst_7 [0] : vector<16x32xf32> to vector<32xf32>
    %9 = vector.shape_cast %8 : vector<32xf32> to vector<1x32xf32>
    %cst_8 = arith.constant 1.600000e+01 : f32
    %10 = vector.broadcast %cst_8 : f32 to vector<1x32xf32>
    %11 = arith.divf %9, %10 : vector<1x32xf32>
    %12 = vector.extract_strided_slice %5 {offsets = [16, 0], sizes = [16, 32], strides = [1, 1]} : vector<64x32xf32> to vector<16x32xf32>
    %cst_9 = arith.constant dense<0.000000e+00> : vector<32xf32>
    %13 = vector.multi_reduction <add>, %12, %cst_9 [0] : vector<16x32xf32> to vector<32xf32>
    %14 = vector.shape_cast %13 : vector<32xf32> to vector<1x32xf32>
    %cst_10 = arith.constant 1.600000e+01 : f32
    %15 = vector.broadcast %cst_10 : f32 to vector<1x32xf32>
    %16 = arith.divf %14, %15 : vector<1x32xf32>
    %17 = vector.extract_strided_slice %5 {offsets = [32, 0], sizes = [16, 32], strides = [1, 1]} : vector<64x32xf32> to vector<16x32xf32>
    %cst_11 = arith.constant dense<0.000000e+00> : vector<32xf32>
    %18 = vector.multi_reduction <add>, %17, %cst_11 [0] : vector<16x32xf32> to vector<32xf32>
    %19 = vector.shape_cast %18 : vector<32xf32> to vector<1x32xf32>
    %cst_12 = arith.constant 1.600000e+01 : f32
    %20 = vector.broadcast %cst_12 : f32 to vector<1x32xf32>
    %21 = arith.divf %19, %20 : vector<1x32xf32>
    %22 = vector.extract_strided_slice %5 {offsets = [48, 0], sizes = [16, 32], strides = [1, 1]} : vector<64x32xf32> to vector<16x32xf32>
    %cst_13 = arith.constant dense<0.000000e+00> : vector<32xf32>
    %23 = vector.multi_reduction <add>, %22, %cst_13 [0] : vector<16x32xf32> to vector<32xf32>
    %24 = vector.shape_cast %23 : vector<32xf32> to vector<1x32xf32>
    %cst_14 = arith.constant 1.600000e+01 : f32
    %25 = vector.broadcast %cst_14 : f32 to vector<1x32xf32>
    %26 = arith.divf %24, %25 : vector<1x32xf32>
    %27 = tpu.concatenate %11, %16, %21, %26 in 0 : vector<1x32xf32>, vector<1x32xf32>, vector<1x32xf32>, vector<1x32xf32> -> vector<4x32xf32>
    %c0_15 = arith.constant 0 : index
    %c0_16 = arith.constant 0 : index
    %c0_17 = arith.constant 0 : index
    %28 = vector.load %arg4[%c0_15, %c0_16, %c0_17] : memref<2x8x8xf32, #tpu.memory_space<vmem>>, vector<2x8x8xf32>
    %c0_18 = arith.constant 0 : index
    %c0_19 = arith.constant 0 : index
    %29 = vector.load %arg3[%c0_18, %c0_19] : memref<16x32xf32, #tpu.memory_space<vmem>>, vector<16x32xf32>
    %c0_20 = arith.constant 0 : index
    %c0_21 = arith.constant 0 : index
    %c0_22 = arith.constant 0 : index
    %30 = vector.load %arg5[%c0_20, %c0_21, %c0_22] : memref<2x32x96xf32, #tpu.memory_space<vmem>>, vector<1x32x96xf32>
    %31 = vector.shape_cast %30 : vector<1x32x96xf32> to vector<32x96xf32>
    %cst_23 = arith.constant dense<0.000000e+00> : vector<16x96xf32>
    %32 = tpu.matmul %29, %31, %cst_23 {dimension_numbers = #tpu.dot_dimension_numbers<[1], [0], [0], [1], [0, 0, 1, 1], [], []>} : vector<16x32xf32>, vector<32x96xf32>, vector<16x96xf32> -> vector<16x96xf32>
    %c0_24 = arith.constant 0 : index
    %c0_25 = arith.constant 0 : index
    %c0_26 = arith.constant 0 : index
    %33 = vector.load %arg6[%c0_24, %c0_25, %c0_26] : memref<2x1x96xf32, #tpu.memory_space<vmem>>, vector<1x1x96xf32>
    %34 = vector.shape_cast %33 : vector<1x1x96xf32> to vector<1x96xf32>
    %35 = vector.broadcast %34 : vector<1x96xf32> to vector<16x96xf32>
    %36 = arith.addf %32, %35 : vector<16x96xf32>
    %37 = vector.extract_strided_slice %36 {offsets = [0, 0], sizes = [16, 32], strides = [1, 1]} : vector<16x96xf32> to vector<16x32xf32>
    %38 = vector.extract_strided_slice %36 {offsets = [0, 32], sizes = [16, 32], strides = [1, 1]} : vector<16x96xf32> to vector<16x32xf32>
    %39 = vector.extract_strided_slice %36 {offsets = [0, 64], sizes = [16, 32], strides = [1, 1]} : vector<16x96xf32> to vector<16x32xf32>
    %40 = vector.extract_strided_slice %37 {offsets = [0, 0], sizes = [8, 32], strides = [1, 1]} : vector<16x32xf32> to vector<8x32xf32>
    %41 = vector.extract_strided_slice %38 {offsets = [0, 0], sizes = [8, 32], strides = [1, 1]} : vector<16x32xf32> to vector<8x32xf32>
    %42 = vector.extract_strided_slice %39 {offsets = [0, 0], sizes = [8, 32], strides = [1, 1]} : vector<16x32xf32> to vector<8x32xf32>
    %43 = vector.extract_strided_slice %40 {offsets = [0, 0], sizes = [8, 8], strides = [1, 1]} : vector<8x32xf32> to vector<8x8xf32>
    %44 = vector.extract_strided_slice %41 {offsets = [0, 0], sizes = [8, 8], strides = [1, 1]} : vector<8x32xf32> to vector<8x8xf32>
    %45 = vector.extract_strided_slice %42 {offsets = [0, 0], sizes = [8, 8], strides = [1, 1]} : vector<8x32xf32> to vector<8x8xf32>
    %cst_27 = arith.constant dense<0.000000e+00> : vector<8x8xf32>
    %46 = tpu.matmul %43, %44, %cst_27 {dimension_numbers = #tpu.dot_dimension_numbers<[1], [1], [0], [0], [0, 0, 1, 0], [], []>} : vector<8x8xf32>, vector<8x8xf32>, vector<8x8xf32> -> vector<8x8xf32>
    %cst_28 = arith.constant 0.353553385 : f32
    %47 = vector.broadcast %cst_28 : f32 to vector<8x8xf32>
    %48 = arith.mulf %46, %47 : vector<8x8xf32>
    %49 = vector.extract_strided_slice %28 {offsets = [0, 0, 0], sizes = [1, 8, 8], strides = [1, 1, 1]} : vector<2x8x8xf32> to vector<1x8x8xf32>
    %50 = vector.shape_cast %49 : vector<1x8x8xf32> to vector<8x8xf32>
    %51 = arith.addf %48, %50 : vector<8x8xf32>
    %cst_29 = arith.constant dense<0xFF800000> : vector<8xf32>
    %52 = vector.multi_reduction <maximumf>, %51, %cst_29 [1] : vector<8x8xf32> to vector<8xf32>
    %53 = vector.shape_cast %52 : vector<8xf32> to vector<8x1xf32>
    %54 = vector.broadcast %53 : vector<8x1xf32> to vector<8x8xf32>
    %55 = arith.subf %51, %54 : vector<8x8xf32>
    %56 = math.exp %55 : vector<8x8xf32>
    %cst_30 = arith.constant dense<0.000000e+00> : vector<8xf32>
    %57 = vector.multi_reduction <add>, %56, %cst_30 [1] : vector<8x8xf32> to vector<8xf32>
    %58 = vector.shape_cast %57 : vector<8xf32> to vector<8x1xf32>
    %59 = vector.broadcast %58 : vector<8x1xf32> to vector<8x8xf32>
    %60 = arith.divf %56, %59 : vector<8x8xf32>
    %cst_31 = arith.constant dense<0.000000e+00> : vector<8x8xf32>
    %61 = tpu.matmul %60, %45, %cst_31 {dimension_numbers = #tpu.dot_dimension_numbers<[1], [0], [0], [1], [0, 0, 1, 1], [], []>} : vector<8x8xf32>, vector<8x8xf32>, vector<8x8xf32> -> vector<8x8xf32>
    %62 = vector.extract_strided_slice %40 {offsets = [0, 8], sizes = [8, 8], strides = [1, 1]} : vector<8x32xf32> to vector<8x8xf32>
    %63 = vector.extract_strided_slice %41 {offsets = [0, 8], sizes = [8, 8], strides = [1, 1]} : vector<8x32xf32> to vector<8x8xf32>
    %64 = vector.extract_strided_slice %42 {offsets = [0, 8], sizes = [8, 8], strides = [1, 1]} : vector<8x32xf32> to vector<8x8xf32>
    %cst_32 = arith.constant dense<0.000000e+00> : vector<8x8xf32>
    %65 = tpu.matmul %62, %63, %cst_32 {dimension_numbers = #tpu.dot_dimension_numbers<[1], [1], [0], [0], [0, 0, 1, 0], [], []>} : vector<8x8xf32>, vector<8x8xf32>, vector<8x8xf32> -> vector<8x8xf32>
    %cst_33 = arith.constant 0.353553385 : f32
    %66 = vector.broadcast %cst_33 : f32 to vector<8x8xf32>
    %67 = arith.mulf %65, %66 : vector<8x8xf32>
    %68 = vector.extract_strided_slice %28 {offsets = [0, 0, 0], sizes = [1, 8, 8], strides = [1, 1, 1]} : vector<2x8x8xf32> to vector<1x8x8xf32>
    %69 = vector.shape_cast %68 : vector<1x8x8xf32> to vector<8x8xf32>
    %70 = arith.addf %67, %69 : vector<8x8xf32>
    %cst_34 = arith.constant dense<0xFF800000> : vector<8xf32>
    %71 = vector.multi_reduction <maximumf>, %70, %cst_34 [1] : vector<8x8xf32> to vector<8xf32>
    %72 = vector.shape_cast %71 : vector<8xf32> to vector<8x1xf32>
    %73 = vector.broadcast %72 : vector<8x1xf32> to vector<8x8xf32>
    %74 = arith.subf %70, %73 : vector<8x8xf32>
    %75 = math.exp %74 : vector<8x8xf32>
    %cst_35 = arith.constant dense<0.000000e+00> : vector<8xf32>
    %76 = vector.multi_reduction <add>, %75, %cst_35 [1] : vector<8x8xf32> to vector<8xf32>
    %77 = vector.shape_cast %76 : vector<8xf32> to vector<8x1xf32>
    %78 = vector.broadcast %77 : vector<8x1xf32> to vector<8x8xf32>
    %79 = arith.divf %75, %78 : vector<8x8xf32>
    %cst_36 = arith.constant dense<0.000000e+00> : vector<8x8xf32>
    %80 = tpu.matmul %79, %64, %cst_36 {dimension_numbers = #tpu.dot_dimension_numbers<[1], [0], [0], [1], [0, 0, 1, 1], [], []>} : vector<8x8xf32>, vector<8x8xf32>, vector<8x8xf32> -> vector<8x8xf32>
    %81 = vector.extract_strided_slice %40 {offsets = [0, 16], sizes = [8, 8], strides = [1, 1]} : vector<8x32xf32> to vector<8x8xf32>
    %82 = vector.extract_strided_slice %41 {offsets = [0, 16], sizes = [8, 8], strides = [1, 1]} : vector<8x32xf32> to vector<8x8xf32>
    %83 = vector.extract_strided_slice %42 {offsets = [0, 16], sizes = [8, 8], strides = [1, 1]} : vector<8x32xf32> to vector<8x8xf32>
    %cst_37 = arith.constant dense<0.000000e+00> : vector<8x8xf32>
    %84 = tpu.matmul %81, %82, %cst_37 {dimension_numbers = #tpu.dot_dimension_numbers<[1], [1], [0], [0], [0, 0, 1, 0], [], []>} : vector<8x8xf32>, vector<8x8xf32>, vector<8x8xf32> -> vector<8x8xf32>
    %cst_38 = arith.constant 0.353553385 : f32
    %85 = vector.broadcast %cst_38 : f32 to vector<8x8xf32>
    %86 = arith.mulf %84, %85 : vector<8x8xf32>
    %87 = vector.extract_strided_slice %28 {offsets = [0, 0, 0], sizes = [1, 8, 8], strides = [1, 1, 1]} : vector<2x8x8xf32> to vector<1x8x8xf32>
    %88 = vector.shape_cast %87 : vector<1x8x8xf32> to vector<8x8xf32>
    %89 = arith.addf %86, %88 : vector<8x8xf32>
    %cst_39 = arith.constant dense<0xFF800000> : vector<8xf32>
    %90 = vector.multi_reduction <maximumf>, %89, %cst_39 [1] : vector<8x8xf32> to vector<8xf32>
    %91 = vector.shape_cast %90 : vector<8xf32> to vector<8x1xf32>
    %92 = vector.broadcast %91 : vector<8x1xf32> to vector<8x8xf32>
    %93 = arith.subf %89, %92 : vector<8x8xf32>
    %94 = math.exp %93 : vector<8x8xf32>
    %cst_40 = arith.constant dense<0.000000e+00> : vector<8xf32>
    %95 = vector.multi_reduction <add>, %94, %cst_40 [1] : vector<8x8xf32> to vector<8xf32>
    %96 = vector.shape_cast %95 : vector<8xf32> to vector<8x1xf32>
    %97 = vector.broadcast %96 : vector<8x1xf32> to vector<8x8xf32>
    %98 = arith.divf %94, %97 : vector<8x8xf32>
    %cst_41 = arith.constant dense<0.000000e+00> : vector<8x8xf32>
    %99 = tpu.matmul %98, %83, %cst_41 {dimension_numbers = #tpu.dot_dimension_numbers<[1], [0], [0], [1], [0, 0, 1, 1], [], []>} : vector<8x8xf32>, vector<8x8xf32>, vector<8x8xf32> -> vector<8x8xf32>
    %100 = vector.extract_strided_slice %40 {offsets = [0, 24], sizes = [8, 8], strides = [1, 1]} : vector<8x32xf32> to vector<8x8xf32>
    %101 = vector.extract_strided_slice %41 {offsets = [0, 24], sizes = [8, 8], strides = [1, 1]} : vector<8x32xf32> to vector<8x8xf32>
    %102 = vector.extract_strided_slice %42 {offsets = [0, 24], sizes = [8, 8], strides = [1, 1]} : vector<8x32xf32> to vector<8x8xf32>
    %cst_42 = arith.constant dense<0.000000e+00> : vector<8x8xf32>
    %103 = tpu.matmul %100, %101, %cst_42 {dimension_numbers = #tpu.dot_dimension_numbers<[1], [1], [0], [0], [0, 0, 1, 0], [], []>} : vector<8x8xf32>, vector<8x8xf32>, vector<8x8xf32> -> vector<8x8xf32>
    %cst_43 = arith.constant 0.353553385 : f32
    %104 = vector.broadcast %cst_43 : f32 to vector<8x8xf32>
    %105 = arith.mulf %103, %104 : vector<8x8xf32>
    %106 = vector.extract_strided_slice %28 {offsets = [0, 0, 0], sizes = [1, 8, 8], strides = [1, 1, 1]} : vector<2x8x8xf32> to vector<1x8x8xf32>
    %107 = vector.shape_cast %106 : vector<1x8x8xf32> to vector<8x8xf32>
    %108 = arith.addf %105, %107 : vector<8x8xf32>
    %cst_44 = arith.constant dense<0xFF800000> : vector<8xf32>
    %109 = vector.multi_reduction <maximumf>, %108, %cst_44 [1] : vector<8x8xf32> to vector<8xf32>
    %110 = vector.shape_cast %109 : vector<8xf32> to vector<8x1xf32>
    %111 = vector.broadcast %110 : vector<8x1xf32> to vector<8x8xf32>
    %112 = arith.subf %108, %111 : vector<8x8xf32>
    %113 = math.exp %112 : vector<8x8xf32>
    %cst_45 = arith.constant dense<0.000000e+00> : vector<8xf32>
    %114 = vector.multi_reduction <add>, %113, %cst_45 [1] : vector<8x8xf32> to vector<8xf32>
    %115 = vector.shape_cast %114 : vector<8xf32> to vector<8x1xf32>
    %116 = vector.broadcast %115 : vector<8x1xf32> to vector<8x8xf32>
    %117 = arith.divf %113, %116 : vector<8x8xf32>
    %cst_46 = arith.constant dense<0.000000e+00> : vector<8x8xf32>
    %118 = tpu.matmul %117, %102, %cst_46 {dimension_numbers = #tpu.dot_dimension_numbers<[1], [0], [0], [1], [0, 0, 1, 1], [], []>} : vector<8x8xf32>, vector<8x8xf32>, vector<8x8xf32> -> vector<8x8xf32>
    %119 = tpu.concatenate %61, %80, %99, %118 in 1 : vector<8x8xf32>, vector<8x8xf32>, vector<8x8xf32>, vector<8x8xf32> -> vector<8x32xf32>
    %120 = vector.extract_strided_slice %37 {offsets = [8, 0], sizes = [8, 32], strides = [1, 1]} : vector<16x32xf32> to vector<8x32xf32>
    %121 = vector.extract_strided_slice %38 {offsets = [8, 0], sizes = [8, 32], strides = [1, 1]} : vector<16x32xf32> to vector<8x32xf32>
    %122 = vector.extract_strided_slice %39 {offsets = [8, 0], sizes = [8, 32], strides = [1, 1]} : vector<16x32xf32> to vector<8x32xf32>
    %123 = vector.extract_strided_slice %120 {offsets = [0, 0], sizes = [8, 8], strides = [1, 1]} : vector<8x32xf32> to vector<8x8xf32>
    %124 = vector.extract_strided_slice %121 {offsets = [0, 0], sizes = [8, 8], strides = [1, 1]} : vector<8x32xf32> to vector<8x8xf32>
    %125 = vector.extract_strided_slice %122 {offsets = [0, 0], sizes = [8, 8], strides = [1, 1]} : vector<8x32xf32> to vector<8x8xf32>
    %cst_47 = arith.constant dense<0.000000e+00> : vector<8x8xf32>
    %126 = tpu.matmul %123, %124, %cst_47 {dimension_numbers = #tpu.dot_dimension_numbers<[1], [1], [0], [0], [0, 0, 1, 0], [], []>} : vector<8x8xf32>, vector<8x8xf32>, vector<8x8xf32> -> vector<8x8xf32>
    %cst_48 = arith.constant 0.353553385 : f32
    %127 = vector.broadcast %cst_48 : f32 to vector<8x8xf32>
    %128 = arith.mulf %126, %127 : vector<8x8xf32>
    %129 = vector.extract_strided_slice %28 {offsets = [1, 0, 0], sizes = [1, 8, 8], strides = [1, 1, 1]} : vector<2x8x8xf32> to vector<1x8x8xf32>
    %130 = vector.shape_cast %129 : vector<1x8x8xf32> to vector<8x8xf32>
    %131 = arith.addf %128, %130 : vector<8x8xf32>
    %cst_49 = arith.constant dense<0xFF800000> : vector<8xf32>
    %132 = vector.multi_reduction <maximumf>, %131, %cst_49 [1] : vector<8x8xf32> to vector<8xf32>
    %133 = vector.shape_cast %132 : vector<8xf32> to vector<8x1xf32>
    %134 = vector.broadcast %133 : vector<8x1xf32> to vector<8x8xf32>
    %135 = arith.subf %131, %134 : vector<8x8xf32>
    %136 = math.exp %135 : vector<8x8xf32>
    %cst_50 = arith.constant dense<0.000000e+00> : vector<8xf32>
    %137 = vector.multi_reduction <add>, %136, %cst_50 [1] : vector<8x8xf32> to vector<8xf32>
    %138 = vector.shape_cast %137 : vector<8xf32> to vector<8x1xf32>
    %139 = vector.broadcast %138 : vector<8x1xf32> to vector<8x8xf32>
    %140 = arith.divf %136, %139 : vector<8x8xf32>
    %cst_51 = arith.constant dense<0.000000e+00> : vector<8x8xf32>
    %141 = tpu.matmul %140, %125, %cst_51 {dimension_numbers = #tpu.dot_dimension_numbers<[1], [0], [0], [1], [0, 0, 1, 1], [], []>} : vector<8x8xf32>, vector<8x8xf32>, vector<8x8xf32> -> vector<8x8xf32>
    %142 = vector.extract_strided_slice %120 {offsets = [0, 8], sizes = [8, 8], strides = [1, 1]} : vector<8x32xf32> to vector<8x8xf32>
    %143 = vector.extract_strided_slice %121 {offsets = [0, 8], sizes = [8, 8], strides = [1, 1]} : vector<8x32xf32> to vector<8x8xf32>
    %144 = vector.extract_strided_slice %122 {offsets = [0, 8], sizes = [8, 8], strides = [1, 1]} : vector<8x32xf32> to vector<8x8xf32>
    %cst_52 = arith.constant dense<0.000000e+00> : vector<8x8xf32>
    %145 = tpu.matmul %142, %143, %cst_52 {dimension_numbers = #tpu.dot_dimension_numbers<[1], [1], [0], [0], [0, 0, 1, 0], [], []>} : vector<8x8xf32>, vector<8x8xf32>, vector<8x8xf32> -> vector<8x8xf32>
    %cst_53 = arith.constant 0.353553385 : f32
    %146 = vector.broadcast %cst_53 : f32 to vector<8x8xf32>
    %147 = arith.mulf %145, %146 : vector<8x8xf32>
    %148 = vector.extract_strided_slice %28 {offsets = [1, 0, 0], sizes = [1, 8, 8], strides = [1, 1, 1]} : vector<2x8x8xf32> to vector<1x8x8xf32>
    %149 = vector.shape_cast %148 : vector<1x8x8xf32> to vector<8x8xf32>
    %150 = arith.addf %147, %149 : vector<8x8xf32>
    %cst_54 = arith.constant dense<0xFF800000> : vector<8xf32>
    %151 = vector.multi_reduction <maximumf>, %150, %cst_54 [1] : vector<8x8xf32> to vector<8xf32>
    %152 = vector.shape_cast %151 : vector<8xf32> to vector<8x1xf32>
    %153 = vector.broadcast %152 : vector<8x1xf32> to vector<8x8xf32>
    %154 = arith.subf %150, %153 : vector<8x8xf32>
    %155 = math.exp %154 : vector<8x8xf32>
    %cst_55 = arith.constant dense<0.000000e+00> : vector<8xf32>
    %156 = vector.multi_reduction <add>, %155, %cst_55 [1] : vector<8x8xf32> to vector<8xf32>
    %157 = vector.shape_cast %156 : vector<8xf32> to vector<8x1xf32>
    %158 = vector.broadcast %157 : vector<8x1xf32> to vector<8x8xf32>
    %159 = arith.divf %155, %158 : vector<8x8xf32>
    %cst_56 = arith.constant dense<0.000000e+00> : vector<8x8xf32>
    %160 = tpu.matmul %159, %144, %cst_56 {dimension_numbers = #tpu.dot_dimension_numbers<[1], [0], [0], [1], [0, 0, 1, 1], [], []>} : vector<8x8xf32>, vector<8x8xf32>, vector<8x8xf32> -> vector<8x8xf32>
    %161 = vector.extract_strided_slice %120 {offsets = [0, 16], sizes = [8, 8], strides = [1, 1]} : vector<8x32xf32> to vector<8x8xf32>
    %162 = vector.extract_strided_slice %121 {offsets = [0, 16], sizes = [8, 8], strides = [1, 1]} : vector<8x32xf32> to vector<8x8xf32>
    %163 = vector.extract_strided_slice %122 {offsets = [0, 16], sizes = [8, 8], strides = [1, 1]} : vector<8x32xf32> to vector<8x8xf32>
    %cst_57 = arith.constant dense<0.000000e+00> : vector<8x8xf32>
    %164 = tpu.matmul %161, %162, %cst_57 {dimension_numbers = #tpu.dot_dimension_numbers<[1], [1], [0], [0], [0, 0, 1, 0], [], []>} : vector<8x8xf32>, vector<8x8xf32>, vector<8x8xf32> -> vector<8x8xf32>
    %cst_58 = arith.constant 0.353553385 : f32
    %165 = vector.broadcast %cst_58 : f32 to vector<8x8xf32>
    %166 = arith.mulf %164, %165 : vector<8x8xf32>
    %167 = vector.extract_strided_slice %28 {offsets = [1, 0, 0], sizes = [1, 8, 8], strides = [1, 1, 1]} : vector<2x8x8xf32> to vector<1x8x8xf32>
    %168 = vector.shape_cast %167 : vector<1x8x8xf32> to vector<8x8xf32>
    %169 = arith.addf %166, %168 : vector<8x8xf32>
    %cst_59 = arith.constant dense<0xFF800000> : vector<8xf32>
    %170 = vector.multi_reduction <maximumf>, %169, %cst_59 [1] : vector<8x8xf32> to vector<8xf32>
    %171 = vector.shape_cast %170 : vector<8xf32> to vector<8x1xf32>
    %172 = vector.broadcast %171 : vector<8x1xf32> to vector<8x8xf32>
    %173 = arith.subf %169, %172 : vector<8x8xf32>
    %174 = math.exp %173 : vector<8x8xf32>
    %cst_60 = arith.constant dense<0.000000e+00> : vector<8xf32>
    %175 = vector.multi_reduction <add>, %174, %cst_60 [1] : vector<8x8xf32> to vector<8xf32>
    %176 = vector.shape_cast %175 : vector<8xf32> to vector<8x1xf32>
    %177 = vector.broadcast %176 : vector<8x1xf32> to vector<8x8xf32>
    %178 = arith.divf %174, %177 : vector<8x8xf32>
    %cst_61 = arith.constant dense<0.000000e+00> : vector<8x8xf32>
    %179 = tpu.matmul %178, %163, %cst_61 {dimension_numbers = #tpu.dot_dimension_numbers<[1], [0], [0], [1], [0, 0, 1, 1], [], []>} : vector<8x8xf32>, vector<8x8xf32>, vector<8x8xf32> -> vector<8x8xf32>
    %180 = vector.extract_strided_slice %120 {offsets = [0, 24], sizes = [8, 8], strides = [1, 1]} : vector<8x32xf32> to vector<8x8xf32>
    %181 = vector.extract_strided_slice %121 {offsets = [0, 24], sizes = [8, 8], strides = [1, 1]} : vector<8x32xf32> to vector<8x8xf32>
    %182 = vector.extract_strided_slice %122 {offsets = [0, 24], sizes = [8, 8], strides = [1, 1]} : vector<8x32xf32> to vector<8x8xf32>
    %cst_62 = arith.constant dense<0.000000e+00> : vector<8x8xf32>
    %183 = tpu.matmul %180, %181, %cst_62 {dimension_numbers = #tpu.dot_dimension_numbers<[1], [1], [0], [0], [0, 0, 1, 0], [], []>} : vector<8x8xf32>, vector<8x8xf32>, vector<8x8xf32> -> vector<8x8xf32>
    %cst_63 = arith.constant 0.353553385 : f32
    %184 = vector.broadcast %cst_63 : f32 to vector<8x8xf32>
    %185 = arith.mulf %183, %184 : vector<8x8xf32>
    %186 = vector.extract_strided_slice %28 {offsets = [1, 0, 0], sizes = [1, 8, 8], strides = [1, 1, 1]} : vector<2x8x8xf32> to vector<1x8x8xf32>
    %187 = vector.shape_cast %186 : vector<1x8x8xf32> to vector<8x8xf32>
    %188 = arith.addf %185, %187 : vector<8x8xf32>
    %cst_64 = arith.constant dense<0xFF800000> : vector<8xf32>
    %189 = vector.multi_reduction <maximumf>, %188, %cst_64 [1] : vector<8x8xf32> to vector<8xf32>
    %190 = vector.shape_cast %189 : vector<8xf32> to vector<8x1xf32>
    %191 = vector.broadcast %190 : vector<8x1xf32> to vector<8x8xf32>
    %192 = arith.subf %188, %191 : vector<8x8xf32>
    %193 = math.exp %192 : vector<8x8xf32>
    %cst_65 = arith.constant dense<0.000000e+00> : vector<8xf32>
    %194 = vector.multi_reduction <add>, %193, %cst_65 [1] : vector<8x8xf32> to vector<8xf32>
    %195 = vector.shape_cast %194 : vector<8xf32> to vector<8x1xf32>
    %196 = vector.broadcast %195 : vector<8x1xf32> to vector<8x8xf32>
    %197 = arith.divf %193, %196 : vector<8x8xf32>
    %cst_66 = arith.constant dense<0.000000e+00> : vector<8x8xf32>
    %198 = tpu.matmul %197, %182, %cst_66 {dimension_numbers = #tpu.dot_dimension_numbers<[1], [0], [0], [1], [0, 0, 1, 1], [], []>} : vector<8x8xf32>, vector<8x8xf32>, vector<8x8xf32> -> vector<8x8xf32>
    %199 = tpu.concatenate %141, %160, %179, %198 in 1 : vector<8x8xf32>, vector<8x8xf32>, vector<8x8xf32>, vector<8x8xf32> -> vector<8x32xf32>
    %200 = tpu.concatenate %119, %199 in 0 : vector<8x32xf32>, vector<8x32xf32> -> vector<16x32xf32>
    %c0_67 = arith.constant 0 : index
    %c0_68 = arith.constant 0 : index
    %c0_69 = arith.constant 0 : index
    %201 = vector.load %arg7[%c0_67, %c0_68, %c0_69] : memref<2x32x32xf32, #tpu.memory_space<vmem>>, vector<1x32x32xf32>
    %202 = vector.shape_cast %201 : vector<1x32x32xf32> to vector<32x32xf32>
    %cst_70 = arith.constant dense<0.000000e+00> : vector<16x32xf32>
    %203 = tpu.matmul %200, %202, %cst_70 {dimension_numbers = #tpu.dot_dimension_numbers<[1], [0], [0], [1], [0, 0, 1, 1], [], []>} : vector<16x32xf32>, vector<32x32xf32>, vector<16x32xf32> -> vector<16x32xf32>
    %c0_71 = arith.constant 0 : index
    %c0_72 = arith.constant 0 : index
    %c0_73 = arith.constant 0 : index
    %204 = vector.load %arg8[%c0_71, %c0_72, %c0_73] : memref<2x1x32xf32, #tpu.memory_space<vmem>>, vector<1x1x32xf32>
    %205 = vector.shape_cast %204 : vector<1x1x32xf32> to vector<1x32xf32>
    %206 = vector.broadcast %205 : vector<1x32xf32> to vector<16x32xf32>
    %207 = arith.addf %203, %206 : vector<16x32xf32>
    %208 = arith.addf %29, %207 : vector<16x32xf32>
    %c0_74 = arith.constant 0 : index
    %c0_75 = arith.constant 0 : index
    %c0_76 = arith.constant 0 : index
    %209 = vector.load %arg15[%c0_74, %c0_75, %c0_76] : memref<2x1x32xf32, #tpu.memory_space<vmem>>, vector<1x1x32xf32>
    %210 = vector.shape_cast %209 : vector<1x1x32xf32> to vector<1x32xf32>
    %c0_77 = arith.constant 0 : index
    %c0_78 = arith.constant 0 : index
    %c0_79 = arith.constant 0 : index
    %211 = vector.load %arg16[%c0_77, %c0_78, %c0_79] : memref<2x1x32xf32, #tpu.memory_space<vmem>>, vector<1x1x32xf32>
    %212 = vector.shape_cast %211 : vector<1x1x32xf32> to vector<1x32xf32>
    %cst_80 = arith.constant dense<0.000000e+00> : vector<16xf32>
    %213 = vector.multi_reduction <add>, %208, %cst_80 [1] : vector<16x32xf32> to vector<16xf32>
    %214 = vector.shape_cast %213 : vector<16xf32> to vector<16x1xf32>
    %cst_81 = arith.constant 3.200000e+01 : f32
    %215 = vector.broadcast %cst_81 : f32 to vector<16x1xf32>
    %216 = arith.divf %214, %215 : vector<16x1xf32>
    %217 = vector.broadcast %216 : vector<16x1xf32> to vector<16x32xf32>
    %218 = arith.subf %208, %217 : vector<16x32xf32>
    %219 = arith.mulf %218, %218 : vector<16x32xf32>
    %cst_82 = arith.constant dense<0.000000e+00> : vector<16xf32>
    %220 = vector.multi_reduction <add>, %219, %cst_82 [1] : vector<16x32xf32> to vector<16xf32>
    %221 = vector.shape_cast %220 : vector<16xf32> to vector<16x1xf32>
    %cst_83 = arith.constant 3.200000e+01 : f32
    %222 = vector.broadcast %cst_83 : f32 to vector<16x1xf32>
    %223 = arith.divf %221, %222 : vector<16x1xf32>
    %cst_84 = arith.constant 9.99999974E-6 : f32
    %224 = vector.broadcast %cst_84 : f32 to vector<16x1xf32>
    %225 = arith.addf %223, %224 : vector<16x1xf32>
    %226 = math.rsqrt %225 : vector<16x1xf32>
    %227 = vector.broadcast %226 : vector<16x1xf32> to vector<16x32xf32>
    %228 = arith.mulf %218, %227 : vector<16x32xf32>
    %229 = vector.broadcast %210 : vector<1x32xf32> to vector<16x32xf32>
    %230 = arith.mulf %228, %229 : vector<16x32xf32>
    %231 = vector.broadcast %212 : vector<1x32xf32> to vector<16x32xf32>
    %232 = arith.addf %230, %231 : vector<16x32xf32>
    %c0_85 = arith.constant 0 : index
    %c0_86 = arith.constant 0 : index
    %c0_87 = arith.constant 0 : index
    %233 = vector.load %arg9[%c0_85, %c0_86, %c0_87] : memref<2x32x32xf32, #tpu.memory_space<vmem>>, vector<1x32x32xf32>
    %234 = vector.shape_cast %233 : vector<1x32x32xf32> to vector<32x32xf32>
    %cst_88 = arith.constant dense<0.000000e+00> : vector<16x32xf32>
    %235 = tpu.matmul %232, %234, %cst_88 {dimension_numbers = #tpu.dot_dimension_numbers<[1], [0], [0], [1], [0, 0, 1, 1], [], []>} : vector<16x32xf32>, vector<32x32xf32>, vector<16x32xf32> -> vector<16x32xf32>
    %c0_89 = arith.constant 0 : index
    %c0_90 = arith.constant 0 : index
    %c0_91 = arith.constant 0 : index
    %236 = vector.load %arg10[%c0_89, %c0_90, %c0_91] : memref<2x1x32xf32, #tpu.memory_space<vmem>>, vector<1x1x32xf32>
    %237 = vector.shape_cast %236 : vector<1x1x32xf32> to vector<1x32xf32>
    %238 = vector.broadcast %237 : vector<1x32xf32> to vector<16x32xf32>
    %239 = arith.addf %235, %238 : vector<16x32xf32>
    %c0_92 = arith.constant 0 : index
    %c0_93 = arith.constant 0 : index
    %c0_94 = arith.constant 0 : index
    %240 = vector.load %arg11[%c0_92, %c0_93, %c0_94] : memref<2x32x64xf32, #tpu.memory_space<vmem>>, vector<1x32x64xf32>
    %241 = vector.shape_cast %240 : vector<1x32x64xf32> to vector<32x64xf32>
    %cst_95 = arith.constant dense<0.000000e+00> : vector<4x64xf32>
    %242 = tpu.matmul %27, %241, %cst_95 {dimension_numbers = #tpu.dot_dimension_numbers<[1], [0], [0], [1], [0, 0, 1, 1], [], []>} : vector<4x32xf32>, vector<32x64xf32>, vector<4x64xf32> -> vector<4x64xf32>
    %c0_96 = arith.constant 0 : index
    %c0_97 = arith.constant 0 : index
    %c0_98 = arith.constant 0 : index
    %243 = vector.load %arg12[%c0_96, %c0_97, %c0_98] : memref<2x1x64xf32, #tpu.memory_space<vmem>>, vector<1x1x64xf32>
    %244 = vector.shape_cast %243 : vector<1x1x64xf32> to vector<1x64xf32>
    %245 = vector.broadcast %244 : vector<1x64xf32> to vector<4x64xf32>
    %246 = arith.addf %242, %245 : vector<4x64xf32>
    %247 = vector.extract_strided_slice %246 {offsets = [0, 0], sizes = [4, 32], strides = [1, 1]} : vector<4x64xf32> to vector<4x32xf32>
    %248 = vector.extract_strided_slice %246 {offsets = [0, 32], sizes = [4, 32], strides = [1, 1]} : vector<4x64xf32> to vector<4x32xf32>
    %249 = vector.extract_strided_slice %239 {offsets = [0, 0], sizes = [8, 32], strides = [1, 1]} : vector<16x32xf32> to vector<8x32xf32>
    %250 = vector.extract_strided_slice %247 {offsets = [0, 0], sizes = [2, 32], strides = [1, 1]} : vector<4x32xf32> to vector<2x32xf32>
    %251 = vector.extract_strided_slice %248 {offsets = [0, 0], sizes = [2, 32], strides = [1, 1]} : vector<4x32xf32> to vector<2x32xf32>
    %252 = vector.extract_strided_slice %249 {offsets = [0, 0], sizes = [8, 8], strides = [1, 1]} : vector<8x32xf32> to vector<8x8xf32>
    %253 = vector.extract_strided_slice %250 {offsets = [0, 0], sizes = [2, 8], strides = [1, 1]} : vector<2x32xf32> to vector<2x8xf32>
    %254 = vector.extract_strided_slice %251 {offsets = [0, 0], sizes = [2, 8], strides = [1, 1]} : vector<2x32xf32> to vector<2x8xf32>
    %cst_99 = arith.constant dense<0.000000e+00> : vector<8x2xf32>
    %255 = tpu.matmul %252, %253, %cst_99 {dimension_numbers = #tpu.dot_dimension_numbers<[1], [1], [0], [0], [0, 0, 1, 0], [], []>} : vector<8x8xf32>, vector<2x8xf32>, vector<8x2xf32> -> vector<8x2xf32>
    %cst_100 = arith.constant 0.353553385 : f32
    %256 = vector.broadcast %cst_100 : f32 to vector<8x2xf32>
    %257 = arith.mulf %255, %256 : vector<8x2xf32>
    %cst_101 = arith.constant dense<0xFF800000> : vector<8xf32>
    %258 = vector.multi_reduction <maximumf>, %257, %cst_101 [1] : vector<8x2xf32> to vector<8xf32>
    %259 = vector.shape_cast %258 : vector<8xf32> to vector<8x1xf32>
    %260 = vector.broadcast %259 : vector<8x1xf32> to vector<8x2xf32>
    %261 = arith.subf %257, %260 : vector<8x2xf32>
    %262 = math.exp %261 : vector<8x2xf32>
    %cst_102 = arith.constant dense<0.000000e+00> : vector<8xf32>
    %263 = vector.multi_reduction <add>, %262, %cst_102 [1] : vector<8x2xf32> to vector<8xf32>
    %264 = vector.shape_cast %263 : vector<8xf32> to vector<8x1xf32>
    %265 = vector.broadcast %264 : vector<8x1xf32> to vector<8x2xf32>
    %266 = arith.divf %262, %265 : vector<8x2xf32>
    %cst_103 = arith.constant dense<0.000000e+00> : vector<8x8xf32>
    %267 = tpu.matmul %266, %254, %cst_103 {dimension_numbers = #tpu.dot_dimension_numbers<[1], [0], [0], [1], [0, 0, 1, 1], [], []>} : vector<8x2xf32>, vector<2x8xf32>, vector<8x8xf32> -> vector<8x8xf32>
    %268 = vector.extract_strided_slice %249 {offsets = [0, 8], sizes = [8, 8], strides = [1, 1]} : vector<8x32xf32> to vector<8x8xf32>
    %269 = vector.extract_strided_slice %250 {offsets = [0, 8], sizes = [2, 8], strides = [1, 1]} : vector<2x32xf32> to vector<2x8xf32>
    %270 = vector.extract_strided_slice %251 {offsets = [0, 8], sizes = [2, 8], strides = [1, 1]} : vector<2x32xf32> to vector<2x8xf32>
    %cst_104 = arith.constant dense<0.000000e+00> : vector<8x2xf32>
    %271 = tpu.matmul %268, %269, %cst_104 {dimension_numbers = #tpu.dot_dimension_numbers<[1], [1], [0], [0], [0, 0, 1, 0], [], []>} : vector<8x8xf32>, vector<2x8xf32>, vector<8x2xf32> -> vector<8x2xf32>
    %cst_105 = arith.constant 0.353553385 : f32
    %272 = vector.broadcast %cst_105 : f32 to vector<8x2xf32>
    %273 = arith.mulf %271, %272 : vector<8x2xf32>
    %cst_106 = arith.constant dense<0xFF800000> : vector<8xf32>
    %274 = vector.multi_reduction <maximumf>, %273, %cst_106 [1] : vector<8x2xf32> to vector<8xf32>
    %275 = vector.shape_cast %274 : vector<8xf32> to vector<8x1xf32>
    %276 = vector.broadcast %275 : vector<8x1xf32> to vector<8x2xf32>
    %277 = arith.subf %273, %276 : vector<8x2xf32>
    %278 = math.exp %277 : vector<8x2xf32>
    %cst_107 = arith.constant dense<0.000000e+00> : vector<8xf32>
    %279 = vector.multi_reduction <add>, %278, %cst_107 [1] : vector<8x2xf32> to vector<8xf32>
    %280 = vector.shape_cast %279 : vector<8xf32> to vector<8x1xf32>
    %281 = vector.broadcast %280 : vector<8x1xf32> to vector<8x2xf32>
    %282 = arith.divf %278, %281 : vector<8x2xf32>
    %cst_108 = arith.constant dense<0.000000e+00> : vector<8x8xf32>
    %283 = tpu.matmul %282, %270, %cst_108 {dimension_numbers = #tpu.dot_dimension_numbers<[1], [0], [0], [1], [0, 0, 1, 1], [], []>} : vector<8x2xf32>, vector<2x8xf32>, vector<8x8xf32> -> vector<8x8xf32>
    %284 = vector.extract_strided_slice %249 {offsets = [0, 16], sizes = [8, 8], strides = [1, 1]} : vector<8x32xf32> to vector<8x8xf32>
    %285 = vector.extract_strided_slice %250 {offsets = [0, 16], sizes = [2, 8], strides = [1, 1]} : vector<2x32xf32> to vector<2x8xf32>
    %286 = vector.extract_strided_slice %251 {offsets = [0, 16], sizes = [2, 8], strides = [1, 1]} : vector<2x32xf32> to vector<2x8xf32>
    %cst_109 = arith.constant dense<0.000000e+00> : vector<8x2xf32>
    %287 = tpu.matmul %284, %285, %cst_109 {dimension_numbers = #tpu.dot_dimension_numbers<[1], [1], [0], [0], [0, 0, 1, 0], [], []>} : vector<8x8xf32>, vector<2x8xf32>, vector<8x2xf32> -> vector<8x2xf32>
    %cst_110 = arith.constant 0.353553385 : f32
    %288 = vector.broadcast %cst_110 : f32 to vector<8x2xf32>
    %289 = arith.mulf %287, %288 : vector<8x2xf32>
    %cst_111 = arith.constant dense<0xFF800000> : vector<8xf32>
    %290 = vector.multi_reduction <maximumf>, %289, %cst_111 [1] : vector<8x2xf32> to vector<8xf32>
    %291 = vector.shape_cast %290 : vector<8xf32> to vector<8x1xf32>
    %292 = vector.broadcast %291 : vector<8x1xf32> to vector<8x2xf32>
    %293 = arith.subf %289, %292 : vector<8x2xf32>
    %294 = math.exp %293 : vector<8x2xf32>
    %cst_112 = arith.constant dense<0.000000e+00> : vector<8xf32>
    %295 = vector.multi_reduction <add>, %294, %cst_112 [1] : vector<8x2xf32> to vector<8xf32>
    %296 = vector.shape_cast %295 : vector<8xf32> to vector<8x1xf32>
    %297 = vector.broadcast %296 : vector<8x1xf32> to vector<8x2xf32>
    %298 = arith.divf %294, %297 : vector<8x2xf32>
    %cst_113 = arith.constant dense<0.000000e+00> : vector<8x8xf32>
    %299 = tpu.matmul %298, %286, %cst_113 {dimension_numbers = #tpu.dot_dimension_numbers<[1], [0], [0], [1], [0, 0, 1, 1], [], []>} : vector<8x2xf32>, vector<2x8xf32>, vector<8x8xf32> -> vector<8x8xf32>
    %300 = vector.extract_strided_slice %249 {offsets = [0, 24], sizes = [8, 8], strides = [1, 1]} : vector<8x32xf32> to vector<8x8xf32>
    %301 = vector.extract_strided_slice %250 {offsets = [0, 24], sizes = [2, 8], strides = [1, 1]} : vector<2x32xf32> to vector<2x8xf32>
    %302 = vector.extract_strided_slice %251 {offsets = [0, 24], sizes = [2, 8], strides = [1, 1]} : vector<2x32xf32> to vector<2x8xf32>
    %cst_114 = arith.constant dense<0.000000e+00> : vector<8x2xf32>
    %303 = tpu.matmul %300, %301, %cst_114 {dimension_numbers = #tpu.dot_dimension_numbers<[1], [1], [0], [0], [0, 0, 1, 0], [], []>} : vector<8x8xf32>, vector<2x8xf32>, vector<8x2xf32> -> vector<8x2xf32>
    %cst_115 = arith.constant 0.353553385 : f32
    %304 = vector.broadcast %cst_115 : f32 to vector<8x2xf32>
    %305 = arith.mulf %303, %304 : vector<8x2xf32>
    %cst_116 = arith.constant dense<0xFF800000> : vector<8xf32>
    %306 = vector.multi_reduction <maximumf>, %305, %cst_116 [1] : vector<8x2xf32> to vector<8xf32>
    %307 = vector.shape_cast %306 : vector<8xf32> to vector<8x1xf32>
    %308 = vector.broadcast %307 : vector<8x1xf32> to vector<8x2xf32>
    %309 = arith.subf %305, %308 : vector<8x2xf32>
    %310 = math.exp %309 : vector<8x2xf32>
    %cst_117 = arith.constant dense<0.000000e+00> : vector<8xf32>
    %311 = vector.multi_reduction <add>, %310, %cst_117 [1] : vector<8x2xf32> to vector<8xf32>
    %312 = vector.shape_cast %311 : vector<8xf32> to vector<8x1xf32>
    %313 = vector.broadcast %312 : vector<8x1xf32> to vector<8x2xf32>
    %314 = arith.divf %310, %313 : vector<8x2xf32>
    %cst_118 = arith.constant dense<0.000000e+00> : vector<8x8xf32>
    %315 = tpu.matmul %314, %302, %cst_118 {dimension_numbers = #tpu.dot_dimension_numbers<[1], [0], [0], [1], [0, 0, 1, 1], [], []>} : vector<8x2xf32>, vector<2x8xf32>, vector<8x8xf32> -> vector<8x8xf32>
    %316 = tpu.concatenate %267, %283, %299, %315 in 1 : vector<8x8xf32>, vector<8x8xf32>, vector<8x8xf32>, vector<8x8xf32> -> vector<8x32xf32>
    %317 = vector.extract_strided_slice %239 {offsets = [8, 0], sizes = [8, 32], strides = [1, 1]} : vector<16x32xf32> to vector<8x32xf32>
    %318 = vector.extract_strided_slice %247 {offsets = [2, 0], sizes = [2, 32], strides = [1, 1]} : vector<4x32xf32> to vector<2x32xf32>
    %319 = vector.extract_strided_slice %248 {offsets = [2, 0], sizes = [2, 32], strides = [1, 1]} : vector<4x32xf32> to vector<2x32xf32>
    %320 = vector.extract_strided_slice %317 {offsets = [0, 0], sizes = [8, 8], strides = [1, 1]} : vector<8x32xf32> to vector<8x8xf32>
    %321 = vector.extract_strided_slice %318 {offsets = [0, 0], sizes = [2, 8], strides = [1, 1]} : vector<2x32xf32> to vector<2x8xf32>
    %322 = vector.extract_strided_slice %319 {offsets = [0, 0], sizes = [2, 8], strides = [1, 1]} : vector<2x32xf32> to vector<2x8xf32>
    %cst_119 = arith.constant dense<0.000000e+00> : vector<8x2xf32>
    %323 = tpu.matmul %320, %321, %cst_119 {dimension_numbers = #tpu.dot_dimension_numbers<[1], [1], [0], [0], [0, 0, 1, 0], [], []>} : vector<8x8xf32>, vector<2x8xf32>, vector<8x2xf32> -> vector<8x2xf32>
    %cst_120 = arith.constant 0.353553385 : f32
    %324 = vector.broadcast %cst_120 : f32 to vector<8x2xf32>
    %325 = arith.mulf %323, %324 : vector<8x2xf32>
    %cst_121 = arith.constant dense<0xFF800000> : vector<8xf32>
    %326 = vector.multi_reduction <maximumf>, %325, %cst_121 [1] : vector<8x2xf32> to vector<8xf32>
    %327 = vector.shape_cast %326 : vector<8xf32> to vector<8x1xf32>
    %328 = vector.broadcast %327 : vector<8x1xf32> to vector<8x2xf32>
    %329 = arith.subf %325, %328 : vector<8x2xf32>
    %330 = math.exp %329 : vector<8x2xf32>
    %cst_122 = arith.constant dense<0.000000e+00> : vector<8xf32>
    %331 = vector.multi_reduction <add>, %330, %cst_122 [1] : vector<8x2xf32> to vector<8xf32>
    %332 = vector.shape_cast %331 : vector<8xf32> to vector<8x1xf32>
    %333 = vector.broadcast %332 : vector<8x1xf32> to vector<8x2xf32>
    %334 = arith.divf %330, %333 : vector<8x2xf32>
    %cst_123 = arith.constant dense<0.000000e+00> : vector<8x8xf32>
    %335 = tpu.matmul %334, %322, %cst_123 {dimension_numbers = #tpu.dot_dimension_numbers<[1], [0], [0], [1], [0, 0, 1, 1], [], []>} : vector<8x2xf32>, vector<2x8xf32>, vector<8x8xf32> -> vector<8x8xf32>
    %336 = vector.extract_strided_slice %317 {offsets = [0, 8], sizes = [8, 8], strides = [1, 1]} : vector<8x32xf32> to vector<8x8xf32>
    %337 = vector.extract_strided_slice %318 {offsets = [0, 8], sizes = [2, 8], strides = [1, 1]} : vector<2x32xf32> to vector<2x8xf32>
    %338 = vector.extract_strided_slice %319 {offsets = [0, 8], sizes = [2, 8], strides = [1, 1]} : vector<2x32xf32> to vector<2x8xf32>
    %cst_124 = arith.constant dense<0.000000e+00> : vector<8x2xf32>
    %339 = tpu.matmul %336, %337, %cst_124 {dimension_numbers = #tpu.dot_dimension_numbers<[1], [1], [0], [0], [0, 0, 1, 0], [], []>} : vector<8x8xf32>, vector<2x8xf32>, vector<8x2xf32> -> vector<8x2xf32>
    %cst_125 = arith.constant 0.353553385 : f32
    %340 = vector.broadcast %cst_125 : f32 to vector<8x2xf32>
    %341 = arith.mulf %339, %340 : vector<8x2xf32>
    %cst_126 = arith.constant dense<0xFF800000> : vector<8xf32>
    %342 = vector.multi_reduction <maximumf>, %341, %cst_126 [1] : vector<8x2xf32> to vector<8xf32>
    %343 = vector.shape_cast %342 : vector<8xf32> to vector<8x1xf32>
    %344 = vector.broadcast %343 : vector<8x1xf32> to vector<8x2xf32>
    %345 = arith.subf %341, %344 : vector<8x2xf32>
    %346 = math.exp %345 : vector<8x2xf32>
    %cst_127 = arith.constant dense<0.000000e+00> : vector<8xf32>
    %347 = vector.multi_reduction <add>, %346, %cst_127 [1] : vector<8x2xf32> to vector<8xf32>
    %348 = vector.shape_cast %347 : vector<8xf32> to vector<8x1xf32>
    %349 = vector.broadcast %348 : vector<8x1xf32> to vector<8x2xf32>
    %350 = arith.divf %346, %349 : vector<8x2xf32>
    %cst_128 = arith.constant dense<0.000000e+00> : vector<8x8xf32>
    %351 = tpu.matmul %350, %338, %cst_128 {dimension_numbers = #tpu.dot_dimension_numbers<[1], [0], [0], [1], [0, 0, 1, 1], [], []>} : vector<8x2xf32>, vector<2x8xf32>, vector<8x8xf32> -> vector<8x8xf32>
    %352 = vector.extract_strided_slice %317 {offsets = [0, 16], sizes = [8, 8], strides = [1, 1]} : vector<8x32xf32> to vector<8x8xf32>
    %353 = vector.extract_strided_slice %318 {offsets = [0, 16], sizes = [2, 8], strides = [1, 1]} : vector<2x32xf32> to vector<2x8xf32>
    %354 = vector.extract_strided_slice %319 {offsets = [0, 16], sizes = [2, 8], strides = [1, 1]} : vector<2x32xf32> to vector<2x8xf32>
    %cst_129 = arith.constant dense<0.000000e+00> : vector<8x2xf32>
    %355 = tpu.matmul %352, %353, %cst_129 {dimension_numbers = #tpu.dot_dimension_numbers<[1], [1], [0], [0], [0, 0, 1, 0], [], []>} : vector<8x8xf32>, vector<2x8xf32>, vector<8x2xf32> -> vector<8x2xf32>
    %cst_130 = arith.constant 0.353553385 : f32
    %356 = vector.broadcast %cst_130 : f32 to vector<8x2xf32>
    %357 = arith.mulf %355, %356 : vector<8x2xf32>
    %cst_131 = arith.constant dense<0xFF800000> : vector<8xf32>
    %358 = vector.multi_reduction <maximumf>, %357, %cst_131 [1] : vector<8x2xf32> to vector<8xf32>
    %359 = vector.shape_cast %358 : vector<8xf32> to vector<8x1xf32>
    %360 = vector.broadcast %359 : vector<8x1xf32> to vector<8x2xf32>
    %361 = arith.subf %357, %360 : vector<8x2xf32>
    %362 = math.exp %361 : vector<8x2xf32>
    %cst_132 = arith.constant dense<0.000000e+00> : vector<8xf32>
    %363 = vector.multi_reduction <add>, %362, %cst_132 [1] : vector<8x2xf32> to vector<8xf32>
    %364 = vector.shape_cast %363 : vector<8xf32> to vector<8x1xf32>
    %365 = vector.broadcast %364 : vector<8x1xf32> to vector<8x2xf32>
    %366 = arith.divf %362, %365 : vector<8x2xf32>
    %cst_133 = arith.constant dense<0.000000e+00> : vector<8x8xf32>
    %367 = tpu.matmul %366, %354, %cst_133 {dimension_numbers = #tpu.dot_dimension_numbers<[1], [0], [0], [1], [0, 0, 1, 1], [], []>} : vector<8x2xf32>, vector<2x8xf32>, vector<8x8xf32> -> vector<8x8xf32>
    %368 = vector.extract_strided_slice %317 {offsets = [0, 24], sizes = [8, 8], strides = [1, 1]} : vector<8x32xf32> to vector<8x8xf32>
    %369 = vector.extract_strided_slice %318 {offsets = [0, 24], sizes = [2, 8], strides = [1, 1]} : vector<2x32xf32> to vector<2x8xf32>
    %370 = vector.extract_strided_slice %319 {offsets = [0, 24], sizes = [2, 8], strides = [1, 1]} : vector<2x32xf32> to vector<2x8xf32>
    %cst_134 = arith.constant dense<0.000000e+00> : vector<8x2xf32>
    %371 = tpu.matmul %368, %369, %cst_134 {dimension_numbers = #tpu.dot_dimension_numbers<[1], [1], [0], [0], [0, 0, 1, 0], [], []>} : vector<8x8xf32>, vector<2x8xf32>, vector<8x2xf32> -> vector<8x2xf32>
    %cst_135 = arith.constant 0.353553385 : f32
    %372 = vector.broadcast %cst_135 : f32 to vector<8x2xf32>
    %373 = arith.mulf %371, %372 : vector<8x2xf32>
    %cst_136 = arith.constant dense<0xFF800000> : vector<8xf32>
    %374 = vector.multi_reduction <maximumf>, %373, %cst_136 [1] : vector<8x2xf32> to vector<8xf32>
    %375 = vector.shape_cast %374 : vector<8xf32> to vector<8x1xf32>
    %376 = vector.broadcast %375 : vector<8x1xf32> to vector<8x2xf32>
    %377 = arith.subf %373, %376 : vector<8x2xf32>
    %378 = math.exp %377 : vector<8x2xf32>
    %cst_137 = arith.constant dense<0.000000e+00> : vector<8xf32>
    %379 = vector.multi_reduction <add>, %378, %cst_137 [1] : vector<8x2xf32> to vector<8xf32>
    %380 = vector.shape_cast %379 : vector<8xf32> to vector<8x1xf32>
    %381 = vector.broadcast %380 : vector<8x1xf32> to vector<8x2xf32>
    %382 = arith.divf %378, %381 : vector<8x2xf32>
    %cst_138 = arith.constant dense<0.000000e+00> : vector<8x8xf32>
    %383 = tpu.matmul %382, %370, %cst_138 {dimension_numbers = #tpu.dot_dimension_numbers<[1], [0], [0], [1], [0, 0, 1, 1], [], []>} : vector<8x2xf32>, vector<2x8xf32>, vector<8x8xf32> -> vector<8x8xf32>
    %384 = tpu.concatenate %335, %351, %367, %383 in 1 : vector<8x8xf32>, vector<8x8xf32>, vector<8x8xf32>, vector<8x8xf32> -> vector<8x32xf32>
    %385 = tpu.concatenate %316, %384 in 0 : vector<8x32xf32>, vector<8x32xf32> -> vector<16x32xf32>
    %c0_139 = arith.constant 0 : index
    %c0_140 = arith.constant 0 : index
    %c0_141 = arith.constant 0 : index
    %386 = vector.load %arg13[%c0_139, %c0_140, %c0_141] : memref<2x32x32xf32, #tpu.memory_space<vmem>>, vector<1x32x32xf32>
    %387 = vector.shape_cast %386 : vector<1x32x32xf32> to vector<32x32xf32>
    %cst_142 = arith.constant dense<0.000000e+00> : vector<16x32xf32>
    %388 = tpu.matmul %385, %387, %cst_142 {dimension_numbers = #tpu.dot_dimension_numbers<[1], [0], [0], [1], [0, 0, 1, 1], [], []>} : vector<16x32xf32>, vector<32x32xf32>, vector<16x32xf32> -> vector<16x32xf32>
    %c0_143 = arith.constant 0 : index
    %c0_144 = arith.constant 0 : index
    %c0_145 = arith.constant 0 : index
    %389 = vector.load %arg14[%c0_143, %c0_144, %c0_145] : memref<2x1x32xf32, #tpu.memory_space<vmem>>, vector<1x1x32xf32>
    %390 = vector.shape_cast %389 : vector<1x1x32xf32> to vector<1x32xf32>
    %391 = vector.broadcast %390 : vector<1x32xf32> to vector<16x32xf32>
    %392 = arith.addf %388, %391 : vector<16x32xf32>
    %393 = arith.addf %232, %392 : vector<16x32xf32>
    %c0_146 = arith.constant 0 : index
    %c0_147 = arith.constant 0 : index
    %c0_148 = arith.constant 0 : index
    %394 = vector.load %arg17[%c0_146, %c0_147, %c0_148] : memref<2x1x32xf32, #tpu.memory_space<vmem>>, vector<1x1x32xf32>
    %395 = vector.shape_cast %394 : vector<1x1x32xf32> to vector<1x32xf32>
    %c0_149 = arith.constant 0 : index
    %c0_150 = arith.constant 0 : index
    %c0_151 = arith.constant 0 : index
    %396 = vector.load %arg18[%c0_149, %c0_150, %c0_151] : memref<2x1x32xf32, #tpu.memory_space<vmem>>, vector<1x1x32xf32>
    %397 = vector.shape_cast %396 : vector<1x1x32xf32> to vector<1x32xf32>
    %cst_152 = arith.constant dense<0.000000e+00> : vector<16xf32>
    %398 = vector.multi_reduction <add>, %393, %cst_152 [1] : vector<16x32xf32> to vector<16xf32>
    %399 = vector.shape_cast %398 : vector<16xf32> to vector<16x1xf32>
    %cst_153 = arith.constant 3.200000e+01 : f32
    %400 = vector.broadcast %cst_153 : f32 to vector<16x1xf32>
    %401 = arith.divf %399, %400 : vector<16x1xf32>
    %402 = vector.broadcast %401 : vector<16x1xf32> to vector<16x32xf32>
    %403 = arith.subf %393, %402 : vector<16x32xf32>
    %404 = arith.mulf %403, %403 : vector<16x32xf32>
    %cst_154 = arith.constant dense<0.000000e+00> : vector<16xf32>
    %405 = vector.multi_reduction <add>, %404, %cst_154 [1] : vector<16x32xf32> to vector<16xf32>
    %406 = vector.shape_cast %405 : vector<16xf32> to vector<16x1xf32>
    %cst_155 = arith.constant 3.200000e+01 : f32
    %407 = vector.broadcast %cst_155 : f32 to vector<16x1xf32>
    %408 = arith.divf %406, %407 : vector<16x1xf32>
    %cst_156 = arith.constant 9.99999974E-6 : f32
    %409 = vector.broadcast %cst_156 : f32 to vector<16x1xf32>
    %410 = arith.addf %408, %409 : vector<16x1xf32>
    %411 = math.rsqrt %410 : vector<16x1xf32>
    %412 = vector.broadcast %411 : vector<16x1xf32> to vector<16x32xf32>
    %413 = arith.mulf %403, %412 : vector<16x32xf32>
    %414 = vector.broadcast %395 : vector<1x32xf32> to vector<16x32xf32>
    %415 = arith.mulf %413, %414 : vector<16x32xf32>
    %416 = vector.broadcast %397 : vector<1x32xf32> to vector<16x32xf32>
    %417 = arith.addf %415, %416 : vector<16x32xf32>
    %c0_157 = arith.constant 0 : index
    %c0_158 = arith.constant 0 : index
    %c0_159 = arith.constant 0 : index
    %418 = vector.load %arg21[%c0_157, %c0_158, %c0_159] : memref<2x32x64xf32, #tpu.memory_space<vmem>>, vector<1x32x64xf32>
    %419 = vector.shape_cast %418 : vector<1x32x64xf32> to vector<32x64xf32>
    %cst_160 = arith.constant dense<0.000000e+00> : vector<16x64xf32>
    %420 = tpu.matmul %417, %419, %cst_160 {dimension_numbers = #tpu.dot_dimension_numbers<[1], [0], [0], [1], [0, 0, 1, 1], [], []>} : vector<16x32xf32>, vector<32x64xf32>, vector<16x64xf32> -> vector<16x64xf32>
    %c0_161 = arith.constant 0 : index
    %c0_162 = arith.constant 0 : index
    %c0_163 = arith.constant 0 : index
    %421 = vector.load %arg22[%c0_161, %c0_162, %c0_163] : memref<2x1x64xf32, #tpu.memory_space<vmem>>, vector<1x1x64xf32>
    %422 = vector.shape_cast %421 : vector<1x1x64xf32> to vector<1x64xf32>
    %423 = vector.broadcast %422 : vector<1x64xf32> to vector<16x64xf32>
    %424 = arith.addf %420, %423 : vector<16x64xf32>
    %cst_164 = arith.constant 0.000000e+00 : f32
    %425 = vector.broadcast %cst_164 : f32 to vector<16x64xf32>
    %426 = arith.maximumf %424, %425 : vector<16x64xf32>
    %c0_165 = arith.constant 0 : index
    %c0_166 = arith.constant 0 : index
    %c0_167 = arith.constant 0 : index
    %427 = vector.load %arg23[%c0_165, %c0_166, %c0_167] : memref<2x64x32xf32, #tpu.memory_space<vmem>>, vector<1x64x32xf32>
    %428 = vector.shape_cast %427 : vector<1x64x32xf32> to vector<64x32xf32>
    %cst_168 = arith.constant dense<0.000000e+00> : vector<16x32xf32>
    %429 = tpu.matmul %426, %428, %cst_168 {dimension_numbers = #tpu.dot_dimension_numbers<[1], [0], [0], [1], [0, 0, 1, 1], [], []>} : vector<16x64xf32>, vector<64x32xf32>, vector<16x32xf32> -> vector<16x32xf32>
    %c0_169 = arith.constant 0 : index
    %c0_170 = arith.constant 0 : index
    %c0_171 = arith.constant 0 : index
    %430 = vector.load %arg24[%c0_169, %c0_170, %c0_171] : memref<2x1x32xf32, #tpu.memory_space<vmem>>, vector<1x1x32xf32>
    %431 = vector.shape_cast %430 : vector<1x1x32xf32> to vector<1x32xf32>
    %432 = vector.broadcast %431 : vector<1x32xf32> to vector<16x32xf32>
    %433 = arith.addf %429, %432 : vector<16x32xf32>
    %434 = arith.addf %417, %433 : vector<16x32xf32>
    %c0_172 = arith.constant 0 : index
    %c0_173 = arith.constant 0 : index
    %c0_174 = arith.constant 0 : index
    %435 = vector.load %arg19[%c0_172, %c0_173, %c0_174] : memref<2x1x32xf32, #tpu.memory_space<vmem>>, vector<1x1x32xf32>
    %436 = vector.shape_cast %435 : vector<1x1x32xf32> to vector<1x32xf32>
    %c0_175 = arith.constant 0 : index
    %c0_176 = arith.constant 0 : index
    %c0_177 = arith.constant 0 : index
    %437 = vector.load %arg20[%c0_175, %c0_176, %c0_177] : memref<2x1x32xf32, #tpu.memory_space<vmem>>, vector<1x1x32xf32>
    %438 = vector.shape_cast %437 : vector<1x1x32xf32> to vector<1x32xf32>
    %cst_178 = arith.constant dense<0.000000e+00> : vector<16xf32>
    %439 = vector.multi_reduction <add>, %434, %cst_178 [1] : vector<16x32xf32> to vector<16xf32>
    %440 = vector.shape_cast %439 : vector<16xf32> to vector<16x1xf32>
    %cst_179 = arith.constant 3.200000e+01 : f32
    %441 = vector.broadcast %cst_179 : f32 to vector<16x1xf32>
    %442 = arith.divf %440, %441 : vector<16x1xf32>
    %443 = vector.broadcast %442 : vector<16x1xf32> to vector<16x32xf32>
    %444 = arith.subf %434, %443 : vector<16x32xf32>
    %445 = arith.mulf %444, %444 : vector<16x32xf32>
    %cst_180 = arith.constant dense<0.000000e+00> : vector<16xf32>
    %446 = vector.multi_reduction <add>, %445, %cst_180 [1] : vector<16x32xf32> to vector<16xf32>
    %447 = vector.shape_cast %446 : vector<16xf32> to vector<16x1xf32>
    %cst_181 = arith.constant 3.200000e+01 : f32
    %448 = vector.broadcast %cst_181 : f32 to vector<16x1xf32>
    %449 = arith.divf %447, %448 : vector<16x1xf32>
    %cst_182 = arith.constant 9.99999974E-6 : f32
    %450 = vector.broadcast %cst_182 : f32 to vector<16x1xf32>
    %451 = arith.addf %449, %450 : vector<16x1xf32>
    %452 = math.rsqrt %451 : vector<16x1xf32>
    %453 = vector.broadcast %452 : vector<16x1xf32> to vector<16x32xf32>
    %454 = arith.mulf %444, %453 : vector<16x32xf32>
    %455 = vector.broadcast %436 : vector<1x32xf32> to vector<16x32xf32>
    %456 = arith.mulf %454, %455 : vector<16x32xf32>
    %457 = vector.broadcast %438 : vector<1x32xf32> to vector<16x32xf32>
    %458 = arith.addf %456, %457 : vector<16x32xf32>
    %c1 = arith.constant 1 : index
    %c0_183 = arith.constant 0 : index
    %c0_184 = arith.constant 0 : index
    %459 = vector.load %arg5[%c1, %c0_183, %c0_184] : memref<2x32x96xf32, #tpu.memory_space<vmem>>, vector<1x32x96xf32>
    %460 = vector.shape_cast %459 : vector<1x32x96xf32> to vector<32x96xf32>
    %cst_185 = arith.constant dense<0.000000e+00> : vector<16x96xf32>
    %461 = tpu.matmul %458, %460, %cst_185 {dimension_numbers = #tpu.dot_dimension_numbers<[1], [0], [0], [1], [0, 0, 1, 1], [], []>} : vector<16x32xf32>, vector<32x96xf32>, vector<16x96xf32> -> vector<16x96xf32>
    %c1_186 = arith.constant 1 : index
    %c0_187 = arith.constant 0 : index
    %c0_188 = arith.constant 0 : index
    %462 = vector.load %arg6[%c1_186, %c0_187, %c0_188] : memref<2x1x96xf32, #tpu.memory_space<vmem>>, vector<1x1x96xf32>
    %463 = vector.shape_cast %462 : vector<1x1x96xf32> to vector<1x96xf32>
    %464 = vector.broadcast %463 : vector<1x96xf32> to vector<16x96xf32>
    %465 = arith.addf %461, %464 : vector<16x96xf32>
    %466 = vector.extract_strided_slice %465 {offsets = [0, 0], sizes = [16, 32], strides = [1, 1]} : vector<16x96xf32> to vector<16x32xf32>
    %467 = vector.extract_strided_slice %465 {offsets = [0, 32], sizes = [16, 32], strides = [1, 1]} : vector<16x96xf32> to vector<16x32xf32>
    %468 = vector.extract_strided_slice %465 {offsets = [0, 64], sizes = [16, 32], strides = [1, 1]} : vector<16x96xf32> to vector<16x32xf32>
    %469 = vector.extract_strided_slice %466 {offsets = [0, 0], sizes = [8, 32], strides = [1, 1]} : vector<16x32xf32> to vector<8x32xf32>
    %470 = vector.extract_strided_slice %467 {offsets = [0, 0], sizes = [8, 32], strides = [1, 1]} : vector<16x32xf32> to vector<8x32xf32>
    %471 = vector.extract_strided_slice %468 {offsets = [0, 0], sizes = [8, 32], strides = [1, 1]} : vector<16x32xf32> to vector<8x32xf32>
    %472 = vector.extract_strided_slice %469 {offsets = [0, 0], sizes = [8, 8], strides = [1, 1]} : vector<8x32xf32> to vector<8x8xf32>
    %473 = vector.extract_strided_slice %470 {offsets = [0, 0], sizes = [8, 8], strides = [1, 1]} : vector<8x32xf32> to vector<8x8xf32>
    %474 = vector.extract_strided_slice %471 {offsets = [0, 0], sizes = [8, 8], strides = [1, 1]} : vector<8x32xf32> to vector<8x8xf32>
    %cst_189 = arith.constant dense<0.000000e+00> : vector<8x8xf32>
    %475 = tpu.matmul %472, %473, %cst_189 {dimension_numbers = #tpu.dot_dimension_numbers<[1], [1], [0], [0], [0, 0, 1, 0], [], []>} : vector<8x8xf32>, vector<8x8xf32>, vector<8x8xf32> -> vector<8x8xf32>
    %cst_190 = arith.constant 0.353553385 : f32
    %476 = vector.broadcast %cst_190 : f32 to vector<8x8xf32>
    %477 = arith.mulf %475, %476 : vector<8x8xf32>
    %478 = vector.extract_strided_slice %28 {offsets = [0, 0, 0], sizes = [1, 8, 8], strides = [1, 1, 1]} : vector<2x8x8xf32> to vector<1x8x8xf32>
    %479 = vector.shape_cast %478 : vector<1x8x8xf32> to vector<8x8xf32>
    %480 = arith.addf %477, %479 : vector<8x8xf32>
    %cst_191 = arith.constant dense<0xFF800000> : vector<8xf32>
    %481 = vector.multi_reduction <maximumf>, %480, %cst_191 [1] : vector<8x8xf32> to vector<8xf32>
    %482 = vector.shape_cast %481 : vector<8xf32> to vector<8x1xf32>
    %483 = vector.broadcast %482 : vector<8x1xf32> to vector<8x8xf32>
    %484 = arith.subf %480, %483 : vector<8x8xf32>
    %485 = math.exp %484 : vector<8x8xf32>
    %cst_192 = arith.constant dense<0.000000e+00> : vector<8xf32>
    %486 = vector.multi_reduction <add>, %485, %cst_192 [1] : vector<8x8xf32> to vector<8xf32>
    %487 = vector.shape_cast %486 : vector<8xf32> to vector<8x1xf32>
    %488 = vector.broadcast %487 : vector<8x1xf32> to vector<8x8xf32>
    %489 = arith.divf %485, %488 : vector<8x8xf32>
    %cst_193 = arith.constant dense<0.000000e+00> : vector<8x8xf32>
    %490 = tpu.matmul %489, %474, %cst_193 {dimension_numbers = #tpu.dot_dimension_numbers<[1], [0], [0], [1], [0, 0, 1, 1], [], []>} : vector<8x8xf32>, vector<8x8xf32>, vector<8x8xf32> -> vector<8x8xf32>
    %491 = vector.extract_strided_slice %469 {offsets = [0, 8], sizes = [8, 8], strides = [1, 1]} : vector<8x32xf32> to vector<8x8xf32>
    %492 = vector.extract_strided_slice %470 {offsets = [0, 8], sizes = [8, 8], strides = [1, 1]} : vector<8x32xf32> to vector<8x8xf32>
    %493 = vector.extract_strided_slice %471 {offsets = [0, 8], sizes = [8, 8], strides = [1, 1]} : vector<8x32xf32> to vector<8x8xf32>
    %cst_194 = arith.constant dense<0.000000e+00> : vector<8x8xf32>
    %494 = tpu.matmul %491, %492, %cst_194 {dimension_numbers = #tpu.dot_dimension_numbers<[1], [1], [0], [0], [0, 0, 1, 0], [], []>} : vector<8x8xf32>, vector<8x8xf32>, vector<8x8xf32> -> vector<8x8xf32>
    %cst_195 = arith.constant 0.353553385 : f32
    %495 = vector.broadcast %cst_195 : f32 to vector<8x8xf32>
    %496 = arith.mulf %494, %495 : vector<8x8xf32>
    %497 = vector.extract_strided_slice %28 {offsets = [0, 0, 0], sizes = [1, 8, 8], strides = [1, 1, 1]} : vector<2x8x8xf32> to vector<1x8x8xf32>
    %498 = vector.shape_cast %497 : vector<1x8x8xf32> to vector<8x8xf32>
    %499 = arith.addf %496, %498 : vector<8x8xf32>
    %cst_196 = arith.constant dense<0xFF800000> : vector<8xf32>
    %500 = vector.multi_reduction <maximumf>, %499, %cst_196 [1] : vector<8x8xf32> to vector<8xf32>
    %501 = vector.shape_cast %500 : vector<8xf32> to vector<8x1xf32>
    %502 = vector.broadcast %501 : vector<8x1xf32> to vector<8x8xf32>
    %503 = arith.subf %499, %502 : vector<8x8xf32>
    %504 = math.exp %503 : vector<8x8xf32>
    %cst_197 = arith.constant dense<0.000000e+00> : vector<8xf32>
    %505 = vector.multi_reduction <add>, %504, %cst_197 [1] : vector<8x8xf32> to vector<8xf32>
    %506 = vector.shape_cast %505 : vector<8xf32> to vector<8x1xf32>
    %507 = vector.broadcast %506 : vector<8x1xf32> to vector<8x8xf32>
    %508 = arith.divf %504, %507 : vector<8x8xf32>
    %cst_198 = arith.constant dense<0.000000e+00> : vector<8x8xf32>
    %509 = tpu.matmul %508, %493, %cst_198 {dimension_numbers = #tpu.dot_dimension_numbers<[1], [0], [0], [1], [0, 0, 1, 1], [], []>} : vector<8x8xf32>, vector<8x8xf32>, vector<8x8xf32> -> vector<8x8xf32>
    %510 = vector.extract_strided_slice %469 {offsets = [0, 16], sizes = [8, 8], strides = [1, 1]} : vector<8x32xf32> to vector<8x8xf32>
    %511 = vector.extract_strided_slice %470 {offsets = [0, 16], sizes = [8, 8], strides = [1, 1]} : vector<8x32xf32> to vector<8x8xf32>
    %512 = vector.extract_strided_slice %471 {offsets = [0, 16], sizes = [8, 8], strides = [1, 1]} : vector<8x32xf32> to vector<8x8xf32>
    %cst_199 = arith.constant dense<0.000000e+00> : vector<8x8xf32>
    %513 = tpu.matmul %510, %511, %cst_199 {dimension_numbers = #tpu.dot_dimension_numbers<[1], [1], [0], [0], [0, 0, 1, 0], [], []>} : vector<8x8xf32>, vector<8x8xf32>, vector<8x8xf32> -> vector<8x8xf32>
    %cst_200 = arith.constant 0.353553385 : f32
    %514 = vector.broadcast %cst_200 : f32 to vector<8x8xf32>
    %515 = arith.mulf %513, %514 : vector<8x8xf32>
    %516 = vector.extract_strided_slice %28 {offsets = [0, 0, 0], sizes = [1, 8, 8], strides = [1, 1, 1]} : vector<2x8x8xf32> to vector<1x8x8xf32>
    %517 = vector.shape_cast %516 : vector<1x8x8xf32> to vector<8x8xf32>
    %518 = arith.addf %515, %517 : vector<8x8xf32>
    %cst_201 = arith.constant dense<0xFF800000> : vector<8xf32>
    %519 = vector.multi_reduction <maximumf>, %518, %cst_201 [1] : vector<8x8xf32> to vector<8xf32>
    %520 = vector.shape_cast %519 : vector<8xf32> to vector<8x1xf32>
    %521 = vector.broadcast %520 : vector<8x1xf32> to vector<8x8xf32>
    %522 = arith.subf %518, %521 : vector<8x8xf32>
    %523 = math.exp %522 : vector<8x8xf32>
    %cst_202 = arith.constant dense<0.000000e+00> : vector<8xf32>
    %524 = vector.multi_reduction <add>, %523, %cst_202 [1] : vector<8x8xf32> to vector<8xf32>
    %525 = vector.shape_cast %524 : vector<8xf32> to vector<8x1xf32>
    %526 = vector.broadcast %525 : vector<8x1xf32> to vector<8x8xf32>
    %527 = arith.divf %523, %526 : vector<8x8xf32>
    %cst_203 = arith.constant dense<0.000000e+00> : vector<8x8xf32>
    %528 = tpu.matmul %527, %512, %cst_203 {dimension_numbers = #tpu.dot_dimension_numbers<[1], [0], [0], [1], [0, 0, 1, 1], [], []>} : vector<8x8xf32>, vector<8x8xf32>, vector<8x8xf32> -> vector<8x8xf32>
    %529 = vector.extract_strided_slice %469 {offsets = [0, 24], sizes = [8, 8], strides = [1, 1]} : vector<8x32xf32> to vector<8x8xf32>
    %530 = vector.extract_strided_slice %470 {offsets = [0, 24], sizes = [8, 8], strides = [1, 1]} : vector<8x32xf32> to vector<8x8xf32>
    %531 = vector.extract_strided_slice %471 {offsets = [0, 24], sizes = [8, 8], strides = [1, 1]} : vector<8x32xf32> to vector<8x8xf32>
    %cst_204 = arith.constant dense<0.000000e+00> : vector<8x8xf32>
    %532 = tpu.matmul %529, %530, %cst_204 {dimension_numbers = #tpu.dot_dimension_numbers<[1], [1], [0], [0], [0, 0, 1, 0], [], []>} : vector<8x8xf32>, vector<8x8xf32>, vector<8x8xf32> -> vector<8x8xf32>
    %cst_205 = arith.constant 0.353553385 : f32
    %533 = vector.broadcast %cst_205 : f32 to vector<8x8xf32>
    %534 = arith.mulf %532, %533 : vector<8x8xf32>
    %535 = vector.extract_strided_slice %28 {offsets = [0, 0, 0], sizes = [1, 8, 8], strides = [1, 1, 1]} : vector<2x8x8xf32> to vector<1x8x8xf32>
    %536 = vector.shape_cast %535 : vector<1x8x8xf32> to vector<8x8xf32>
    %537 = arith.addf %534, %536 : vector<8x8xf32>
    %cst_206 = arith.constant dense<0xFF800000> : vector<8xf32>
    %538 = vector.multi_reduction <maximumf>, %537, %cst_206 [1] : vector<8x8xf32> to vector<8xf32>
    %539 = vector.shape_cast %538 : vector<8xf32> to vector<8x1xf32>
    %540 = vector.broadcast %539 : vector<8x1xf32> to vector<8x8xf32>
    %541 = arith.subf %537, %540 : vector<8x8xf32>
    %542 = math.exp %541 : vector<8x8xf32>
    %cst_207 = arith.constant dense<0.000000e+00> : vector<8xf32>
    %543 = vector.multi_reduction <add>, %542, %cst_207 [1] : vector<8x8xf32> to vector<8xf32>
    %544 = vector.shape_cast %543 : vector<8xf32> to vector<8x1xf32>
    %545 = vector.broadcast %544 : vector<8x1xf32> to vector<8x8xf32>
    %546 = arith.divf %542, %545 : vector<8x8xf32>
    %cst_208 = arith.constant dense<0.000000e+00> : vector<8x8xf32>
    %547 = tpu.matmul %546, %531, %cst_208 {dimension_numbers = #tpu.dot_dimension_numbers<[1], [0], [0], [1], [0, 0, 1, 1], [], []>} : vector<8x8xf32>, vector<8x8xf32>, vector<8x8xf32> -> vector<8x8xf32>
    %548 = tpu.concatenate %490, %509, %528, %547 in 1 : vector<8x8xf32>, vector<8x8xf32>, vector<8x8xf32>, vector<8x8xf32> -> vector<8x32xf32>
    %549 = vector.extract_strided_slice %466 {offsets = [8, 0], sizes = [8, 32], strides = [1, 1]} : vector<16x32xf32> to vector<8x32xf32>
    %550 = vector.extract_strided_slice %467 {offsets = [8, 0], sizes = [8, 32], strides = [1, 1]} : vector<16x32xf32> to vector<8x32xf32>
    %551 = vector.extract_strided_slice %468 {offsets = [8, 0], sizes = [8, 32], strides = [1, 1]} : vector<16x32xf32> to vector<8x32xf32>
    %552 = vector.extract_strided_slice %549 {offsets = [0, 0], sizes = [8, 8], strides = [1, 1]} : vector<8x32xf32> to vector<8x8xf32>
    %553 = vector.extract_strided_slice %550 {offsets = [0, 0], sizes = [8, 8], strides = [1, 1]} : vector<8x32xf32> to vector<8x8xf32>
    %554 = vector.extract_strided_slice %551 {offsets = [0, 0], sizes = [8, 8], strides = [1, 1]} : vector<8x32xf32> to vector<8x8xf32>
    %cst_209 = arith.constant dense<0.000000e+00> : vector<8x8xf32>
    %555 = tpu.matmul %552, %553, %cst_209 {dimension_numbers = #tpu.dot_dimension_numbers<[1], [1], [0], [0], [0, 0, 1, 0], [], []>} : vector<8x8xf32>, vector<8x8xf32>, vector<8x8xf32> -> vector<8x8xf32>
    %cst_210 = arith.constant 0.353553385 : f32
    %556 = vector.broadcast %cst_210 : f32 to vector<8x8xf32>
    %557 = arith.mulf %555, %556 : vector<8x8xf32>
    %558 = vector.extract_strided_slice %28 {offsets = [1, 0, 0], sizes = [1, 8, 8], strides = [1, 1, 1]} : vector<2x8x8xf32> to vector<1x8x8xf32>
    %559 = vector.shape_cast %558 : vector<1x8x8xf32> to vector<8x8xf32>
    %560 = arith.addf %557, %559 : vector<8x8xf32>
    %cst_211 = arith.constant dense<0xFF800000> : vector<8xf32>
    %561 = vector.multi_reduction <maximumf>, %560, %cst_211 [1] : vector<8x8xf32> to vector<8xf32>
    %562 = vector.shape_cast %561 : vector<8xf32> to vector<8x1xf32>
    %563 = vector.broadcast %562 : vector<8x1xf32> to vector<8x8xf32>
    %564 = arith.subf %560, %563 : vector<8x8xf32>
    %565 = math.exp %564 : vector<8x8xf32>
    %cst_212 = arith.constant dense<0.000000e+00> : vector<8xf32>
    %566 = vector.multi_reduction <add>, %565, %cst_212 [1] : vector<8x8xf32> to vector<8xf32>
    %567 = vector.shape_cast %566 : vector<8xf32> to vector<8x1xf32>
    %568 = vector.broadcast %567 : vector<8x1xf32> to vector<8x8xf32>
    %569 = arith.divf %565, %568 : vector<8x8xf32>
    %cst_213 = arith.constant dense<0.000000e+00> : vector<8x8xf32>
    %570 = tpu.matmul %569, %554, %cst_213 {dimension_numbers = #tpu.dot_dimension_numbers<[1], [0], [0], [1], [0, 0, 1, 1], [], []>} : vector<8x8xf32>, vector<8x8xf32>, vector<8x8xf32> -> vector<8x8xf32>
    %571 = vector.extract_strided_slice %549 {offsets = [0, 8], sizes = [8, 8], strides = [1, 1]} : vector<8x32xf32> to vector<8x8xf32>
    %572 = vector.extract_strided_slice %550 {offsets = [0, 8], sizes = [8, 8], strides = [1, 1]} : vector<8x32xf32> to vector<8x8xf32>
    %573 = vector.extract_strided_slice %551 {offsets = [0, 8], sizes = [8, 8], strides = [1, 1]} : vector<8x32xf32> to vector<8x8xf32>
    %cst_214 = arith.constant dense<0.000000e+00> : vector<8x8xf32>
    %574 = tpu.matmul %571, %572, %cst_214 {dimension_numbers = #tpu.dot_dimension_numbers<[1], [1], [0], [0], [0, 0, 1, 0], [], []>} : vector<8x8xf32>, vector<8x8xf32>, vector<8x8xf32> -> vector<8x8xf32>
    %cst_215 = arith.constant 0.353553385 : f32
    %575 = vector.broadcast %cst_215 : f32 to vector<8x8xf32>
    %576 = arith.mulf %574, %575 : vector<8x8xf32>
    %577 = vector.extract_strided_slice %28 {offsets = [1, 0, 0], sizes = [1, 8, 8], strides = [1, 1, 1]} : vector<2x8x8xf32> to vector<1x8x8xf32>
    %578 = vector.shape_cast %577 : vector<1x8x8xf32> to vector<8x8xf32>
    %579 = arith.addf %576, %578 : vector<8x8xf32>
    %cst_216 = arith.constant dense<0xFF800000> : vector<8xf32>
    %580 = vector.multi_reduction <maximumf>, %579, %cst_216 [1] : vector<8x8xf32> to vector<8xf32>
    %581 = vector.shape_cast %580 : vector<8xf32> to vector<8x1xf32>
    %582 = vector.broadcast %581 : vector<8x1xf32> to vector<8x8xf32>
    %583 = arith.subf %579, %582 : vector<8x8xf32>
    %584 = math.exp %583 : vector<8x8xf32>
    %cst_217 = arith.constant dense<0.000000e+00> : vector<8xf32>
    %585 = vector.multi_reduction <add>, %584, %cst_217 [1] : vector<8x8xf32> to vector<8xf32>
    %586 = vector.shape_cast %585 : vector<8xf32> to vector<8x1xf32>
    %587 = vector.broadcast %586 : vector<8x1xf32> to vector<8x8xf32>
    %588 = arith.divf %584, %587 : vector<8x8xf32>
    %cst_218 = arith.constant dense<0.000000e+00> : vector<8x8xf32>
    %589 = tpu.matmul %588, %573, %cst_218 {dimension_numbers = #tpu.dot_dimension_numbers<[1], [0], [0], [1], [0, 0, 1, 1], [], []>} : vector<8x8xf32>, vector<8x8xf32>, vector<8x8xf32> -> vector<8x8xf32>
    %590 = vector.extract_strided_slice %549 {offsets = [0, 16], sizes = [8, 8], strides = [1, 1]} : vector<8x32xf32> to vector<8x8xf32>
    %591 = vector.extract_strided_slice %550 {offsets = [0, 16], sizes = [8, 8], strides = [1, 1]} : vector<8x32xf32> to vector<8x8xf32>
    %592 = vector.extract_strided_slice %551 {offsets = [0, 16], sizes = [8, 8], strides = [1, 1]} : vector<8x32xf32> to vector<8x8xf32>
    %cst_219 = arith.constant dense<0.000000e+00> : vector<8x8xf32>
    %593 = tpu.matmul %590, %591, %cst_219 {dimension_numbers = #tpu.dot_dimension_numbers<[1], [1], [0], [0], [0, 0, 1, 0], [], []>} : vector<8x8xf32>, vector<8x8xf32>, vector<8x8xf32> -> vector<8x8xf32>
    %cst_220 = arith.constant 0.353553385 : f32
    %594 = vector.broadcast %cst_220 : f32 to vector<8x8xf32>
    %595 = arith.mulf %593, %594 : vector<8x8xf32>
    %596 = vector.extract_strided_slice %28 {offsets = [1, 0, 0], sizes = [1, 8, 8], strides = [1, 1, 1]} : vector<2x8x8xf32> to vector<1x8x8xf32>
    %597 = vector.shape_cast %596 : vector<1x8x8xf32> to vector<8x8xf32>
    %598 = arith.addf %595, %597 : vector<8x8xf32>
    %cst_221 = arith.constant dense<0xFF800000> : vector<8xf32>
    %599 = vector.multi_reduction <maximumf>, %598, %cst_221 [1] : vector<8x8xf32> to vector<8xf32>
    %600 = vector.shape_cast %599 : vector<8xf32> to vector<8x1xf32>
    %601 = vector.broadcast %600 : vector<8x1xf32> to vector<8x8xf32>
    %602 = arith.subf %598, %601 : vector<8x8xf32>
    %603 = math.exp %602 : vector<8x8xf32>
    %cst_222 = arith.constant dense<0.000000e+00> : vector<8xf32>
    %604 = vector.multi_reduction <add>, %603, %cst_222 [1] : vector<8x8xf32> to vector<8xf32>
    %605 = vector.shape_cast %604 : vector<8xf32> to vector<8x1xf32>
    %606 = vector.broadcast %605 : vector<8x1xf32> to vector<8x8xf32>
    %607 = arith.divf %603, %606 : vector<8x8xf32>
    %cst_223 = arith.constant dense<0.000000e+00> : vector<8x8xf32>
    %608 = tpu.matmul %607, %592, %cst_223 {dimension_numbers = #tpu.dot_dimension_numbers<[1], [0], [0], [1], [0, 0, 1, 1], [], []>} : vector<8x8xf32>, vector<8x8xf32>, vector<8x8xf32> -> vector<8x8xf32>
    %609 = vector.extract_strided_slice %549 {offsets = [0, 24], sizes = [8, 8], strides = [1, 1]} : vector<8x32xf32> to vector<8x8xf32>
    %610 = vector.extract_strided_slice %550 {offsets = [0, 24], sizes = [8, 8], strides = [1, 1]} : vector<8x32xf32> to vector<8x8xf32>
    %611 = vector.extract_strided_slice %551 {offsets = [0, 24], sizes = [8, 8], strides = [1, 1]} : vector<8x32xf32> to vector<8x8xf32>
    %cst_224 = arith.constant dense<0.000000e+00> : vector<8x8xf32>
    %612 = tpu.matmul %609, %610, %cst_224 {dimension_numbers = #tpu.dot_dimension_numbers<[1], [1], [0], [0], [0, 0, 1, 0], [], []>} : vector<8x8xf32>, vector<8x8xf32>, vector<8x8xf32> -> vector<8x8xf32>
    %cst_225 = arith.constant 0.353553385 : f32
    %613 = vector.broadcast %cst_225 : f32 to vector<8x8xf32>
    %614 = arith.mulf %612, %613 : vector<8x8xf32>
    %615 = vector.extract_strided_slice %28 {offsets = [1, 0, 0], sizes = [1, 8, 8], strides = [1, 1, 1]} : vector<2x8x8xf32> to vector<1x8x8xf32>
    %616 = vector.shape_cast %615 : vector<1x8x8xf32> to vector<8x8xf32>
    %617 = arith.addf %614, %616 : vector<8x8xf32>
    %cst_226 = arith.constant dense<0xFF800000> : vector<8xf32>
    %618 = vector.multi_reduction <maximumf>, %617, %cst_226 [1] : vector<8x8xf32> to vector<8xf32>
    %619 = vector.shape_cast %618 : vector<8xf32> to vector<8x1xf32>
    %620 = vector.broadcast %619 : vector<8x1xf32> to vector<8x8xf32>
    %621 = arith.subf %617, %620 : vector<8x8xf32>
    %622 = math.exp %621 : vector<8x8xf32>
    %cst_227 = arith.constant dense<0.000000e+00> : vector<8xf32>
    %623 = vector.multi_reduction <add>, %622, %cst_227 [1] : vector<8x8xf32> to vector<8xf32>
    %624 = vector.shape_cast %623 : vector<8xf32> to vector<8x1xf32>
    %625 = vector.broadcast %624 : vector<8x1xf32> to vector<8x8xf32>
    %626 = arith.divf %622, %625 : vector<8x8xf32>
    %cst_228 = arith.constant dense<0.000000e+00> : vector<8x8xf32>
    %627 = tpu.matmul %626, %611, %cst_228 {dimension_numbers = #tpu.dot_dimension_numbers<[1], [0], [0], [1], [0, 0, 1, 1], [], []>} : vector<8x8xf32>, vector<8x8xf32>, vector<8x8xf32> -> vector<8x8xf32>
    %628 = tpu.concatenate %570, %589, %608, %627 in 1 : vector<8x8xf32>, vector<8x8xf32>, vector<8x8xf32>, vector<8x8xf32> -> vector<8x32xf32>
    %629 = tpu.concatenate %548, %628 in 0 : vector<8x32xf32>, vector<8x32xf32> -> vector<16x32xf32>
    %c1_229 = arith.constant 1 : index
    %c0_230 = arith.constant 0 : index
    %c0_231 = arith.constant 0 : index
    %630 = vector.load %arg7[%c1_229, %c0_230, %c0_231] : memref<2x32x32xf32, #tpu.memory_space<vmem>>, vector<1x32x32xf32>
    %631 = vector.shape_cast %630 : vector<1x32x32xf32> to vector<32x32xf32>
    %cst_232 = arith.constant dense<0.000000e+00> : vector<16x32xf32>
    %632 = tpu.matmul %629, %631, %cst_232 {dimension_numbers = #tpu.dot_dimension_numbers<[1], [0], [0], [1], [0, 0, 1, 1], [], []>} : vector<16x32xf32>, vector<32x32xf32>, vector<16x32xf32> -> vector<16x32xf32>
    %c1_233 = arith.constant 1 : index
    %c0_234 = arith.constant 0 : index
    %c0_235 = arith.constant 0 : index
    %633 = vector.load %arg8[%c1_233, %c0_234, %c0_235] : memref<2x1x32xf32, #tpu.memory_space<vmem>>, vector<1x1x32xf32>
    %634 = vector.shape_cast %633 : vector<1x1x32xf32> to vector<1x32xf32>
    %635 = vector.broadcast %634 : vector<1x32xf32> to vector<16x32xf32>
    %636 = arith.addf %632, %635 : vector<16x32xf32>
    %637 = arith.addf %458, %636 : vector<16x32xf32>
    %c1_236 = arith.constant 1 : index
    %c0_237 = arith.constant 0 : index
    %c0_238 = arith.constant 0 : index
    %638 = vector.load %arg15[%c1_236, %c0_237, %c0_238] : memref<2x1x32xf32, #tpu.memory_space<vmem>>, vector<1x1x32xf32>
    %639 = vector.shape_cast %638 : vector<1x1x32xf32> to vector<1x32xf32>
    %c1_239 = arith.constant 1 : index
    %c0_240 = arith.constant 0 : index
    %c0_241 = arith.constant 0 : index
    %640 = vector.load %arg16[%c1_239, %c0_240, %c0_241] : memref<2x1x32xf32, #tpu.memory_space<vmem>>, vector<1x1x32xf32>
    %641 = vector.shape_cast %640 : vector<1x1x32xf32> to vector<1x32xf32>
    %cst_242 = arith.constant dense<0.000000e+00> : vector<16xf32>
    %642 = vector.multi_reduction <add>, %637, %cst_242 [1] : vector<16x32xf32> to vector<16xf32>
    %643 = vector.shape_cast %642 : vector<16xf32> to vector<16x1xf32>
    %cst_243 = arith.constant 3.200000e+01 : f32
    %644 = vector.broadcast %cst_243 : f32 to vector<16x1xf32>
    %645 = arith.divf %643, %644 : vector<16x1xf32>
    %646 = vector.broadcast %645 : vector<16x1xf32> to vector<16x32xf32>
    %647 = arith.subf %637, %646 : vector<16x32xf32>
    %648 = arith.mulf %647, %647 : vector<16x32xf32>
    %cst_244 = arith.constant dense<0.000000e+00> : vector<16xf32>
    %649 = vector.multi_reduction <add>, %648, %cst_244 [1] : vector<16x32xf32> to vector<16xf32>
    %650 = vector.shape_cast %649 : vector<16xf32> to vector<16x1xf32>
    %cst_245 = arith.constant 3.200000e+01 : f32
    %651 = vector.broadcast %cst_245 : f32 to vector<16x1xf32>
    %652 = arith.divf %650, %651 : vector<16x1xf32>
    %cst_246 = arith.constant 9.99999974E-6 : f32
    %653 = vector.broadcast %cst_246 : f32 to vector<16x1xf32>
    %654 = arith.addf %652, %653 : vector<16x1xf32>
    %655 = math.rsqrt %654 : vector<16x1xf32>
    %656 = vector.broadcast %655 : vector<16x1xf32> to vector<16x32xf32>
    %657 = arith.mulf %647, %656 : vector<16x32xf32>
    %658 = vector.broadcast %639 : vector<1x32xf32> to vector<16x32xf32>
    %659 = arith.mulf %657, %658 : vector<16x32xf32>
    %660 = vector.broadcast %641 : vector<1x32xf32> to vector<16x32xf32>
    %661 = arith.addf %659, %660 : vector<16x32xf32>
    %c1_247 = arith.constant 1 : index
    %c0_248 = arith.constant 0 : index
    %c0_249 = arith.constant 0 : index
    %662 = vector.load %arg9[%c1_247, %c0_248, %c0_249] : memref<2x32x32xf32, #tpu.memory_space<vmem>>, vector<1x32x32xf32>
    %663 = vector.shape_cast %662 : vector<1x32x32xf32> to vector<32x32xf32>
    %cst_250 = arith.constant dense<0.000000e+00> : vector<16x32xf32>
    %664 = tpu.matmul %661, %663, %cst_250 {dimension_numbers = #tpu.dot_dimension_numbers<[1], [0], [0], [1], [0, 0, 1, 1], [], []>} : vector<16x32xf32>, vector<32x32xf32>, vector<16x32xf32> -> vector<16x32xf32>
    %c1_251 = arith.constant 1 : index
    %c0_252 = arith.constant 0 : index
    %c0_253 = arith.constant 0 : index
    %665 = vector.load %arg10[%c1_251, %c0_252, %c0_253] : memref<2x1x32xf32, #tpu.memory_space<vmem>>, vector<1x1x32xf32>
    %666 = vector.shape_cast %665 : vector<1x1x32xf32> to vector<1x32xf32>
    %667 = vector.broadcast %666 : vector<1x32xf32> to vector<16x32xf32>
    %668 = arith.addf %664, %667 : vector<16x32xf32>
    %c1_254 = arith.constant 1 : index
    %c0_255 = arith.constant 0 : index
    %c0_256 = arith.constant 0 : index
    %669 = vector.load %arg11[%c1_254, %c0_255, %c0_256] : memref<2x32x64xf32, #tpu.memory_space<vmem>>, vector<1x32x64xf32>
    %670 = vector.shape_cast %669 : vector<1x32x64xf32> to vector<32x64xf32>
    %cst_257 = arith.constant dense<0.000000e+00> : vector<4x64xf32>
    %671 = tpu.matmul %27, %670, %cst_257 {dimension_numbers = #tpu.dot_dimension_numbers<[1], [0], [0], [1], [0, 0, 1, 1], [], []>} : vector<4x32xf32>, vector<32x64xf32>, vector<4x64xf32> -> vector<4x64xf32>
    %c1_258 = arith.constant 1 : index
    %c0_259 = arith.constant 0 : index
    %c0_260 = arith.constant 0 : index
    %672 = vector.load %arg12[%c1_258, %c0_259, %c0_260] : memref<2x1x64xf32, #tpu.memory_space<vmem>>, vector<1x1x64xf32>
    %673 = vector.shape_cast %672 : vector<1x1x64xf32> to vector<1x64xf32>
    %674 = vector.broadcast %673 : vector<1x64xf32> to vector<4x64xf32>
    %675 = arith.addf %671, %674 : vector<4x64xf32>
    %676 = vector.extract_strided_slice %675 {offsets = [0, 0], sizes = [4, 32], strides = [1, 1]} : vector<4x64xf32> to vector<4x32xf32>
    %677 = vector.extract_strided_slice %675 {offsets = [0, 32], sizes = [4, 32], strides = [1, 1]} : vector<4x64xf32> to vector<4x32xf32>
    %678 = vector.extract_strided_slice %668 {offsets = [0, 0], sizes = [8, 32], strides = [1, 1]} : vector<16x32xf32> to vector<8x32xf32>
    %679 = vector.extract_strided_slice %676 {offsets = [0, 0], sizes = [2, 32], strides = [1, 1]} : vector<4x32xf32> to vector<2x32xf32>
    %680 = vector.extract_strided_slice %677 {offsets = [0, 0], sizes = [2, 32], strides = [1, 1]} : vector<4x32xf32> to vector<2x32xf32>
    %681 = vector.extract_strided_slice %678 {offsets = [0, 0], sizes = [8, 8], strides = [1, 1]} : vector<8x32xf32> to vector<8x8xf32>
    %682 = vector.extract_strided_slice %679 {offsets = [0, 0], sizes = [2, 8], strides = [1, 1]} : vector<2x32xf32> to vector<2x8xf32>
    %683 = vector.extract_strided_slice %680 {offsets = [0, 0], sizes = [2, 8], strides = [1, 1]} : vector<2x32xf32> to vector<2x8xf32>
    %cst_261 = arith.constant dense<0.000000e+00> : vector<8x2xf32>
    %684 = tpu.matmul %681, %682, %cst_261 {dimension_numbers = #tpu.dot_dimension_numbers<[1], [1], [0], [0], [0, 0, 1, 0], [], []>} : vector<8x8xf32>, vector<2x8xf32>, vector<8x2xf32> -> vector<8x2xf32>
    %cst_262 = arith.constant 0.353553385 : f32
    %685 = vector.broadcast %cst_262 : f32 to vector<8x2xf32>
    %686 = arith.mulf %684, %685 : vector<8x2xf32>
    %cst_263 = arith.constant dense<0xFF800000> : vector<8xf32>
    %687 = vector.multi_reduction <maximumf>, %686, %cst_263 [1] : vector<8x2xf32> to vector<8xf32>
    %688 = vector.shape_cast %687 : vector<8xf32> to vector<8x1xf32>
    %689 = vector.broadcast %688 : vector<8x1xf32> to vector<8x2xf32>
    %690 = arith.subf %686, %689 : vector<8x2xf32>
    %691 = math.exp %690 : vector<8x2xf32>
    %cst_264 = arith.constant dense<0.000000e+00> : vector<8xf32>
    %692 = vector.multi_reduction <add>, %691, %cst_264 [1] : vector<8x2xf32> to vector<8xf32>
    %693 = vector.shape_cast %692 : vector<8xf32> to vector<8x1xf32>
    %694 = vector.broadcast %693 : vector<8x1xf32> to vector<8x2xf32>
    %695 = arith.divf %691, %694 : vector<8x2xf32>
    %cst_265 = arith.constant dense<0.000000e+00> : vector<8x8xf32>
    %696 = tpu.matmul %695, %683, %cst_265 {dimension_numbers = #tpu.dot_dimension_numbers<[1], [0], [0], [1], [0, 0, 1, 1], [], []>} : vector<8x2xf32>, vector<2x8xf32>, vector<8x8xf32> -> vector<8x8xf32>
    %697 = vector.extract_strided_slice %678 {offsets = [0, 8], sizes = [8, 8], strides = [1, 1]} : vector<8x32xf32> to vector<8x8xf32>
    %698 = vector.extract_strided_slice %679 {offsets = [0, 8], sizes = [2, 8], strides = [1, 1]} : vector<2x32xf32> to vector<2x8xf32>
    %699 = vector.extract_strided_slice %680 {offsets = [0, 8], sizes = [2, 8], strides = [1, 1]} : vector<2x32xf32> to vector<2x8xf32>
    %cst_266 = arith.constant dense<0.000000e+00> : vector<8x2xf32>
    %700 = tpu.matmul %697, %698, %cst_266 {dimension_numbers = #tpu.dot_dimension_numbers<[1], [1], [0], [0], [0, 0, 1, 0], [], []>} : vector<8x8xf32>, vector<2x8xf32>, vector<8x2xf32> -> vector<8x2xf32>
    %cst_267 = arith.constant 0.353553385 : f32
    %701 = vector.broadcast %cst_267 : f32 to vector<8x2xf32>
    %702 = arith.mulf %700, %701 : vector<8x2xf32>
    %cst_268 = arith.constant dense<0xFF800000> : vector<8xf32>
    %703 = vector.multi_reduction <maximumf>, %702, %cst_268 [1] : vector<8x2xf32> to vector<8xf32>
    %704 = vector.shape_cast %703 : vector<8xf32> to vector<8x1xf32>
    %705 = vector.broadcast %704 : vector<8x1xf32> to vector<8x2xf32>
    %706 = arith.subf %702, %705 : vector<8x2xf32>
    %707 = math.exp %706 : vector<8x2xf32>
    %cst_269 = arith.constant dense<0.000000e+00> : vector<8xf32>
    %708 = vector.multi_reduction <add>, %707, %cst_269 [1] : vector<8x2xf32> to vector<8xf32>
    %709 = vector.shape_cast %708 : vector<8xf32> to vector<8x1xf32>
    %710 = vector.broadcast %709 : vector<8x1xf32> to vector<8x2xf32>
    %711 = arith.divf %707, %710 : vector<8x2xf32>
    %cst_270 = arith.constant dense<0.000000e+00> : vector<8x8xf32>
    %712 = tpu.matmul %711, %699, %cst_270 {dimension_numbers = #tpu.dot_dimension_numbers<[1], [0], [0], [1], [0, 0, 1, 1], [], []>} : vector<8x2xf32>, vector<2x8xf32>, vector<8x8xf32> -> vector<8x8xf32>
    %713 = vector.extract_strided_slice %678 {offsets = [0, 16], sizes = [8, 8], strides = [1, 1]} : vector<8x32xf32> to vector<8x8xf32>
    %714 = vector.extract_strided_slice %679 {offsets = [0, 16], sizes = [2, 8], strides = [1, 1]} : vector<2x32xf32> to vector<2x8xf32>
    %715 = vector.extract_strided_slice %680 {offsets = [0, 16], sizes = [2, 8], strides = [1, 1]} : vector<2x32xf32> to vector<2x8xf32>
    %cst_271 = arith.constant dense<0.000000e+00> : vector<8x2xf32>
    %716 = tpu.matmul %713, %714, %cst_271 {dimension_numbers = #tpu.dot_dimension_numbers<[1], [1], [0], [0], [0, 0, 1, 0], [], []>} : vector<8x8xf32>, vector<2x8xf32>, vector<8x2xf32> -> vector<8x2xf32>
    %cst_272 = arith.constant 0.353553385 : f32
    %717 = vector.broadcast %cst_272 : f32 to vector<8x2xf32>
    %718 = arith.mulf %716, %717 : vector<8x2xf32>
    %cst_273 = arith.constant dense<0xFF800000> : vector<8xf32>
    %719 = vector.multi_reduction <maximumf>, %718, %cst_273 [1] : vector<8x2xf32> to vector<8xf32>
    %720 = vector.shape_cast %719 : vector<8xf32> to vector<8x1xf32>
    %721 = vector.broadcast %720 : vector<8x1xf32> to vector<8x2xf32>
    %722 = arith.subf %718, %721 : vector<8x2xf32>
    %723 = math.exp %722 : vector<8x2xf32>
    %cst_274 = arith.constant dense<0.000000e+00> : vector<8xf32>
    %724 = vector.multi_reduction <add>, %723, %cst_274 [1] : vector<8x2xf32> to vector<8xf32>
    %725 = vector.shape_cast %724 : vector<8xf32> to vector<8x1xf32>
    %726 = vector.broadcast %725 : vector<8x1xf32> to vector<8x2xf32>
    %727 = arith.divf %723, %726 : vector<8x2xf32>
    %cst_275 = arith.constant dense<0.000000e+00> : vector<8x8xf32>
    %728 = tpu.matmul %727, %715, %cst_275 {dimension_numbers = #tpu.dot_dimension_numbers<[1], [0], [0], [1], [0, 0, 1, 1], [], []>} : vector<8x2xf32>, vector<2x8xf32>, vector<8x8xf32> -> vector<8x8xf32>
    %729 = vector.extract_strided_slice %678 {offsets = [0, 24], sizes = [8, 8], strides = [1, 1]} : vector<8x32xf32> to vector<8x8xf32>
    %730 = vector.extract_strided_slice %679 {offsets = [0, 24], sizes = [2, 8], strides = [1, 1]} : vector<2x32xf32> to vector<2x8xf32>
    %731 = vector.extract_strided_slice %680 {offsets = [0, 24], sizes = [2, 8], strides = [1, 1]} : vector<2x32xf32> to vector<2x8xf32>
    %cst_276 = arith.constant dense<0.000000e+00> : vector<8x2xf32>
    %732 = tpu.matmul %729, %730, %cst_276 {dimension_numbers = #tpu.dot_dimension_numbers<[1], [1], [0], [0], [0, 0, 1, 0], [], []>} : vector<8x8xf32>, vector<2x8xf32>, vector<8x2xf32> -> vector<8x2xf32>
    %cst_277 = arith.constant 0.353553385 : f32
    %733 = vector.broadcast %cst_277 : f32 to vector<8x2xf32>
    %734 = arith.mulf %732, %733 : vector<8x2xf32>
    %cst_278 = arith.constant dense<0xFF800000> : vector<8xf32>
    %735 = vector.multi_reduction <maximumf>, %734, %cst_278 [1] : vector<8x2xf32> to vector<8xf32>
    %736 = vector.shape_cast %735 : vector<8xf32> to vector<8x1xf32>
    %737 = vector.broadcast %736 : vector<8x1xf32> to vector<8x2xf32>
    %738 = arith.subf %734, %737 : vector<8x2xf32>
    %739 = math.exp %738 : vector<8x2xf32>
    %cst_279 = arith.constant dense<0.000000e+00> : vector<8xf32>
    %740 = vector.multi_reduction <add>, %739, %cst_279 [1] : vector<8x2xf32> to vector<8xf32>
    %741 = vector.shape_cast %740 : vector<8xf32> to vector<8x1xf32>
    %742 = vector.broadcast %741 : vector<8x1xf32> to vector<8x2xf32>
    %743 = arith.divf %739, %742 : vector<8x2xf32>
    %cst_280 = arith.constant dense<0.000000e+00> : vector<8x8xf32>
    %744 = tpu.matmul %743, %731, %cst_280 {dimension_numbers = #tpu.dot_dimension_numbers<[1], [0], [0], [1], [0, 0, 1, 1], [], []>} : vector<8x2xf32>, vector<2x8xf32>, vector<8x8xf32> -> vector<8x8xf32>
    %745 = tpu.concatenate %696, %712, %728, %744 in 1 : vector<8x8xf32>, vector<8x8xf32>, vector<8x8xf32>, vector<8x8xf32> -> vector<8x32xf32>
    %746 = vector.extract_strided_slice %668 {offsets = [8, 0], sizes = [8, 32], strides = [1, 1]} : vector<16x32xf32> to vector<8x32xf32>
    %747 = vector.extract_strided_slice %676 {offsets = [2, 0], sizes = [2, 32], strides = [1, 1]} : vector<4x32xf32> to vector<2x32xf32>
    %748 = vector.extract_strided_slice %677 {offsets = [2, 0], sizes = [2, 32], strides = [1, 1]} : vector<4x32xf32> to vector<2x32xf32>
    %749 = vector.extract_strided_slice %746 {offsets = [0, 0], sizes = [8, 8], strides = [1, 1]} : vector<8x32xf32> to vector<8x8xf32>
    %750 = vector.extract_strided_slice %747 {offsets = [0, 0], sizes = [2, 8], strides = [1, 1]} : vector<2x32xf32> to vector<2x8xf32>
    %751 = vector.extract_strided_slice %748 {offsets = [0, 0], sizes = [2, 8], strides = [1, 1]} : vector<2x32xf32> to vector<2x8xf32>
    %cst_281 = arith.constant dense<0.000000e+00> : vector<8x2xf32>
    %752 = tpu.matmul %749, %750, %cst_281 {dimension_numbers = #tpu.dot_dimension_numbers<[1], [1], [0], [0], [0, 0, 1, 0], [], []>} : vector<8x8xf32>, vector<2x8xf32>, vector<8x2xf32> -> vector<8x2xf32>
    %cst_282 = arith.constant 0.353553385 : f32
    %753 = vector.broadcast %cst_282 : f32 to vector<8x2xf32>
    %754 = arith.mulf %752, %753 : vector<8x2xf32>
    %cst_283 = arith.constant dense<0xFF800000> : vector<8xf32>
    %755 = vector.multi_reduction <maximumf>, %754, %cst_283 [1] : vector<8x2xf32> to vector<8xf32>
    %756 = vector.shape_cast %755 : vector<8xf32> to vector<8x1xf32>
    %757 = vector.broadcast %756 : vector<8x1xf32> to vector<8x2xf32>
    %758 = arith.subf %754, %757 : vector<8x2xf32>
    %759 = math.exp %758 : vector<8x2xf32>
    %cst_284 = arith.constant dense<0.000000e+00> : vector<8xf32>
    %760 = vector.multi_reduction <add>, %759, %cst_284 [1] : vector<8x2xf32> to vector<8xf32>
    %761 = vector.shape_cast %760 : vector<8xf32> to vector<8x1xf32>
    %762 = vector.broadcast %761 : vector<8x1xf32> to vector<8x2xf32>
    %763 = arith.divf %759, %762 : vector<8x2xf32>
    %cst_285 = arith.constant dense<0.000000e+00> : vector<8x8xf32>
    %764 = tpu.matmul %763, %751, %cst_285 {dimension_numbers = #tpu.dot_dimension_numbers<[1], [0], [0], [1], [0, 0, 1, 1], [], []>} : vector<8x2xf32>, vector<2x8xf32>, vector<8x8xf32> -> vector<8x8xf32>
    %765 = vector.extract_strided_slice %746 {offsets = [0, 8], sizes = [8, 8], strides = [1, 1]} : vector<8x32xf32> to vector<8x8xf32>
    %766 = vector.extract_strided_slice %747 {offsets = [0, 8], sizes = [2, 8], strides = [1, 1]} : vector<2x32xf32> to vector<2x8xf32>
    %767 = vector.extract_strided_slice %748 {offsets = [0, 8], sizes = [2, 8], strides = [1, 1]} : vector<2x32xf32> to vector<2x8xf32>
    %cst_286 = arith.constant dense<0.000000e+00> : vector<8x2xf32>
    %768 = tpu.matmul %765, %766, %cst_286 {dimension_numbers = #tpu.dot_dimension_numbers<[1], [1], [0], [0], [0, 0, 1, 0], [], []>} : vector<8x8xf32>, vector<2x8xf32>, vector<8x2xf32> -> vector<8x2xf32>
    %cst_287 = arith.constant 0.353553385 : f32
    %769 = vector.broadcast %cst_287 : f32 to vector<8x2xf32>
    %770 = arith.mulf %768, %769 : vector<8x2xf32>
    %cst_288 = arith.constant dense<0xFF800000> : vector<8xf32>
    %771 = vector.multi_reduction <maximumf>, %770, %cst_288 [1] : vector<8x2xf32> to vector<8xf32>
    %772 = vector.shape_cast %771 : vector<8xf32> to vector<8x1xf32>
    %773 = vector.broadcast %772 : vector<8x1xf32> to vector<8x2xf32>
    %774 = arith.subf %770, %773 : vector<8x2xf32>
    %775 = math.exp %774 : vector<8x2xf32>
    %cst_289 = arith.constant dense<0.000000e+00> : vector<8xf32>
    %776 = vector.multi_reduction <add>, %775, %cst_289 [1] : vector<8x2xf32> to vector<8xf32>
    %777 = vector.shape_cast %776 : vector<8xf32> to vector<8x1xf32>
    %778 = vector.broadcast %777 : vector<8x1xf32> to vector<8x2xf32>
    %779 = arith.divf %775, %778 : vector<8x2xf32>
    %cst_290 = arith.constant dense<0.000000e+00> : vector<8x8xf32>
    %780 = tpu.matmul %779, %767, %cst_290 {dimension_numbers = #tpu.dot_dimension_numbers<[1], [0], [0], [1], [0, 0, 1, 1], [], []>} : vector<8x2xf32>, vector<2x8xf32>, vector<8x8xf32> -> vector<8x8xf32>
    %781 = vector.extract_strided_slice %746 {offsets = [0, 16], sizes = [8, 8], strides = [1, 1]} : vector<8x32xf32> to vector<8x8xf32>
    %782 = vector.extract_strided_slice %747 {offsets = [0, 16], sizes = [2, 8], strides = [1, 1]} : vector<2x32xf32> to vector<2x8xf32>
    %783 = vector.extract_strided_slice %748 {offsets = [0, 16], sizes = [2, 8], strides = [1, 1]} : vector<2x32xf32> to vector<2x8xf32>
    %cst_291 = arith.constant dense<0.000000e+00> : vector<8x2xf32>
    %784 = tpu.matmul %781, %782, %cst_291 {dimension_numbers = #tpu.dot_dimension_numbers<[1], [1], [0], [0], [0, 0, 1, 0], [], []>} : vector<8x8xf32>, vector<2x8xf32>, vector<8x2xf32> -> vector<8x2xf32>
    %cst_292 = arith.constant 0.353553385 : f32
    %785 = vector.broadcast %cst_292 : f32 to vector<8x2xf32>
    %786 = arith.mulf %784, %785 : vector<8x2xf32>
    %cst_293 = arith.constant dense<0xFF800000> : vector<8xf32>
    %787 = vector.multi_reduction <maximumf>, %786, %cst_293 [1] : vector<8x2xf32> to vector<8xf32>
    %788 = vector.shape_cast %787 : vector<8xf32> to vector<8x1xf32>
    %789 = vector.broadcast %788 : vector<8x1xf32> to vector<8x2xf32>
    %790 = arith.subf %786, %789 : vector<8x2xf32>
    %791 = math.exp %790 : vector<8x2xf32>
    %cst_294 = arith.constant dense<0.000000e+00> : vector<8xf32>
    %792 = vector.multi_reduction <add>, %791, %cst_294 [1] : vector<8x2xf32> to vector<8xf32>
    %793 = vector.shape_cast %792 : vector<8xf32> to vector<8x1xf32>
    %794 = vector.broadcast %793 : vector<8x1xf32> to vector<8x2xf32>
    %795 = arith.divf %791, %794 : vector<8x2xf32>
    %cst_295 = arith.constant dense<0.000000e+00> : vector<8x8xf32>
    %796 = tpu.matmul %795, %783, %cst_295 {dimension_numbers = #tpu.dot_dimension_numbers<[1], [0], [0], [1], [0, 0, 1, 1], [], []>} : vector<8x2xf32>, vector<2x8xf32>, vector<8x8xf32> -> vector<8x8xf32>
    %797 = vector.extract_strided_slice %746 {offsets = [0, 24], sizes = [8, 8], strides = [1, 1]} : vector<8x32xf32> to vector<8x8xf32>
    %798 = vector.extract_strided_slice %747 {offsets = [0, 24], sizes = [2, 8], strides = [1, 1]} : vector<2x32xf32> to vector<2x8xf32>
    %799 = vector.extract_strided_slice %748 {offsets = [0, 24], sizes = [2, 8], strides = [1, 1]} : vector<2x32xf32> to vector<2x8xf32>
    %cst_296 = arith.constant dense<0.000000e+00> : vector<8x2xf32>
    %800 = tpu.matmul %797, %798, %cst_296 {dimension_numbers = #tpu.dot_dimension_numbers<[1], [1], [0], [0], [0, 0, 1, 0], [], []>} : vector<8x8xf32>, vector<2x8xf32>, vector<8x2xf32> -> vector<8x2xf32>
    %cst_297 = arith.constant 0.353553385 : f32
    %801 = vector.broadcast %cst_297 : f32 to vector<8x2xf32>
    %802 = arith.mulf %800, %801 : vector<8x2xf32>
    %cst_298 = arith.constant dense<0xFF800000> : vector<8xf32>
    %803 = vector.multi_reduction <maximumf>, %802, %cst_298 [1] : vector<8x2xf32> to vector<8xf32>
    %804 = vector.shape_cast %803 : vector<8xf32> to vector<8x1xf32>
    %805 = vector.broadcast %804 : vector<8x1xf32> to vector<8x2xf32>
    %806 = arith.subf %802, %805 : vector<8x2xf32>
    %807 = math.exp %806 : vector<8x2xf32>
    %cst_299 = arith.constant dense<0.000000e+00> : vector<8xf32>
    %808 = vector.multi_reduction <add>, %807, %cst_299 [1] : vector<8x2xf32> to vector<8xf32>
    %809 = vector.shape_cast %808 : vector<8xf32> to vector<8x1xf32>
    %810 = vector.broadcast %809 : vector<8x1xf32> to vector<8x2xf32>
    %811 = arith.divf %807, %810 : vector<8x2xf32>
    %cst_300 = arith.constant dense<0.000000e+00> : vector<8x8xf32>
    %812 = tpu.matmul %811, %799, %cst_300 {dimension_numbers = #tpu.dot_dimension_numbers<[1], [0], [0], [1], [0, 0, 1, 1], [], []>} : vector<8x2xf32>, vector<2x8xf32>, vector<8x8xf32> -> vector<8x8xf32>
    %813 = tpu.concatenate %764, %780, %796, %812 in 1 : vector<8x8xf32>, vector<8x8xf32>, vector<8x8xf32>, vector<8x8xf32> -> vector<8x32xf32>
    %814 = tpu.concatenate %745, %813 in 0 : vector<8x32xf32>, vector<8x32xf32> -> vector<16x32xf32>
    %c1_301 = arith.constant 1 : index
    %c0_302 = arith.constant 0 : index
    %c0_303 = arith.constant 0 : index
    %815 = vector.load %arg13[%c1_301, %c0_302, %c0_303] : memref<2x32x32xf32, #tpu.memory_space<vmem>>, vector<1x32x32xf32>
    %816 = vector.shape_cast %815 : vector<1x32x32xf32> to vector<32x32xf32>
    %cst_304 = arith.constant dense<0.000000e+00> : vector<16x32xf32>
    %817 = tpu.matmul %814, %816, %cst_304 {dimension_numbers = #tpu.dot_dimension_numbers<[1], [0], [0], [1], [0, 0, 1, 1], [], []>} : vector<16x32xf32>, vector<32x32xf32>, vector<16x32xf32> -> vector<16x32xf32>
    %c1_305 = arith.constant 1 : index
    %c0_306 = arith.constant 0 : index
    %c0_307 = arith.constant 0 : index
    %818 = vector.load %arg14[%c1_305, %c0_306, %c0_307] : memref<2x1x32xf32, #tpu.memory_space<vmem>>, vector<1x1x32xf32>
    %819 = vector.shape_cast %818 : vector<1x1x32xf32> to vector<1x32xf32>
    %820 = vector.broadcast %819 : vector<1x32xf32> to vector<16x32xf32>
    %821 = arith.addf %817, %820 : vector<16x32xf32>
    %822 = arith.addf %661, %821 : vector<16x32xf32>
    %c1_308 = arith.constant 1 : index
    %c0_309 = arith.constant 0 : index
    %c0_310 = arith.constant 0 : index
    %823 = vector.load %arg17[%c1_308, %c0_309, %c0_310] : memref<2x1x32xf32, #tpu.memory_space<vmem>>, vector<1x1x32xf32>
    %824 = vector.shape_cast %823 : vector<1x1x32xf32> to vector<1x32xf32>
    %c1_311 = arith.constant 1 : index
    %c0_312 = arith.constant 0 : index
    %c0_313 = arith.constant 0 : index
    %825 = vector.load %arg18[%c1_311, %c0_312, %c0_313] : memref<2x1x32xf32, #tpu.memory_space<vmem>>, vector<1x1x32xf32>
    %826 = vector.shape_cast %825 : vector<1x1x32xf32> to vector<1x32xf32>
    %cst_314 = arith.constant dense<0.000000e+00> : vector<16xf32>
    %827 = vector.multi_reduction <add>, %822, %cst_314 [1] : vector<16x32xf32> to vector<16xf32>
    %828 = vector.shape_cast %827 : vector<16xf32> to vector<16x1xf32>
    %cst_315 = arith.constant 3.200000e+01 : f32
    %829 = vector.broadcast %cst_315 : f32 to vector<16x1xf32>
    %830 = arith.divf %828, %829 : vector<16x1xf32>
    %831 = vector.broadcast %830 : vector<16x1xf32> to vector<16x32xf32>
    %832 = arith.subf %822, %831 : vector<16x32xf32>
    %833 = arith.mulf %832, %832 : vector<16x32xf32>
    %cst_316 = arith.constant dense<0.000000e+00> : vector<16xf32>
    %834 = vector.multi_reduction <add>, %833, %cst_316 [1] : vector<16x32xf32> to vector<16xf32>
    %835 = vector.shape_cast %834 : vector<16xf32> to vector<16x1xf32>
    %cst_317 = arith.constant 3.200000e+01 : f32
    %836 = vector.broadcast %cst_317 : f32 to vector<16x1xf32>
    %837 = arith.divf %835, %836 : vector<16x1xf32>
    %cst_318 = arith.constant 9.99999974E-6 : f32
    %838 = vector.broadcast %cst_318 : f32 to vector<16x1xf32>
    %839 = arith.addf %837, %838 : vector<16x1xf32>
    %840 = math.rsqrt %839 : vector<16x1xf32>
    %841 = vector.broadcast %840 : vector<16x1xf32> to vector<16x32xf32>
    %842 = arith.mulf %832, %841 : vector<16x32xf32>
    %843 = vector.broadcast %824 : vector<1x32xf32> to vector<16x32xf32>
    %844 = arith.mulf %842, %843 : vector<16x32xf32>
    %845 = vector.broadcast %826 : vector<1x32xf32> to vector<16x32xf32>
    %846 = arith.addf %844, %845 : vector<16x32xf32>
    %c1_319 = arith.constant 1 : index
    %c0_320 = arith.constant 0 : index
    %c0_321 = arith.constant 0 : index
    %847 = vector.load %arg21[%c1_319, %c0_320, %c0_321] : memref<2x32x64xf32, #tpu.memory_space<vmem>>, vector<1x32x64xf32>
    %848 = vector.shape_cast %847 : vector<1x32x64xf32> to vector<32x64xf32>
    %cst_322 = arith.constant dense<0.000000e+00> : vector<16x64xf32>
    %849 = tpu.matmul %846, %848, %cst_322 {dimension_numbers = #tpu.dot_dimension_numbers<[1], [0], [0], [1], [0, 0, 1, 1], [], []>} : vector<16x32xf32>, vector<32x64xf32>, vector<16x64xf32> -> vector<16x64xf32>
    %c1_323 = arith.constant 1 : index
    %c0_324 = arith.constant 0 : index
    %c0_325 = arith.constant 0 : index
    %850 = vector.load %arg22[%c1_323, %c0_324, %c0_325] : memref<2x1x64xf32, #tpu.memory_space<vmem>>, vector<1x1x64xf32>
    %851 = vector.shape_cast %850 : vector<1x1x64xf32> to vector<1x64xf32>
    %852 = vector.broadcast %851 : vector<1x64xf32> to vector<16x64xf32>
    %853 = arith.addf %849, %852 : vector<16x64xf32>
    %cst_326 = arith.constant 0.000000e+00 : f32
    %854 = vector.broadcast %cst_326 : f32 to vector<16x64xf32>
    %855 = arith.maximumf %853, %854 : vector<16x64xf32>
    %c1_327 = arith.constant 1 : index
    %c0_328 = arith.constant 0 : index
    %c0_329 = arith.constant 0 : index
    %856 = vector.load %arg23[%c1_327, %c0_328, %c0_329] : memref<2x64x32xf32, #tpu.memory_space<vmem>>, vector<1x64x32xf32>
    %857 = vector.shape_cast %856 : vector<1x64x32xf32> to vector<64x32xf32>
    %cst_330 = arith.constant dense<0.000000e+00> : vector<16x32xf32>
    %858 = tpu.matmul %855, %857, %cst_330 {dimension_numbers = #tpu.dot_dimension_numbers<[1], [0], [0], [1], [0, 0, 1, 1], [], []>} : vector<16x64xf32>, vector<64x32xf32>, vector<16x32xf32> -> vector<16x32xf32>
    %c1_331 = arith.constant 1 : index
    %c0_332 = arith.constant 0 : index
    %c0_333 = arith.constant 0 : index
    %859 = vector.load %arg24[%c1_331, %c0_332, %c0_333] : memref<2x1x32xf32, #tpu.memory_space<vmem>>, vector<1x1x32xf32>
    %860 = vector.shape_cast %859 : vector<1x1x32xf32> to vector<1x32xf32>
    %861 = vector.broadcast %860 : vector<1x32xf32> to vector<16x32xf32>
    %862 = arith.addf %858, %861 : vector<16x32xf32>
    %863 = arith.addf %846, %862 : vector<16x32xf32>
    %c1_334 = arith.constant 1 : index
    %c0_335 = arith.constant 0 : index
    %c0_336 = arith.constant 0 : index
    %864 = vector.load %arg19[%c1_334, %c0_335, %c0_336] : memref<2x1x32xf32, #tpu.memory_space<vmem>>, vector<1x1x32xf32>
    %865 = vector.shape_cast %864 : vector<1x1x32xf32> to vector<1x32xf32>
    %c1_337 = arith.constant 1 : index
    %c0_338 = arith.constant 0 : index
    %c0_339 = arith.constant 0 : index
    %866 = vector.load %arg20[%c1_337, %c0_338, %c0_339] : memref<2x1x32xf32, #tpu.memory_space<vmem>>, vector<1x1x32xf32>
    %867 = vector.shape_cast %866 : vector<1x1x32xf32> to vector<1x32xf32>
    %cst_340 = arith.constant dense<0.000000e+00> : vector<16xf32>
    %868 = vector.multi_reduction <add>, %863, %cst_340 [1] : vector<16x32xf32> to vector<16xf32>
    %869 = vector.shape_cast %868 : vector<16xf32> to vector<16x1xf32>
    %cst_341 = arith.constant 3.200000e+01 : f32
    %870 = vector.broadcast %cst_341 : f32 to vector<16x1xf32>
    %871 = arith.divf %869, %870 : vector<16x1xf32>
    %872 = vector.broadcast %871 : vector<16x1xf32> to vector<16x32xf32>
    %873 = arith.subf %863, %872 : vector<16x32xf32>
    %874 = arith.mulf %873, %873 : vector<16x32xf32>
    %cst_342 = arith.constant dense<0.000000e+00> : vector<16xf32>
    %875 = vector.multi_reduction <add>, %874, %cst_342 [1] : vector<16x32xf32> to vector<16xf32>
    %876 = vector.shape_cast %875 : vector<16xf32> to vector<16x1xf32>
    %cst_343 = arith.constant 3.200000e+01 : f32
    %877 = vector.broadcast %cst_343 : f32 to vector<16x1xf32>
    %878 = arith.divf %876, %877 : vector<16x1xf32>
    %cst_344 = arith.constant 9.99999974E-6 : f32
    %879 = vector.broadcast %cst_344 : f32 to vector<16x1xf32>
    %880 = arith.addf %878, %879 : vector<16x1xf32>
    %881 = math.rsqrt %880 : vector<16x1xf32>
    %882 = vector.broadcast %881 : vector<16x1xf32> to vector<16x32xf32>
    %883 = arith.mulf %873, %882 : vector<16x32xf32>
    %884 = vector.broadcast %865 : vector<1x32xf32> to vector<16x32xf32>
    %885 = arith.mulf %883, %884 : vector<16x32xf32>
    %886 = vector.broadcast %867 : vector<1x32xf32> to vector<16x32xf32>
    %887 = arith.addf %885, %886 : vector<16x32xf32>
    %c0_345 = arith.constant 0 : index
    %c0_346 = arith.constant 0 : index
    %888 = vector.load %arg25[%c0_345, %c0_346] : memref<32x64xf32, #tpu.memory_space<vmem>>, vector<32x64xf32>
    %cst_347 = arith.constant dense<0.000000e+00> : vector<16x64xf32>
    %889 = tpu.matmul %887, %888, %cst_347 {dimension_numbers = #tpu.dot_dimension_numbers<[1], [0], [0], [1], [0, 0, 1, 1], [], []>} : vector<16x32xf32>, vector<32x64xf32>, vector<16x64xf32> -> vector<16x64xf32>
    %c0_348 = arith.constant 0 : index
    %c0_349 = arith.constant 0 : index
    %890 = vector.load %arg26[%c0_348, %c0_349] : memref<1x64xf32, #tpu.memory_space<vmem>>, vector<1x64xf32>
    %891 = vector.broadcast %890 : vector<1x64xf32> to vector<16x64xf32>
    %892 = arith.addf %889, %891 : vector<16x64xf32>
    %c0_350 = arith.constant 0 : index
    %c0_351 = arith.constant 0 : index
    %893 = vector.load %arg28[%c0_350, %c0_351] : memref<16x64xf32, #tpu.memory_space<vmem>>, vector<16x64xf32>
    tpu.vector_store %arg28[%c0_350, %c0_351], %892 {strides = array<i32>} : memref<16x64xf32, #tpu.memory_space<vmem>>, vector<16x64xf32>,
    return
  }
}

</mosaic_0001>

<llo_original>
// kernel: student_candidate_v1_forward.1
$region0: #{student_candidate_v1_forward.1}
  #allocation0 [shape = 'u32[]', space=smem, size = 0x4, offset = 0x4, fixed_abs, tag = 'smem constant byte address 0x4 - core index']
  #allocation1 [shape = 'u32[72,128]{1,0:T(1,128)}', space=vmem, size = 0x9000, scoped, tag = 'internal scratch']
  %s0 = inlined_call_operand.vmem [shape: f32[64,48], index: 0, kind: input, shape index: {}]
  %s1 = inlined_call_operand.vmem [shape: f32[48,32], index: 1, kind: input, shape index: {}]
  %s2 = inlined_call_operand.vmem [shape: f32[1,32], index: 2, kind: input, shape index: {}]
  %s3 = inlined_call_operand.vmem [shape: f32[16,32], index: 3, kind: input, shape index: {}]
  %s4 = inlined_call_operand.vmem [shape: f32[2,8,8], index: 4, kind: input, shape index: {}]
  %s5 = inlined_call_operand.vmem [shape: f32[2,32,96], index: 5, kind: input, shape index: {}]
  %s6 = inlined_call_operand.vmem [shape: f32[2,1,96], index: 6, kind: input, shape index: {}]
  %s7 = inlined_call_operand.vmem [shape: f32[2,32,32], index: 7, kind: input, shape index: {}]
  %s8 = inlined_call_operand.vmem [shape: f32[2,1,32], index: 8, kind: input, shape index: {}]
  %s9 = inlined_call_operand.vmem [shape: f32[2,32,32], index: 9, kind: input, shape index: {}]
  %s10 = inlined_call_operand.vmem [shape: f32[2,1,32], index: 10, kind: input, shape index: {}]
  %s11 = inlined_call_operand.vmem [shape: f32[2,32,64], index: 11, kind: input, shape index: {}]
  %s12 = inlined_call_operand.vmem [shape: f32[2,1,64], index: 12, kind: input, shape index: {}]
  %s13 = inlined_call_operand.vmem [shape: f32[2,32,32], index: 13, kind: input, shape index: {}]
  %s14 = inlined_call_operand.vmem [shape: f32[2,1,32], index: 14, kind: input, shape index: {}]
  %s15 = inlined_call_operand.vmem [shape: f32[2,1,32], index: 15, kind: input, shape index: {}]
  %s16 = inlined_call_operand.vmem [shape: f32[2,1,32], index: 16, kind: input, shape index: {}]
  %s17 = inlined_call_operand.vmem [shape: f32[2,1,32], index: 17, kind: input, shape index: {}]
  %s18 = inlined_call_operand.vmem [shape: f32[2,1,32], index: 18, kind: input, shape index: {}]
  %s19 = inlined_call_operand.vmem [shape: f32[2,1,32], index: 19, kind: input, shape index: {}]
  %s20 = inlined_call_operand.vmem [shape: f32[2,1,32], index: 20, kind: input, shape index: {}]
  %s21 = inlined_call_operand.vmem [shape: f32[2,32,64], index: 21, kind: input, shape index: {}]
  %s22 = inlined_call_operand.vmem [shape: f32[2,1,64], index: 22, kind: input, shape index: {}]
  %s23 = inlined_call_operand.vmem [shape: f32[2,64,32], index: 23, kind: input, shape index: {}]
  %s24 = inlined_call_operand.vmem [shape: f32[2,1,32], index: 24, kind: input, shape index: {}]
  %s25 = inlined_call_operand.vmem [shape: f32[32,64], index: 25, kind: input, shape index: {}]
  %s26 = inlined_call_operand.vmem [shape: f32[1,64], index: 26, kind: input, shape index: {}]
  %s27 = inlined_call_operand.hbm [shape: f32[64,32], index: 27, kind: output, shape index: {0}]
  %s28 = inlined_call_operand.hbm [shape: f32[16,64], index: 28, kind: output, shape index: {1}]
  %29 = xla_tuple %s27, %s28
  %s30 = sld [smem:[#allocation0]]
  $region126: #{student_candidate_v1_forward.1} parent=0
    _
  %s32 = ssub.s32 1, %s30
  %s33 = scalar_select 0, %s32, %s30
  $region1: #{student_candidate_v1_forward.1} parent=0
    #allocation2 [shape = 'u8[32768]{0}', space=vmem, size = 0x8000, scoped, tag = 'output window, operand 0, single buffered']
    #allocation3 [shape = 's32[1]{0}', space=sflag, size = 0x4, scoped, tag = 'scoped memory for student_candidate_v1_forward.1']
    #allocation4 [shape = 'u8[8192]{0}', space=vmem, size = 0x2000, scoped, tag = 'output window, operand 1, single buffered']
    #allocation5 [shape = 's32[1]{0}', space=sflag, size = 0x4, scoped, tag = 'scoped memory for student_candidate_v1_forward.1']
    %34 = vsyncpa [#allocation3], 0
    %35 = vsyncpa [#allocation5], 0
    // Predicated region
    $region2: #{student_candidate_v1_forward.1} parent=1 // pred_check
      _
    $region3: #{student_candidate_v1_forward.1} parent=1 // pred_check_branch
      %37 = sbr.rel (0) target = $region5
    $region4: #{student_candidate_v1_forward.1} parent=1 // pred_region
      _
    $region5: #{student_candidate_v1_forward.1} parent=1 // pred_fallthru
      _
    // Predicated region
    $region6: #{student_candidate_v1_forward.1} parent=1 // pred_check
      _
    $region7: #{student_candidate_v1_forward.1} parent=1 // pred_check_branch
      %39 = sbr.rel (0) target = $region9
    $region8: #{student_candidate_v1_forward.1} parent=1 // pred_region
      _
    $region9: #{student_candidate_v1_forward.1} parent=1 // pred_fallthru
      _
    // Predicated region
    $region10: #{student_candidate_v1_forward.1} parent=1 // pred_check
      _
    $region11: #{student_candidate_v1_forward.1} parent=1 // pred_check_branch
      %41 = sbr.rel (0) target = $region13
    $region12: #{student_candidate_v1_forward.1} parent=1 // pred_region
      _
    $region13: #{student_candidate_v1_forward.1} parent=1 // pred_fallthru
      _
    // Predicated region
    $region14: #{student_candidate_v1_forward.1} parent=1 // pred_check
      _
    $region15: #{student_candidate_v1_forward.1} parent=1 // pred_check_branch
      %43 = sbr.rel (0) target = $region17
    $region16: #{student_candidate_v1_forward.1} parent=1 // pred_region
      _
    $region17: #{student_candidate_v1_forward.1} parent=1 // pred_fallthru
      _
    // Predicated region
    $region18: #{student_candidate_v1_forward.1} parent=1 // pred_check
      _
    $region19: #{student_candidate_v1_forward.1} parent=1 // pred_check_branch
      %45 = sbr.rel (0) target = $region21
    $region20: #{student_candidate_v1_forward.1} parent=1 // pred_region
      _
    $region21: #{student_candidate_v1_forward.1} parent=1 // pred_fallthru
      _
    // Predicated region
    $region22: #{student_candidate_v1_forward.1} parent=1 // pred_check
      _
    $region23: #{student_candidate_v1_forward.1} parent=1 // pred_check_branch
      %47 = sbr.rel (0) target = $region25
    $region24: #{student_candidate_v1_forward.1} parent=1 // pred_region
      _
    $region25: #{student_candidate_v1_forward.1} parent=1 // pred_fallthru
      _
    // Predicated region
    $region26: #{student_candidate_v1_forward.1} parent=1 // pred_check
      _
    $region27: #{student_candidate_v1_forward.1} parent=1 // pred_check_branch
      %49 = sbr.rel (0) target = $region29
    $region28: #{student_candidate_v1_forward.1} parent=1 // pred_region
      _
    $region29: #{student_candidate_v1_forward.1} parent=1 // pred_fallthru
      _
    // Predicated region
    $region30: #{student_candidate_v1_forward.1} parent=1 // pred_check
      _
    $region31: #{student_candidate_v1_forward.1} parent=1 // pred_check_branch
      %51 = sbr.rel (0) target = $region33
    $region32: #{student_candidate_v1_forward.1} parent=1 // pred_region
      _
    $region33: #{student_candidate_v1_forward.1} parent=1 // pred_fallthru
      _
    // Predicated region
    $region34: #{student_candidate_v1_forward.1} parent=1 // pred_check
      _
    $region35: #{student_candidate_v1_forward.1} parent=1 // pred_check_branch
      %53 = sbr.rel (0) target = $region37
    $region36: #{student_candidate_v1_forward.1} parent=1 // pred_region
      _
    $region37: #{student_candidate_v1_forward.1} parent=1 // pred_fallthru
      _
    // Predicated region
    $region38: #{student_candidate_v1_forward.1} parent=1 // pred_check
      _
    $region39: #{student_candidate_v1_forward.1} parent=1 // pred_check_branch
      %55 = sbr.rel (0) target = $region41
    $region40: #{student_candidate_v1_forward.1} parent=1 // pred_region
      _
    $region41: #{student_candidate_v1_forward.1} parent=1 // pred_fallthru
      _
    // Predicated region
    $region42: #{student_candidate_v1_forward.1} parent=1 // pred_check
      _
    $region43: #{student_candidate_v1_forward.1} parent=1 // pred_check_branch
      %57 = sbr.rel (0) target = $region45
    $region44: #{student_candidate_v1_forward.1} parent=1 // pred_region
      _
    $region45: #{student_candidate_v1_forward.1} parent=1 // pred_fallthru
      _
    // Predicated region
    $region46: #{student_candidate_v1_forward.1} parent=1 // pred_check
      _
    $region47: #{student_candidate_v1_forward.1} parent=1 // pred_check_branch
      %59 = sbr.rel (0) target = $region49
    $region48: #{student_candidate_v1_forward.1} parent=1 // pred_region
      _
    $region49: #{student_candidate_v1_forward.1} parent=1 // pred_fallthru
      _
    // Predicated region
    $region50: #{student_candidate_v1_forward.1} parent=1 // pred_check
      _
    $region51: #{student_candidate_v1_forward.1} parent=1 // pred_check_branch
      %61 = sbr.rel (0) target = $region53
    $region52: #{student_candidate_v1_forward.1} parent=1 // pred_region
      _
    $region53: #{student_candidate_v1_forward.1} parent=1 // pred_fallthru
      _
    // Predicated region
    $region54: #{student_candidate_v1_forward.1} parent=1 // pred_check
      _
    $region55: #{student_candidate_v1_forward.1} parent=1 // pred_check_branch
      %63 = sbr.rel (0) target = $region57
    $region56: #{student_candidate_v1_forward.1} parent=1 // pred_region
      _
    $region57: #{student_candidate_v1_forward.1} parent=1 // pred_fallthru
      _
    // Predicated region
    $region58: #{student_candidate_v1_forward.1} parent=1 // pred_check
      _
    $region59: #{student_candidate_v1_forward.1} parent=1 // pred_check_branch
      %65 = sbr.rel (0) target = $region61
    $region60: #{student_candidate_v1_forward.1} parent=1 // pred_region
      _
    $region61: #{student_candidate_v1_forward.1} parent=1 // pred_fallthru
      _
    // Predicated region
    $region62: #{student_candidate_v1_forward.1} parent=1 // pred_check
      _
    $region63: #{student_candidate_v1_forward.1} parent=1 // pred_check_branch
      %67 = sbr.rel (0) target = $region65
    $region64: #{student_candidate_v1_forward.1} parent=1 // pred_region
      _
    $region65: #{student_candidate_v1_forward.1} parent=1 // pred_fallthru
      _
    // Predicated region
    $region66: #{student_candidate_v1_forward.1} parent=1 // pred_check
      _
    $region67: #{student_candidate_v1_forward.1} parent=1 // pred_check_branch
      %69 = sbr.rel (0) target = $region69
    $region68: #{student_candidate_v1_forward.1} parent=1 // pred_region
      _
    $region69: #{student_candidate_v1_forward.1} parent=1 // pred_fallthru
      _
    // Predicated region
    $region70: #{student_candidate_v1_forward.1} parent=1 // pred_check
      _
    $region71: #{student_candidate_v1_forward.1} parent=1 // pred_check_branch
      %71 = sbr.rel (0) target = $region73
    $region72: #{student_candidate_v1_forward.1} parent=1 // pred_region
      _
    $region73: #{student_candidate_v1_forward.1} parent=1 // pred_fallthru
      _
    // Predicated region
    $region74: #{student_candidate_v1_forward.1} parent=1 // pred_check
      _
    $region75: #{student_candidate_v1_forward.1} parent=1 // pred_check_branch
      %73 = sbr.rel (0) target = $region77
    $region76: #{student_candidate_v1_forward.1} parent=1 // pred_region
      _
    $region77: #{student_candidate_v1_forward.1} parent=1 // pred_fallthru
      _
    // Predicated region
    $region78: #{student_candidate_v1_forward.1} parent=1 // pred_check
      _
    $region79: #{student_candidate_v1_forward.1} parent=1 // pred_check_branch
      %75 = sbr.rel (0) target = $region81
    $region80: #{student_candidate_v1_forward.1} parent=1 // pred_region
      _
    $region81: #{student_candidate_v1_forward.1} parent=1 // pred_fallthru
      _
    // Predicated region
    $region82: #{student_candidate_v1_forward.1} parent=1 // pred_check
      _
    $region83: #{student_candidate_v1_forward.1} parent=1 // pred_check_branch
      %77 = sbr.rel (0) target = $region85
    $region84: #{student_candidate_v1_forward.1} parent=1 // pred_region
      _
    $region85: #{student_candidate_v1_forward.1} parent=1 // pred_fallthru
      _
    // Predicated region
    $region86: #{student_candidate_v1_forward.1} parent=1 // pred_check
      _
    $region87: #{student_candidate_v1_forward.1} parent=1 // pred_check_branch
      %79 = sbr.rel (0) target = $region89
    $region88: #{student_candidate_v1_forward.1} parent=1 // pred_region
      _
    $region89: #{student_candidate_v1_forward.1} parent=1 // pred_fallthru
      _
    // Predicated region
    $region90: #{student_candidate_v1_forward.1} parent=1 // pred_check
      _
    $region91: #{student_candidate_v1_forward.1} parent=1 // pred_check_branch
      %81 = sbr.rel (0) target = $region93
    $region92: #{student_candidate_v1_forward.1} parent=1 // pred_region
      _
    $region93: #{student_candidate_v1_forward.1} parent=1 // pred_fallthru
      _
    // Predicated region
    $region94: #{student_candidate_v1_forward.1} parent=1 // pred_check
      _
    $region95: #{student_candidate_v1_forward.1} parent=1 // pred_check_branch
      %83 = sbr.rel (0) target = $region97
    $region96: #{student_candidate_v1_forward.1} parent=1 // pred_region
      _
    $region97: #{student_candidate_v1_forward.1} parent=1 // pred_fallthru
      _
    // Predicated region
    $region98: #{student_candidate_v1_forward.1} parent=1 // pred_check
      _
    $region99: #{student_candidate_v1_forward.1} parent=1 // pred_check_branch
      %85 = sbr.rel (0) target = $region101
    $region100: #{student_candidate_v1_forward.1} parent=1 // pred_region
      _
    $region101: #{student_candidate_v1_forward.1} parent=1 // pred_fallthru
      _
    // Predicated region
    $region102: #{student_candidate_v1_forward.1} parent=1 // pred_check
      _
    $region103: #{student_candidate_v1_forward.1} parent=1 // pred_check_branch
      %87 = sbr.rel (0) target = $region105
    $region104: #{student_candidate_v1_forward.1} parent=1 // pred_region
      _
    $region105: #{student_candidate_v1_forward.1} parent=1 // pred_fallthru
      _
    // Predicated region
    $region106: #{student_candidate_v1_forward.1} parent=1 // pred_check
      _
    $region107: #{student_candidate_v1_forward.1} parent=1 // pred_check_branch
      %89 = sbr.rel (0) target = $region109
    $region108: #{student_candidate_v1_forward.1} parent=1 // pred_region
      _
    $region109: #{student_candidate_v1_forward.1} parent=1 // pred_fallthru
      _
    %v90 = vld [vmem:[%s0] sm:$0xff]
    %v91 = vld [vmem:[%s0 + $0x8] sm:$0xff]
    %v92 = vld [vmem:[%s0 + $0x10] sm:$0xff]
    %v93 = vld [vmem:[%s0 + $0x18] sm:$0xff]
    %v94 = vld [vmem:[%s0 + $0x20] sm:$0xff]
    %v95 = vld [vmem:[%s0 + $0x28] sm:$0xff]
    %v96 = vld [vmem:[%s0 + $0x30] sm:$0xff]
    %v97 = vld [vmem:[%s0 + $0x38] sm:$0xff]
    %v98 = vld [vmem:[%s1] sm:$0xff]
    %v99 = vld [vmem:[%s1 + $0x8] sm:$0xff]
    %v100 = vld [vmem:[%s1 + $0x10] sm:$0xff]
    %v101 = vld [vmem:[%s1 + $0x18] sm:$0xff]
    %v102 = vld [vmem:[%s1 + $0x20] sm:$0xff]
    %v103 = vld [vmem:[%s1 + $0x28] sm:$0xff]
    %v104 = vld [vmem:[%s2] sm:$0x1]
    %v106 = vperm.slane %v104, 0
    %vm108 = vcmask 392192
    %v110 = vsel %vm108, %v90, 0
    %v113 = vsel %vm108, %v91, 0
    %v116 = vsel %vm108, %v92, 0
    %v119 = vsel %vm108, %v93, 0
    %v122 = vsel %vm108, %v94, 0
    %v125 = vsel %vm108, %v95, 0
    %v128 = vsel %vm108, %v96, 0
    %v131 = vsel %vm108, %v97, 0
    %133 = vmatpush.msra.mxu0 0.0
    %134 = vmatpush.msra.mxu0 0.0
    %135 = vmatpush.msra.mxu0 0.0
    %136 = vmatpush.msra.mxu0 0.0
    %137 = vmatpush.msra.mxu0 0.0
    %138 = vmatpush.msra.mxu0 0.0
    %139 = vmatpush.msra.mxu0 0.0
    %140 = vmatpush.msra.mxu0 0.0
    %141 = vmatpush.msra.mxu0 0.0
    %142 = vmatpush.msra.mxu0 0.0
    %143 = vmatpush.msra.mxu0 %v103
    %144 = vmatpush.msra.mxu0 %v102
    %145 = vmatpush.msra.mxu0 %v101
    %146 = vmatpush.msra.mxu0 %v100
    %147 = vmatpush.msra.mxu0 %v99
    %148 = vmatpush.msra.mxu0 %v98
    %149 = vmatmul.f32.gmra.mxu0 %v110
    %v150 = vpop.f32.mrf.mxu0
    %v151 = vadd.f32 %v106, %v150
    %152 = vmatmul.f32.gmra.mxu0 %v113
    %v153 = vpop.f32.mrf.mxu0
    %v154 = vadd.f32 %v106, %v153
    %155 = vmatmul.f32.gmra.mxu0 %v116
    %v156 = vpop.f32.mrf.mxu0
    %v157 = vadd.f32 %v106, %v156
    %158 = vmatmul.f32.gmra.mxu0 %v119
    %v159 = vpop.f32.mrf.mxu0
    %v160 = vadd.f32 %v106, %v159
    %161 = vmatmul.f32.gmra.mxu0 %v122
    %v162 = vpop.f32.mrf.mxu0
    %v163 = vadd.f32 %v106, %v162
    %164 = vmatmul.f32.gmra.mxu0 %v125
    %v165 = vpop.f32.mrf.mxu0
    %v166 = vadd.f32 %v106, %v165
    %167 = vmatmul.f32.gmra.mxu0 %v128
    %v168 = vpop.f32.mrf.mxu0
    %v169 = vadd.f32 %v106, %v168
    %170 = vmatmul.f32.gmra.mxu0 %v131
    %v171 = vpop.f32.mrf.mxu0
    %v172 = vadd.f32 %v106, %v171
    %173 = vdwg.mxu0
    %vm174 = vcmask 261120
    %175 = vst.msk [vmem:[#allocation2] sm:$0xff] %vm174, %v151
    %176 = vst.msk [vmem:[#allocation2 + $0x8] sm:$0xff] %vm174, %v154
    %177 = vst.msk [vmem:[#allocation2 + $0x10] sm:$0xff] %vm174, %v157
    %178 = vst.msk [vmem:[#allocation2 + $0x18] sm:$0xff] %vm174, %v160
    %179 = vst.msk [vmem:[#allocation2 + $0x20] sm:$0xff] %vm174, %v163
    %180 = vst.msk [vmem:[#allocation2 + $0x28] sm:$0xff] %vm174, %v166
    %181 = vst.msk [vmem:[#allocation2 + $0x30] sm:$0xff] %vm174, %v169
    %182 = vst.msk [vmem:[#allocation2 + $0x38] sm:$0xff] %vm174, %v172
    %v183 = vsel %vm174, %v151, 0.0
    %v184 = vsel %vm174, %v154, 0.0
    %v185 = vadd.f32 %v183, %v184
    %v186 = vrot.slane %v185, 4
    %v187 = vadd.f32 %v185, %v186
    %v188 = vrot.slane %v187, 2
    %v189 = vadd.f32 %v187, %v188
    %v190 = vrot.slane %v189, 1
    %v191 = vadd.f32 %v189, %v190
    %v192 = vrcp.pop 16.0
    %v193 = vmul.f32 16.0, %v192
    %v194 = vsub.f32 1.0, %v193
    %v195 = vmul.f32 %v192, %v194
    %v196 = vadd.f32 %v192, %v195
    %vm197 = vweird.f32 %v192
    %v198 = vsel %vm197, %v192, %v196
    %v199 = vmul.f32 %v191, %v198
    %v200 = vsel %vm174, %v157, 0.0
    %v201 = vsel %vm174, %v160, 0.0
    %v202 = vadd.f32 %v200, %v201
    %v203 = vrot.slane %v202, 4
    %v204 = vadd.f32 %v202, %v203
    %v205 = vrot.slane %v204, 2
    %v206 = vadd.f32 %v204, %v205
    %v207 = vrot.slane %v206, 1
    %v208 = vadd.f32 %v206, %v207
    %v209 = vmul.f32 %v208, %v198
    %v210 = vsel %vm174, %v163, 0.0
    %v211 = vsel %vm174, %v166, 0.0
    %v212 = vadd.f32 %v210, %v211
    %v213 = vrot.slane %v212, 4
    %v214 = vadd.f32 %v212, %v213
    %v215 = vrot.slane %v214, 2
    %v216 = vadd.f32 %v214, %v215
    %v217 = vrot.slane %v216, 1
    %v218 = vadd.f32 %v216, %v217
    %v219 = vmul.f32 %v218, %v198
    %v220 = vsel %vm174, %v169, 0.0
    %v221 = vsel %vm174, %v172, 0.0
    %v222 = vadd.f32 %v220, %v221
    %v223 = vrot.slane %v222, 4
    %v224 = vadd.f32 %v222, %v223
    %v225 = vrot.slane %v224, 2
    %v226 = vadd.f32 %v224, %v225
    %v227 = vrot.slane %v226, 1
    %v228 = vadd.f32 %v226, %v227
    %v229 = vmul.f32 %v228, %v198
    %vm230 = vcmask 1040384
    %v231 = vsel %vm230, %v199, %v209
    %vm232 = vcmask 1041408
    %v233 = vsel %vm232, %v231, %v219
    %vm234 = vcmask 1042432
    %v235 = vsel %vm234, %v233, %v229
    %v236 = vld [vmem:[%s4] sm:$0xff]
    %v237 = vld [vmem:[%s4 + $0x8] sm:$0xff]
    %v238 = vld [vmem:[%s3] sm:$0xff]
    %v239 = vld [vmem:[%s3 + $0x8] sm:$0xff]
    %v240 = vld [vmem:[%s5] sm:$0xff]
    %v241 = vld [vmem:[%s5 + $0x8] sm:$0xff]
    %v242 = vld [vmem:[%s5 + $0x10] sm:$0xff]
    %v243 = vld [vmem:[%s5 + $0x18] sm:$0xff]
    %v244 = vld [vmem:[%s6] sm:$0x1]
    %v246 = vperm.slane %v244, 0
    %v249 = vsel %vm174, %v238, 0
    %v252 = vsel %vm174, %v239, 0
    %254 = vmatpush.msra.mxu0 0.0
    %255 = vmatpush.msra.mxu0 0.0
    %256 = vmatpush.msra.mxu0 0.0
    %257 = vmatpush.msra.mxu0 0.0
    %258 = vmatpush.msra.mxu0 0.0
    %259 = vmatpush.msra.mxu0 0.0
    %260 = vmatpush.msra.mxu0 0.0
    %261 = vmatpush.msra.mxu0 0.0
    %262 = vmatpush.msra.mxu0 0.0
    %263 = vmatpush.msra.mxu0 0.0
    %264 = vmatpush.msra.mxu0 0.0
    %265 = vmatpush.msra.mxu0 0.0
    %266 = vmatpush.msra.mxu0 %v243
    %267 = vmatpush.msra.mxu0 %v242
    %268 = vmatpush.msra.mxu0 %v241
    %269 = vmatpush.msra.mxu0 %v240
    %270 = vmatmul.f32.gmra.mxu0 %v249
    %v271 = vpop.f32.mrf.mxu0
    %v272 = vadd.f32 %v246, %v271
    %273 = vmatmul.f32.gmra.mxu0 %v252
    %v274 = vpop.f32.mrf.mxu0
    %v275 = vadd.f32 %v246, %v274
    %276 = vdwg.mxu0
    %278 = vrot.lane.b32.xlu0 %v272, 96
    %v279 = vpop.permute.xlu0 %278
    %vm280 = vcmask 64512
    %v281 = vsel %vm280, %v272, 0
    %v283 = vsel %vm280, %v279, 0
    %285 = vmatpush.xpose.msra.mxu0 0.0
    %286 = vmatpush.xpose.msra.mxu0 0.0
    %287 = vmatpush.xpose.msra.mxu0 0.0
    %288 = vmatpush.xpose.msra.mxu0 0.0
    %289 = vmatpush.xpose.msra.mxu0 0.0
    %290 = vmatpush.xpose.msra.mxu0 0.0
    %291 = vmatpush.xpose.msra.mxu0 0.0
    %292 = vmatpush.xpose.msra.mxu0 0.0
    %293 = vmatpush.xpose.msra.mxu0 0.0
    %294 = vmatpush.xpose.msra.mxu0 0.0
    %295 = vmatpush.xpose.msra.mxu0 0.0
    %296 = vmatpush.xpose.msra.mxu0 0.0
    %297 = vmatpush.xpose.msra.mxu0 0.0
    %298 = vmatpush.xpose.msra.mxu0 0.0
    %299 = vmatpush.xpose.msra.mxu0 0.0
    %300 = vmatpush.xpose.msra.mxu0 %v283
    %301 = vmatmul.f32.gmra.mxu0 %v281
    %v302 = vpop.f32.mrf.mxu0
    %v303 = vadd.f32 0.0, %v302
    %304 = vdwg.mxu0
    %v305 = vmul.f32 %v303, 0.35355338
    %v306 = vadd.f32 %v305, %v236
    %v307 = vsel %vm280, %v306, -inf
    %308 = vmax.xlane.f32.xlu0 %v307
    %v309 = vpop.xlane.xlu0 %308
    %v310 = vsub.f32 %v306, %v309
    %v311 = vmul.f32 %v310, 1.442695
    %v312 = vpow.pop %v311
    %v313 = vsel %vm280, %v312, 0.0
    %314 = vadd.xlane.f32.xlu0 %v313
    %v315 = vpop.xlane.xlu0 %314
    %v316 = vrcp.pop %v315
    %v317 = vmul.f32 %v315, %v316
    %v318 = vsub.f32 1.0, %v317
    %v319 = vmul.f32 %v316, %v318
    %v320 = vadd.f32 %v316, %v319
    %vm321 = vweird.f32 %v315
    %vm322 = vweird.f32 %v316
    %vm323 = vmor %vm321, %vm322
    %v324 = vsel %vm323, %v316, %v320
    %v325 = vand.u32 2147483647, %v315
    %vm326 = vcmp.eq.f32.partialorder %v325, 8.507059e+37
    %v327 = vand.u32 %v315, 2147483648
    %v328 = vor.u32 1.1754944e-38, %v327
    %v329 = vsel %vm326, %v328, %v324
    %v330 = vmul.f32 %v312, %v329
    %331 = vrot.lane.b32.xlu0 %v272, 64
    %v332 = vpop.permute.xlu0 %331
    %v335 = vsel %vm280, %v330, 0
    %337 = vmatpush.msra.mxu0 0.0
    %338 = vmatpush.msra.mxu0 0.0
    %339 = vmatpush.msra.mxu0 0.0
    %340 = vmatpush.msra.mxu0 0.0
    %341 = vmatpush.msra.mxu0 0.0
    %342 = vmatpush.msra.mxu0 0.0
    %343 = vmatpush.msra.mxu0 0.0
    %344 = vmatpush.msra.mxu0 0.0
    %345 = vmatpush.msra.mxu0 0.0
    %346 = vmatpush.msra.mxu0 0.0
    %347 = vmatpush.msra.mxu0 0.0
    %348 = vmatpush.msra.mxu0 0.0
    %349 = vmatpush.msra.mxu0 0.0
    %350 = vmatpush.msra.mxu0 0.0
    %351 = vmatpush.msra.mxu0 0.0
    %352 = vmatpush.msra.mxu0 %v332
    %353 = vmatmul.f32.gmra.mxu0 %v335
    %v354 = vpop.f32.mrf.mxu0
    %v355 = vadd.f32 0.0, %v354
    %356 = vdwg.mxu0
    %357 = vrot.lane.b32.xlu0 %v272, 120
    %v358 = vpop.permute.xlu0 %357
    %359 = vrot.lane.b32.xlu0 %v272, 88
    %v360 = vpop.permute.xlu0 %359
    %v361 = vsel %vm280, %v358, 0
    %v363 = vsel %vm280, %v360, 0
    %365 = vmatpush.xpose.msra.mxu0 0.0
    %366 = vmatpush.xpose.msra.mxu0 0.0
    %367 = vmatpush.xpose.msra.mxu0 0.0
    %368 = vmatpush.xpose.msra.mxu0 0.0
    %369 = vmatpush.xpose.msra.mxu0 0.0
    %370 = vmatpush.xpose.msra.mxu0 0.0
    %371 = vmatpush.xpose.msra.mxu0 0.0
    %372 = vmatpush.xpose.msra.mxu0 0.0
    %373 = vmatpush.xpose.msra.mxu0 0.0
    %374 = vmatpush.xpose.msra.mxu0 0.0
    %375 = vmatpush.xpose.msra.mxu0 0.0
    %376 = vmatpush.xpose.msra.mxu0 0.0
    %377 = vmatpush.xpose.msra.mxu0 0.0
    %378 = vmatpush.xpose.msra.mxu0 0.0
    %379 = vmatpush.xpose.msra.mxu0 0.0
    %380 = vmatpush.xpose.msra.mxu0 %v363
    %381 = vmatmul.f32.gmra.mxu0 %v361
    %v382 = vpop.f32.mrf.mxu0
    %v383 = vadd.f32 0.0, %v382
    %384 = vdwg.mxu0
    %v385 = vmul.f32 %v383, 0.35355338
    %v386 = vadd.f32 %v385, %v236
    %v387 = vsel %vm280, %v386, -inf
    %388 = vmax.xlane.f32.xlu0 %v387
    %v389 = vpop.xlane.xlu0 %388
    %v390 = vsub.f32 %v386, %v389
    %v391 = vmul.f32 %v390, 1.442695
    %v392 = vpow.pop %v391
    %v393 = vsel %vm280, %v392, 0.0
    %394 = vadd.xlane.f32.xlu0 %v393
    %v395 = vpop.xlane.xlu0 %394
    %v396 = vrcp.pop %v395
    %v397 = vmul.f32 %v395, %v396
    %v398 = vsub.f32 1.0, %v397
    %v399 = vmul.f32 %v396, %v398
    %v400 = vadd.f32 %v396, %v399
    %vm401 = vweird.f32 %v395
    %vm402 = vweird.f32 %v396
    %vm403 = vmor %vm401, %vm402
    %v404 = vsel %vm403, %v396, %v400
    %v405 = vand.u32 2147483647, %v395
    %vm406 = vcmp.eq.f32.partialorder %v405, 8.507059e+37
    %v407 = vand.u32 %v395, 2147483648
    %v408 = vor.u32 1.1754944e-38, %v407
    %v409 = vsel %vm406, %v408, %v404
    %v410 = vmul.f32 %v392, %v409
    %411 = vrot.lane.b32.xlu0 %v272, 56
    %v412 = vpop.permute.xlu0 %411
    %v415 = vsel %vm280, %v410, 0
    %417 = vmatpush.msra.mxu0 0.0
    %418 = vmatpush.msra.mxu0 0.0
    %419 = vmatpush.msra.mxu0 0.0
    %420 = vmatpush.msra.mxu0 0.0
    %421 = vmatpush.msra.mxu0 0.0
    %422 = vmatpush.msra.mxu0 0.0
    %423 = vmatpush.msra.mxu0 0.0
    %424 = vmatpush.msra.mxu0 0.0
    %425 = vmatpush.msra.mxu0 0.0
    %426 = vmatpush.msra.mxu0 0.0
    %427 = vmatpush.msra.mxu0 0.0
    %428 = vmatpush.msra.mxu0 0.0
    %429 = vmatpush.msra.mxu0 0.0
    %430 = vmatpush.msra.mxu0 0.0
    %431 = vmatpush.msra.mxu0 0.0
    %432 = vmatpush.msra.mxu0 %v412
    %433 = vmatmul.f32.gmra.mxu0 %v415
    %v434 = vpop.f32.mrf.mxu0
    %v435 = vadd.f32 0.0, %v434
    %436 = vdwg.mxu0
    %437 = vrot.lane.b32.xlu0 %v272, 112
    %v438 = vpop.permute.xlu0 %437
    %439 = vrot.lane.b32.xlu0 %v272, 80
    %v440 = vpop.permute.xlu0 %439
    %v441 = vsel %vm280, %v438, 0
    %v443 = vsel %vm280, %v440, 0
    %445 = vmatpush.xpose.msra.mxu0 0.0
    %446 = vmatpush.xpose.msra.mxu0 0.0
    %447 = vmatpush.xpose.msra.mxu0 0.0
    %448 = vmatpush.xpose.msra.mxu0 0.0
    %449 = vmatpush.xpose.msra.mxu0 0.0
    %450 = vmatpush.xpose.msra.mxu0 0.0
    %451 = vmatpush.xpose.msra.mxu0 0.0
    %452 = vmatpush.xpose.msra.mxu0 0.0
    %453 = vmatpush.xpose.msra.mxu0 0.0
    %454 = vmatpush.xpose.msra.mxu0 0.0
    %455 = vmatpush.xpose.msra.mxu0 0.0
    %456 = vmatpush.xpose.msra.mxu0 0.0
    %457 = vmatpush.xpose.msra.mxu0 0.0
    %458 = vmatpush.xpose.msra.mxu0 0.0
    %459 = vmatpush.xpose.msra.mxu0 0.0
    %460 = vmatpush.xpose.msra.mxu0 %v443
    %461 = vmatmul.f32.gmra.mxu0 %v441
    %v462 = vpop.f32.mrf.mxu0
    %v463 = vadd.f32 0.0, %v462
    %464 = vdwg.mxu0
    %v465 = vmul.f32 %v463, 0.35355338
    %v466 = vadd.f32 %v465, %v236
    %v467 = vsel %vm280, %v466, -inf
    %468 = vmax.xlane.f32.xlu0 %v467
    %v469 = vpop.xlane.xlu0 %468
    %v470 = vsub.f32 %v466, %v469
    %v471 = vmul.f32 %v470, 1.442695
    %v472 = vpow.pop %v471
    %v473 = vsel %vm280, %v472, 0.0
    %474 = vadd.xlane.f32.xlu0 %v473
    %v475 = vpop.xlane.xlu0 %474
    %v476 = vrcp.pop %v475
    %v477 = vmul.f32 %v475, %v476
    %v478 = vsub.f32 1.0, %v477
    %v479 = vmul.f32 %v476, %v478
    %v480 = vadd.f32 %v476, %v479
    %vm481 = vweird.f32 %v475
    %vm482 = vweird.f32 %v476
    %vm483 = vmor %vm481, %vm482
    %v484 = vsel %vm483, %v476, %v480
    %v485 = vand.u32 2147483647, %v475
    %vm486 = vcmp.eq.f32.partialorder %v485, 8.507059e+37
    %v487 = vand.u32 %v475, 2147483648
    %v488 = vor.u32 1.1754944e-38, %v487
    %v489 = vsel %vm486, %v488, %v484
    %v490 = vmul.f32 %v472, %v489
    %491 = vrot.lane.b32.xlu0 %v272, 48
    %v492 = vpop.permute.xlu0 %491
    %v495 = vsel %vm280, %v490, 0
    %497 = vmatpush.msra.mxu0 0.0
    %498 = vmatpush.msra.mxu0 0.0
    %499 = vmatpush.msra.mxu0 0.0
    %500 = vmatpush.msra.mxu0 0.0
    %501 = vmatpush.msra.mxu0 0.0
    %502 = vmatpush.msra.mxu0 0.0
    %503 = vmatpush.msra.mxu0 0.0
    %504 = vmatpush.msra.mxu0 0.0
    %505 = vmatpush.msra.mxu0 0.0
    %506 = vmatpush.msra.mxu0 0.0
    %507 = vmatpush.msra.mxu0 0.0
    %508 = vmatpush.msra.mxu0 0.0
    %509 = vmatpush.msra.mxu0 0.0
    %510 = vmatpush.msra.mxu0 0.0
    %511 = vmatpush.msra.mxu0 0.0
    %512 = vmatpush.msra.mxu0 %v492
    %513 = vmatmul.f32.gmra.mxu0 %v495
    %v514 = vpop.f32.mrf.mxu0
    %v515 = vadd.f32 0.0, %v514
    %516 = vdwg.mxu0
    %517 = vrot.lane.b32.xlu0 %v272, 104
    %v518 = vpop.permute.xlu0 %517
    %519 = vrot.lane.b32.xlu0 %v272, 72
    %v520 = vpop.permute.xlu0 %519
    %v521 = vsel %vm280, %v518, 0
    %v523 = vsel %vm280, %v520, 0
    %525 = vmatpush.xpose.msra.mxu0 0.0
    %526 = vmatpush.xpose.msra.mxu0 0.0
    %527 = vmatpush.xpose.msra.mxu0 0.0
    %528 = vmatpush.xpose.msra.mxu0 0.0
    %529 = vmatpush.xpose.msra.mxu0 0.0
    %530 = vmatpush.xpose.msra.mxu0 0.0
    %531 = vmatpush.xpose.msra.mxu0 0.0
    %532 = vmatpush.xpose.msra.mxu0 0.0
    %533 = vmatpush.xpose.msra.mxu0 0.0
    %534 = vmatpush.xpose.msra.mxu0 0.0
    %535 = vmatpush.xpose.msra.mxu0 0.0
    %536 = vmatpush.xpose.msra.mxu0 0.0
    %537 = vmatpush.xpose.msra.mxu0 0.0
    %538 = vmatpush.xpose.msra.mxu0 0.0
    %539 = vmatpush.xpose.msra.mxu0 0.0
    %540 = vmatpush.xpose.msra.mxu0 %v523
    %541 = vmatmul.f32.gmra.mxu0 %v521
    %v542 = vpop.f32.mrf.mxu0
    %v543 = vadd.f32 0.0, %v542
    %544 = vdwg.mxu0
    %v545 = vmul.f32 %v543, 0.35355338
    %v546 = vadd.f32 %v545, %v236
    %v547 = vsel %vm280, %v546, -inf
    %548 = vmax.xlane.f32.xlu0 %v547
    %v549 = vpop.xlane.xlu0 %548
    %v550 = vsub.f32 %v546, %v549
    %v551 = vmul.f32 %v550, 1.442695
    %v552 = vpow.pop %v551
    %v553 = vsel %vm280, %v552, 0.0
    %554 = vadd.xlane.f32.xlu0 %v553
    %v555 = vpop.xlane.xlu0 %554
    %v556 = vrcp.pop %v555
    %v557 = vmul.f32 %v555, %v556
    %v558 = vsub.f32 1.0, %v557
    %v559 = vmul.f32 %v556, %v558
    %v560 = vadd.f32 %v556, %v559
    %vm561 = vweird.f32 %v555
    %vm562 = vweird.f32 %v556
    %vm563 = vmor %vm561, %vm562
    %v564 = vsel %vm563, %v556, %v560
    %v565 = vand.u32 2147483647, %v555
    %vm566 = vcmp.eq.f32.partialorder %v565, 8.507059e+37
    %v567 = vand.u32 %v555, 2147483648
    %v568 = vor.u32 1.1754944e-38, %v567
    %v569 = vsel %vm566, %v568, %v564
    %v570 = vmul.f32 %v552, %v569
    %571 = vrot.lane.b32.xlu0 %v272, 40
    %v572 = vpop.permute.xlu0 %571
    %v575 = vsel %vm280, %v570, 0
    %577 = vmatpush.msra.mxu0 0.0
    %578 = vmatpush.msra.mxu0 0.0
    %579 = vmatpush.msra.mxu0 0.0
    %580 = vmatpush.msra.mxu0 0.0
    %581 = vmatpush.msra.mxu0 0.0
    %582 = vmatpush.msra.mxu0 0.0
    %583 = vmatpush.msra.mxu0 0.0
    %584 = vmatpush.msra.mxu0 0.0
    %585 = vmatpush.msra.mxu0 0.0
    %586 = vmatpush.msra.mxu0 0.0
    %587 = vmatpush.msra.mxu0 0.0
    %588 = vmatpush.msra.mxu0 0.0
    %589 = vmatpush.msra.mxu0 0.0
    %590 = vmatpush.msra.mxu0 0.0
    %591 = vmatpush.msra.mxu0 0.0
    %592 = vmatpush.msra.mxu0 %v572
    %593 = vmatmul.f32.gmra.mxu0 %v575
    %v594 = vpop.f32.mrf.mxu0
    %v595 = vadd.f32 0.0, %v594
    %596 = vdwg.mxu0
    %598 = vrot.lane.b32.xlu0 %v435, 8
    %v599 = vpop.permute.xlu0 %598
    %602 = vrot.lane.b32.xlu0 %v515, 16
    %v603 = vpop.permute.xlu0 %602
    %606 = vrot.lane.b32.xlu0 %v595, 24
    %v607 = vpop.permute.xlu0 %606
    %v609 = vsel %vm280, %v355, %v599
    %vm610 = vcmask 130048
    %v611 = vsel %vm610, %v609, %v603
    %vm612 = vcmask 195584
    %v613 = vsel %vm612, %v611, %v607
    %615 = vrot.lane.b32.xlu0 %v275, 96
    %v616 = vpop.permute.xlu0 %615
    %v617 = vsel %vm280, %v275, 0
    %v619 = vsel %vm280, %v616, 0
    %621 = vmatpush.xpose.msra.mxu0 0.0
    %622 = vmatpush.xpose.msra.mxu0 0.0
    %623 = vmatpush.xpose.msra.mxu0 0.0
    %624 = vmatpush.xpose.msra.mxu0 0.0
    %625 = vmatpush.xpose.msra.mxu0 0.0
    %626 = vmatpush.xpose.msra.mxu0 0.0
    %627 = vmatpush.xpose.msra.mxu0 0.0
    %628 = vmatpush.xpose.msra.mxu0 0.0
    %629 = vmatpush.xpose.msra.mxu0 0.0
    %630 = vmatpush.xpose.msra.mxu0 0.0
    %631 = vmatpush.xpose.msra.mxu0 0.0
    %632 = vmatpush.xpose.msra.mxu0 0.0
    %633 = vmatpush.xpose.msra.mxu0 0.0
    %634 = vmatpush.xpose.msra.mxu0 0.0
    %635 = vmatpush.xpose.msra.mxu0 0.0
    %636 = vmatpush.xpose.msra.mxu0 %v619
    %637 = vmatmul.f32.gmra.mxu0 %v617
    %v638 = vpop.f32.mrf.mxu0
    %v639 = vadd.f32 0.0, %v638
    %640 = vdwg.mxu0
    %v641 = vmul.f32 %v639, 0.35355338
    %v642 = vadd.f32 %v641, %v237
    %v643 = vsel %vm280, %v642, -inf
    %644 = vmax.xlane.f32.xlu0 %v643
    %v645 = vpop.xlane.xlu0 %644
    %v646 = vsub.f32 %v642, %v645
    %v647 = vmul.f32 %v646, 1.442695
    %v648 = vpow.pop %v647
    %v649 = vsel %vm280, %v648, 0.0
    %650 = vadd.xlane.f32.xlu0 %v649
    %v651 = vpop.xlane.xlu0 %650
    %v652 = vrcp.pop %v651
    %v653 = vmul.f32 %v651, %v652
    %v654 = vsub.f32 1.0, %v653
    %v655 = vmul.f32 %v652, %v654
    %v656 = vadd.f32 %v652, %v655
    %vm657 = vweird.f32 %v651
    %vm658 = vweird.f32 %v652
    %vm659 = vmor %vm657, %vm658
    %v660 = vsel %vm659, %v652, %v656
    %v661 = vand.u32 2147483647, %v651
    %vm662 = vcmp.eq.f32.partialorder %v661, 8.507059e+37
    %v663 = vand.u32 %v651, 2147483648
    %v664 = vor.u32 1.1754944e-38, %v663
    %v665 = vsel %vm662, %v664, %v660
    %v666 = vmul.f32 %v648, %v665
    %667 = vrot.lane.b32.xlu0 %v275, 64
    %v668 = vpop.permute.xlu0 %667
    %v671 = vsel %vm280, %v666, 0
    %673 = vmatpush.msra.mxu0 0.0
    %674 = vmatpush.msra.mxu0 0.0
    %675 = vmatpush.msra.mxu0 0.0
    %676 = vmatpush.msra.mxu0 0.0
    %677 = vmatpush.msra.mxu0 0.0
    %678 = vmatpush.msra.mxu0 0.0
    %679 = vmatpush.msra.mxu0 0.0
    %680 = vmatpush.msra.mxu0 0.0
    %681 = vmatpush.msra.mxu0 0.0
    %682 = vmatpush.msra.mxu0 0.0
    %683 = vmatpush.msra.mxu0 0.0
    %684 = vmatpush.msra.mxu0 0.0
    %685 = vmatpush.msra.mxu0 0.0
    %686 = vmatpush.msra.mxu0 0.0
    %687 = vmatpush.msra.mxu0 0.0
    %688 = vmatpush.msra.mxu0 %v668
    %689 = vmatmul.f32.gmra.mxu0 %v671
    %v690 = vpop.f32.mrf.mxu0
    %v691 = vadd.f32 0.0, %v690
    %692 = vdwg.mxu0
    %693 = vrot.lane.b32.xlu0 %v275, 120
    %v694 = vpop.permute.xlu0 %693
    %695 = vrot.lane.b32.xlu0 %v275, 88
    %v696 = vpop.permute.xlu0 %695
    %v697 = vsel %vm280, %v694, 0
    %v699 = vsel %vm280, %v696, 0
    %701 = vmatpush.xpose.msra.mxu0 0.0
    %702 = vmatpush.xpose.msra.mxu0 0.0
    %703 = vmatpush.xpose.msra.mxu0 0.0
    %704 = vmatpush.xpose.msra.mxu0 0.0
    %705 = vmatpush.xpose.msra.mxu0 0.0
    %706 = vmatpush.xpose.msra.mxu0 0.0
    %707 = vmatpush.xpose.msra.mxu0 0.0
    %708 = vmatpush.xpose.msra.mxu0 0.0
    %709 = vmatpush.xpose.msra.mxu0 0.0
    %710 = vmatpush.xpose.msra.mxu0 0.0
    %711 = vmatpush.xpose.msra.mxu0 0.0
    %712 = vmatpush.xpose.msra.mxu0 0.0
    %713 = vmatpush.xpose.msra.mxu0 0.0
    %714 = vmatpush.xpose.msra.mxu0 0.0
    %715 = vmatpush.xpose.msra.mxu0 0.0
    %716 = vmatpush.xpose.msra.mxu0 %v699
    %717 = vmatmul.f32.gmra.mxu0 %v697
    %v718 = vpop.f32.mrf.mxu0
    %v719 = vadd.f32 0.0, %v718
    %720 = vdwg.mxu0
    %v721 = vmul.f32 %v719, 0.35355338
    %v722 = vadd.f32 %v721, %v237
    %v723 = vsel %vm280, %v722, -inf
    %724 = vmax.xlane.f32.xlu0 %v723
    %v725 = vpop.xlane.xlu0 %724
    %v726 = vsub.f32 %v722, %v725
    %v727 = vmul.f32 %v726, 1.442695
    %v728 = vpow.pop %v727
    %v729 = vsel %vm280, %v728, 0.0
    %730 = vadd.xlane.f32.xlu0 %v729
    %v731 = vpop.xlane.xlu0 %730
    %v732 = vrcp.pop %v731
    %v733 = vmul.f32 %v731, %v732
    %v734 = vsub.f32 1.0, %v733
    %v735 = vmul.f32 %v732, %v734
    %v736 = vadd.f32 %v732, %v735
    %vm737 = vweird.f32 %v731
    %vm738 = vweird.f32 %v732
    %vm739 = vmor %vm737, %vm738
    %v740 = vsel %vm739, %v732, %v736
    %v741 = vand.u32 2147483647, %v731
    %vm742 = vcmp.eq.f32.partialorder %v741, 8.507059e+37
    %v743 = vand.u32 %v731, 2147483648
    %v744 = vor.u32 1.1754944e-38, %v743
    %v745 = vsel %vm742, %v744, %v740
    %v746 = vmul.f32 %v728, %v745
    %747 = vrot.lane.b32.xlu0 %v275, 56
    %v748 = vpop.permute.xlu0 %747
    %v751 = vsel %vm280, %v746, 0
    %753 = vmatpush.msra.mxu0 0.0
    %754 = vmatpush.msra.mxu0 0.0
    %755 = vmatpush.msra.mxu0 0.0
    %756 = vmatpush.msra.mxu0 0.0
    %757 = vmatpush.msra.mxu0 0.0
    %758 = vmatpush.msra.mxu0 0.0
    %759 = vmatpush.msra.mxu0 0.0
    %760 = vmatpush.msra.mxu0 0.0
    %761 = vmatpush.msra.mxu0 0.0
    %762 = vmatpush.msra.mxu0 0.0
    %763 = vmatpush.msra.mxu0 0.0
    %764 = vmatpush.msra.mxu0 0.0
    %765 = vmatpush.msra.mxu0 0.0
    %766 = vmatpush.msra.mxu0 0.0
    %767 = vmatpush.msra.mxu0 0.0
    %768 = vmatpush.msra.mxu0 %v748
    %769 = vmatmul.f32.gmra.mxu0 %v751
    %v770 = vpop.f32.mrf.mxu0
    %v771 = vadd.f32 0.0, %v770
    %772 = vdwg.mxu0
    %773 = vrot.lane.b32.xlu0 %v275, 112
    %v774 = vpop.permute.xlu0 %773
    %775 = vrot.lane.b32.xlu0 %v275, 80
    %v776 = vpop.permute.xlu0 %775
    %v777 = vsel %vm280, %v774, 0
    %v779 = vsel %vm280, %v776, 0
    %781 = vmatpush.xpose.msra.mxu0 0.0
    %782 = vmatpush.xpose.msra.mxu0 0.0
    %783 = vmatpush.xpose.msra.mxu0 0.0
    %784 = vmatpush.xpose.msra.mxu0 0.0
    %785 = vmatpush.xpose.msra.mxu0 0.0
    %786 = vmatpush.xpose.msra.mxu0 0.0
    %787 = vmatpush.xpose.msra.mxu0 0.0
    %788 = vmatpush.xpose.msra.mxu0 0.0
    %789 = vmatpush.xpose.msra.mxu0 0.0
    %790 = vmatpush.xpose.msra.mxu0 0.0
    %791 = vmatpush.xpose.msra.mxu0 0.0
    %792 = vmatpush.xpose.msra.mxu0 0.0
    %793 = vmatpush.xpose.msra.mxu0 0.0
    %794 = vmatpush.xpose.msra.mxu0 0.0
    %795 = vmatpush.xpose.msra.mxu0 0.0
    %796 = vmatpush.xpose.msra.mxu0 %v779
    %797 = vmatmul.f32.gmra.mxu0 %v777
    %v798 = vpop.f32.mrf.mxu0
    %v799 = vadd.f32 0.0, %v798
    %800 = vdwg.mxu0
    %v801 = vmul.f32 %v799, 0.35355338
    %v802 = vadd.f32 %v801, %v237
    %v803 = vsel %vm280, %v802, -inf
    %804 = vmax.xlane.f32.xlu0 %v803
    %v805 = vpop.xlane.xlu0 %804
    %v806 = vsub.f32 %v802, %v805
    %v807 = vmul.f32 %v806, 1.442695
    %v808 = vpow.pop %v807
    %v809 = vsel %vm280, %v808, 0.0
    %810 = vadd.xlane.f32.xlu0 %v809
    %v811 = vpop.xlane.xlu0 %810
    %v812 = vrcp.pop %v811
    %v813 = vmul.f32 %v811, %v812
    %v814 = vsub.f32 1.0, %v813
    %v815 = vmul.f32 %v812, %v814
    %v816 = vadd.f32 %v812, %v815
    %vm817 = vweird.f32 %v811
    %vm818 = vweird.f32 %v812
    %vm819 = vmor %vm817, %vm818
    %v820 = vsel %vm819, %v812, %v816
    %v821 = vand.u32 2147483647, %v811
    %vm822 = vcmp.eq.f32.partialorder %v821, 8.507059e+37
    %v823 = vand.u32 %v811, 2147483648
    %v824 = vor.u32 1.1754944e-38, %v823
    %v825 = vsel %vm822, %v824, %v820
    %v826 = vmul.f32 %v808, %v825
    %827 = vrot.lane.b32.xlu0 %v275, 48
    %v828 = vpop.permute.xlu0 %827
    %v831 = vsel %vm280, %v826, 0
    %833 = vmatpush.msra.mxu0 0.0
    %834 = vmatpush.msra.mxu0 0.0
    %835 = vmatpush.msra.mxu0 0.0
    %836 = vmatpush.msra.mxu0 0.0
    %837 = vmatpush.msra.mxu0 0.0
    %838 = vmatpush.msra.mxu0 0.0
    %839 = vmatpush.msra.mxu0 0.0
    %840 = vmatpush.msra.mxu0 0.0
    %841 = vmatpush.msra.mxu0 0.0
    %842 = vmatpush.msra.mxu0 0.0
    %843 = vmatpush.msra.mxu0 0.0
    %844 = vmatpush.msra.mxu0 0.0
    %845 = vmatpush.msra.mxu0 0.0
    %846 = vmatpush.msra.mxu0 0.0
    %847 = vmatpush.msra.mxu0 0.0
    %848 = vmatpush.msra.mxu0 %v828
    %849 = vmatmul.f32.gmra.mxu0 %v831
    %v850 = vpop.f32.mrf.mxu0
    %v851 = vadd.f32 0.0, %v850
    %852 = vdwg.mxu0
    %853 = vrot.lane.b32.xlu0 %v275, 104
    %v854 = vpop.permute.xlu0 %853
    %855 = vrot.lane.b32.xlu0 %v275, 72
    %v856 = vpop.permute.xlu0 %855
    %v857 = vsel %vm280, %v854, 0
    %v859 = vsel %vm280, %v856, 0
    %861 = vmatpush.xpose.msra.mxu0 0.0
    %862 = vmatpush.xpose.msra.mxu0 0.0
    %863 = vmatpush.xpose.msra.mxu0 0.0
    %864 = vmatpush.xpose.msra.mxu0 0.0
    %865 = vmatpush.xpose.msra.mxu0 0.0
    %866 = vmatpush.xpose.msra.mxu0 0.0
    %867 = vmatpush.xpose.msra.mxu0 0.0
    %868 = vmatpush.xpose.msra.mxu0 0.0
    %869 = vmatpush.xpose.msra.mxu0 0.0
    %870 = vmatpush.xpose.msra.mxu0 0.0
    %871 = vmatpush.xpose.msra.mxu0 0.0
    %872 = vmatpush.xpose.msra.mxu0 0.0
    %873 = vmatpush.xpose.msra.mxu0 0.0
    %874 = vmatpush.xpose.msra.mxu0 0.0
    %875 = vmatpush.xpose.msra.mxu0 0.0
    %876 = vmatpush.xpose.msra.mxu0 %v859
    %877 = vmatmul.f32.gmra.mxu0 %v857
    %v878 = vpop.f32.mrf.mxu0
    %v879 = vadd.f32 0.0, %v878
    %880 = vdwg.mxu0
    %v881 = vmul.f32 %v879, 0.35355338
    %v882 = vadd.f32 %v881, %v237
    %v883 = vsel %vm280, %v882, -inf
    %884 = vmax.xlane.f32.xlu0 %v883
    %v885 = vpop.xlane.xlu0 %884
    %v886 = vsub.f32 %v882, %v885
    %v887 = vmul.f32 %v886, 1.442695
    %v888 = vpow.pop %v887
    %v889 = vsel %vm280, %v888, 0.0
    %890 = vadd.xlane.f32.xlu0 %v889
    %v891 = vpop.xlane.xlu0 %890
    %v892 = vrcp.pop %v891
    %v893 = vmul.f32 %v891, %v892
    %v894 = vsub.f32 1.0, %v893
    %v895 = vmul.f32 %v892, %v894
    %v896 = vadd.f32 %v892, %v895
    %vm897 = vweird.f32 %v891
    %vm898 = vweird.f32 %v892
    %vm899 = vmor %vm897, %vm898
    %v900 = vsel %vm899, %v892, %v896
    %v901 = vand.u32 2147483647, %v891
    %vm902 = vcmp.eq.f32.partialorder %v901, 8.507059e+37
    %v903 = vand.u32 %v891, 2147483648
    %v904 = vor.u32 1.1754944e-38, %v903
    %v905 = vsel %vm902, %v904, %v900
    %v906 = vmul.f32 %v888, %v905
    %907 = vrot.lane.b32.xlu0 %v275, 40
    %v908 = vpop.permute.xlu0 %907
    %v911 = vsel %vm280, %v906, 0
    %913 = vmatpush.msra.mxu0 0.0
    %914 = vmatpush.msra.mxu0 0.0
    %915 = vmatpush.msra.mxu0 0.0
    %916 = vmatpush.msra.mxu0 0.0
    %917 = vmatpush.msra.mxu0 0.0
    %918 = vmatpush.msra.mxu0 0.0
    %919 = vmatpush.msra.mxu0 0.0
    %920 = vmatpush.msra.mxu0 0.0
    %921 = vmatpush.msra.mxu0 0.0
    %922 = vmatpush.msra.mxu0 0.0
    %923 = vmatpush.msra.mxu0 0.0
    %924 = vmatpush.msra.mxu0 0.0
    %925 = vmatpush.msra.mxu0 0.0
    %926 = vmatpush.msra.mxu0 0.0
    %927 = vmatpush.msra.mxu0 0.0
    %928 = vmatpush.msra.mxu0 %v908
    %929 = vmatmul.f32.gmra.mxu0 %v911
    %v930 = vpop.f32.mrf.mxu0
    %v931 = vadd.f32 0.0, %v930
    %932 = vdwg.mxu0
    %934 = vrot.lane.b32.xlu0 %v771, 8
    %v935 = vpop.permute.xlu0 %934
    %938 = vrot.lane.b32.xlu0 %v851, 16
    %v939 = vpop.permute.xlu0 %938
    %942 = vrot.lane.b32.xlu0 %v931, 24
    %v943 = vpop.permute.xlu0 %942
    %v945 = vsel %vm280, %v691, %v935
    %v946 = vsel %vm610, %v945, %v939
    %v947 = vsel %vm612, %v946, %v943
    %v948 = vld [vmem:[%s7] sm:$0xff]
    %v949 = vld [vmem:[%s7 + $0x8] sm:$0xff]
    %v950 = vld [vmem:[%s7 + $0x10] sm:$0xff]
    %v951 = vld [vmem:[%s7 + $0x18] sm:$0xff]
    %v952 = vld [vmem:[%s8] sm:$0x1]
    %v954 = vperm.slane %v952, 0
    %v957 = vsel %vm174, %v613, 0
    %v960 = vsel %vm174, %v947, 0
    %962 = vmatpush.msra.mxu0 0.0
    %963 = vmatpush.msra.mxu0 0.0
    %964 = vmatpush.msra.mxu0 0.0
    %965 = vmatpush.msra.mxu0 0.0
    %966 = vmatpush.msra.mxu0 0.0
    %967 = vmatpush.msra.mxu0 0.0
    %968 = vmatpush.msra.mxu0 0.0
    %969 = vmatpush.msra.mxu0 0.0
    %970 = vmatpush.msra.mxu0 0.0
    %971 = vmatpush.msra.mxu0 0.0
    %972 = vmatpush.msra.mxu0 0.0
    %973 = vmatpush.msra.mxu0 0.0
    %974 = vmatpush.msra.mxu0 %v951
    %975 = vmatpush.msra.mxu0 %v950
    %976 = vmatpush.msra.mxu0 %v949
    %977 = vmatpush.msra.mxu0 %v948
    %978 = vmatmul.f32.gmra.mxu0 %v957
    %v979 = vpop.f32.mrf.mxu0
    %v980 = vadd.f32 %v954, %v979
    %981 = vmatmul.f32.gmra.mxu0 %v960
    %v982 = vpop.f32.mrf.mxu0
    %v983 = vadd.f32 %v954, %v982
    %984 = vdwg.mxu0
    %v985 = vadd.f32 %v238, %v980
    %v986 = vadd.f32 %v239, %v983
    %v987 = vld [vmem:[%s15] sm:$0x1]
    %v988 = vld [vmem:[%s16] sm:$0x1]
    %v989 = vsel %vm174, %v985, 0.0
    %990 = vadd.xlane.f32.xlu0 %v989
    %v991 = vpop.xlane.xlu0 %990
    %v992 = vsel %vm174, %v986, 0.0
    %993 = vadd.xlane.f32.xlu0 %v992
    %v994 = vpop.xlane.xlu0 %993
    %v995 = vrcp.pop 32.0
    %v996 = vmul.f32 32.0, %v995
    %v997 = vsub.f32 1.0, %v996
    %v998 = vmul.f32 %v995, %v997
    %v999 = vadd.f32 %v995, %v998
    %vm1000 = vweird.f32 %v995
    %v1001 = vsel %vm1000, %v995, %v999
    %v1002 = vmul.f32 %v991, %v1001
    %v1003 = vmul.f32 %v994, %v1001
    %v1004 = vsub.f32 %v985, %v1002
    %v1005 = vsub.f32 %v986, %v1003
    %v1006 = vmul.f32 %v1004, %v1004
    %v1007 = vmul.f32 %v1005, %v1005
    %v1008 = vsel %vm174, %v1006, 0.0
    %1009 = vadd.xlane.f32.xlu0 %v1008
    %v1010 = vpop.xlane.xlu0 %1009
    %v1011 = vsel %vm174, %v1007, 0.0
    %1012 = vadd.xlane.f32.xlu0 %v1011
    %v1013 = vpop.xlane.xlu0 %1012
    %v1014 = vmul.f32 %v1010, %v1001
    %v1015 = vmul.f32 %v1013, %v1001
    %v1016 = vadd.f32 %v1014, 1e-05
    %v1017 = vadd.f32 %v1015, 1e-05
    %v1018 = vrsqrt.pop %v1016
    %v1019 = vmul.f32 %v1018, %v1016
    %v1020 = vmul.f32 %v1019, %v1018
    %v1021 = vmul.f32 0.5, %v1020
    %v1022 = vsub.f32 1.5, %v1021
    %v1023 = vmul.f32 %v1018, %v1022
    %vm1024 = vweird.f32 %v1016
    %vm1025 = vweird.f32 %v1018
    %vm1026 = vmor %vm1024, %vm1025
    %v1027 = vsel %vm1026, %v1018, %v1023
    %v1028 = vrsqrt.pop %v1017
    %v1029 = vmul.f32 %v1028, %v1017
    %v1030 = vmul.f32 %v1029, %v1028
    %v1031 = vmul.f32 0.5, %v1030
    %v1032 = vsub.f32 1.5, %v1031
    %v1033 = vmul.f32 %v1028, %v1032
    %vm1034 = vweird.f32 %v1017
    %vm1035 = vweird.f32 %v1028
    %vm1036 = vmor %vm1034, %vm1035
    %v1037 = vsel %vm1036, %v1028, %v1033
    %v1038 = vmul.f32 %v1004, %v1027
    %v1039 = vmul.f32 %v1005, %v1037
    %v1041 = vperm.slane %v987, 0
    %v1043 = vmul.f32 %v1038, %v1041
    %v1044 = vmul.f32 %v1039, %v1041
    %v1046 = vperm.slane %v988, 0
    %v1048 = vadd.f32 %v1043, %v1046
    %v1049 = vadd.f32 %v1044, %v1046
    %v1050 = vld [vmem:[%s9] sm:$0xff]
    %v1051 = vld [vmem:[%s9 + $0x8] sm:$0xff]
    %v1052 = vld [vmem:[%s9 + $0x10] sm:$0xff]
    %v1053 = vld [vmem:[%s9 + $0x18] sm:$0xff]
    %v1054 = vld [vmem:[%s10] sm:$0x1]
    %v1056 = vperm.slane %v1054, 0
    %v1059 = vsel %vm174, %v1048, 0
    %v1062 = vsel %vm174, %v1049, 0
    %1064 = vmatpush.msra.mxu0 0.0
    %1065 = vmatpush.msra.mxu0 0.0
    %1066 = vmatpush.msra.mxu0 0.0
    %1067 = vmatpush.msra.mxu0 0.0
    %1068 = vmatpush.msra.mxu0 0.0
    %1069 = vmatpush.msra.mxu0 0.0
    %1070 = vmatpush.msra.mxu0 0.0
    %1071 = vmatpush.msra.mxu0 0.0
    %1072 = vmatpush.msra.mxu0 0.0
    %1073 = vmatpush.msra.mxu0 0.0
    %1074 = vmatpush.msra.mxu0 0.0
    %1075 = vmatpush.msra.mxu0 0.0
    %1076 = vmatpush.msra.mxu0 %v1053
    %1077 = vmatpush.msra.mxu0 %v1052
    %1078 = vmatpush.msra.mxu0 %v1051
    %1079 = vmatpush.msra.mxu0 %v1050
    %1080 = vmatmul.f32.gmra.mxu0 %v1059
    %v1081 = vpop.f32.mrf.mxu0
    %v1082 = vadd.f32 %v1056, %v1081
    %1083 = vmatmul.f32.gmra.mxu0 %v1062
    %v1084 = vpop.f32.mrf.mxu0
    %v1085 = vadd.f32 %v1056, %v1084
    %1086 = vdwg.mxu0
    %v1087 = vld [vmem:[%s11] sm:$0xff]
    %v1088 = vld [vmem:[%s11 + $0x8] sm:$0xff]
    %v1089 = vld [vmem:[%s11 + $0x10] sm:$0xff]
    %v1090 = vld [vmem:[%s11 + $0x18] sm:$0xff]
    %v1091 = vld [vmem:[%s12] sm:$0x1]
    %v1093 = vperm.slane %v1091, 0
    %v1096 = vsel %vm174, %v235, 0
    %1098 = vmatpush.msra.mxu0 0.0
    %1099 = vmatpush.msra.mxu0 0.0
    %1100 = vmatpush.msra.mxu0 0.0
    %1101 = vmatpush.msra.mxu0 0.0
    %1102 = vmatpush.msra.mxu0 0.0
    %1103 = vmatpush.msra.mxu0 0.0
    %1104 = vmatpush.msra.mxu0 0.0
    %1105 = vmatpush.msra.mxu0 0.0
    %1106 = vmatpush.msra.mxu0 0.0
    %1107 = vmatpush.msra.mxu0 0.0
    %1108 = vmatpush.msra.mxu0 0.0
    %1109 = vmatpush.msra.mxu0 0.0
    %1110 = vmatpush.msra.mxu0 %v1090
    %1111 = vmatpush.msra.mxu0 %v1089
    %1112 = vmatpush.msra.mxu0 %v1088
    %1113 = vmatpush.msra.mxu0 %v1087
    %1114 = vmatmul.f32.gmra.mxu0 %v1096
    %v1115 = vpop.f32.mrf.mxu0
    %v1116 = vadd.f32 %v1093, %v1115
    %1117 = vdwg.mxu0
    %v1119 = vsel %vm280, %v1082, 0
    %v1122 = vsel %vm280, %v1116, 0
    %1124 = vmatpush.xpose.msra.mxu0 0.0
    %1125 = vmatpush.xpose.msra.mxu0 0.0
    %1126 = vmatpush.xpose.msra.mxu0 0.0
    %1127 = vmatpush.xpose.msra.mxu0 0.0
    %1128 = vmatpush.xpose.msra.mxu0 0.0
    %1129 = vmatpush.xpose.msra.mxu0 0.0
    %1130 = vmatpush.xpose.msra.mxu0 0.0
    %1131 = vmatpush.xpose.msra.mxu0 0.0
    %1132 = vmatpush.xpose.msra.mxu0 0.0
    %1133 = vmatpush.xpose.msra.mxu0 0.0
    %1134 = vmatpush.xpose.msra.mxu0 0.0
    %1135 = vmatpush.xpose.msra.mxu0 0.0
    %1136 = vmatpush.xpose.msra.mxu0 0.0
    %1137 = vmatpush.xpose.msra.mxu0 0.0
    %1138 = vmatpush.xpose.msra.mxu0 0.0
    %1139 = vmatpush.xpose.msra.mxu0 %v1122
    %1140 = vmatmul.f32.gmra.mxu0 %v1119
    %v1141 = vpop.f32.mrf.mxu0
    %v1142 = vadd.f32 0.0, %v1141
    %1143 = vdwg.mxu0
    %v1144 = vmul.f32 %v1142, 0.35355338
    %vm1145 = vcmask 15360
    %v1146 = vsel %vm1145, %v1144, -inf
    %1147 = vmax.xlane.f32.xlu0 %v1146
    %v1148 = vpop.xlane.xlu0 %1147
    %v1149 = vsub.f32 %v1144, %v1148
    %v1150 = vmul.f32 %v1149, 1.442695
    %v1151 = vpow.pop %v1150
    %v1152 = vsel %vm1145, %v1151, 0.0
    %1153 = vadd.xlane.f32.xlu0 %v1152
    %v1154 = vpop.xlane.xlu0 %1153
    %v1155 = vrcp.pop %v1154
    %v1156 = vmul.f32 %v1154, %v1155
    %v1157 = vsub.f32 1.0, %v1156
    %v1158 = vmul.f32 %v1155, %v1157
    %v1159 = vadd.f32 %v1155, %v1158
    %vm1160 = vweird.f32 %v1154
    %vm1161 = vweird.f32 %v1155
    %vm1162 = vmor %vm1160, %vm1161
    %v1163 = vsel %vm1162, %v1155, %v1159
    %v1164 = vand.u32 2147483647, %v1154
    %vm1165 = vcmp.eq.f32.partialorder %v1164, 8.507059e+37
    %v1166 = vand.u32 %v1154, 2147483648
    %v1167 = vor.u32 1.1754944e-38, %v1166
    %v1168 = vsel %vm1165, %v1167, %v1163
    %v1169 = vmul.f32 %v1151, %v1168
    %1170 = vrot.lane.b32.xlu0 %v1116, 96
    %v1171 = vpop.permute.xlu0 %1170
    %v1173 = vsel %vm1145, %v1169, 0
    %v1175 = vsel %vm232, %v1171, 0
    %1177 = vmatpush.msra.mxu0 0.0
    %1178 = vmatpush.msra.mxu0 0.0
    %1179 = vmatpush.msra.mxu0 0.0
    %1180 = vmatpush.msra.mxu0 0.0
    %1181 = vmatpush.msra.mxu0 0.0
    %1182 = vmatpush.msra.mxu0 0.0
    %1183 = vmatpush.msra.mxu0 0.0
    %1184 = vmatpush.msra.mxu0 0.0
    %1185 = vmatpush.msra.mxu0 0.0
    %1186 = vmatpush.msra.mxu0 0.0
    %1187 = vmatpush.msra.mxu0 0.0
    %1188 = vmatpush.msra.mxu0 0.0
    %1189 = vmatpush.msra.mxu0 0.0
    %1190 = vmatpush.msra.mxu0 0.0
    %1191 = vmatpush.msra.mxu0 0.0
    %1192 = vmatpush.msra.mxu0 %v1175
    %1193 = vmatmul.f32.gmra.mxu0 %v1173
    %v1194 = vpop.f32.mrf.mxu0
    %v1195 = vadd.f32 0.0, %v1194
    %1196 = vdwg.mxu0
    %1197 = vrot.lane.b32.xlu0 %v1082, 120
    %v1198 = vpop.permute.xlu0 %1197
    %1199 = vrot.lane.b32.xlu0 %v1116, 120
    %v1200 = vpop.permute.xlu0 %1199
    %v1201 = vsel %vm280, %v1198, 0
    %v1203 = vsel %vm280, %v1200, 0
    %1205 = vmatpush.xpose.msra.mxu0 0.0
    %1206 = vmatpush.xpose.msra.mxu0 0.0
    %1207 = vmatpush.xpose.msra.mxu0 0.0
    %1208 = vmatpush.xpose.msra.mxu0 0.0
    %1209 = vmatpush.xpose.msra.mxu0 0.0
    %1210 = vmatpush.xpose.msra.mxu0 0.0
    %1211 = vmatpush.xpose.msra.mxu0 0.0
    %1212 = vmatpush.xpose.msra.mxu0 0.0
    %1213 = vmatpush.xpose.msra.mxu0 0.0
    %1214 = vmatpush.xpose.msra.mxu0 0.0
    %1215 = vmatpush.xpose.msra.mxu0 0.0
    %1216 = vmatpush.xpose.msra.mxu0 0.0
    %1217 = vmatpush.xpose.msra.mxu0 0.0
    %1218 = vmatpush.xpose.msra.mxu0 0.0
    %1219 = vmatpush.xpose.msra.mxu0 0.0
    %1220 = vmatpush.xpose.msra.mxu0 %v1203
    %1221 = vmatmul.f32.gmra.mxu0 %v1201
    %v1222 = vpop.f32.mrf.mxu0
    %v1223 = vadd.f32 0.0, %v1222
    %1224 = vdwg.mxu0
    %v1225 = vmul.f32 %v1223, 0.35355338
    %v1226 = vsel %vm1145, %v1225, -inf
    %1227 = vmax.xlane.f32.xlu0 %v1226
    %v1228 = vpop.xlane.xlu0 %1227
    %v1229 = vsub.f32 %v1225, %v1228
    %v1230 = vmul.f32 %v1229, 1.442695
    %v1231 = vpow.pop %v1230
    %v1232 = vsel %vm1145, %v1231, 0.0
    %1233 = vadd.xlane.f32.xlu0 %v1232
    %v1234 = vpop.xlane.xlu0 %1233
    %v1235 = vrcp.pop %v1234
    %v1236 = vmul.f32 %v1234, %v1235
    %v1237 = vsub.f32 1.0, %v1236
    %v1238 = vmul.f32 %v1235, %v1237
    %v1239 = vadd.f32 %v1235, %v1238
    %vm1240 = vweird.f32 %v1234
    %vm1241 = vweird.f32 %v1235
    %vm1242 = vmor %vm1240, %vm1241
    %v1243 = vsel %vm1242, %v1235, %v1239
    %v1244 = vand.u32 2147483647, %v1234
    %vm1245 = vcmp.eq.f32.partialorder %v1244, 8.507059e+37
    %v1246 = vand.u32 %v1234, 2147483648
    %v1247 = vor.u32 1.1754944e-38, %v1246
    %v1248 = vsel %vm1245, %v1247, %v1243
    %v1249 = vmul.f32 %v1231, %v1248
    %1250 = vrot.lane.b32.xlu0 %v1116, 88
    %v1251 = vpop.permute.xlu0 %1250
    %v1253 = vsel %vm1145, %v1249, 0
    %v1255 = vsel %vm232, %v1251, 0
    %1257 = vmatpush.msra.mxu0 0.0
    %1258 = vmatpush.msra.mxu0 0.0
    %1259 = vmatpush.msra.mxu0 0.0
    %1260 = vmatpush.msra.mxu0 0.0
    %1261 = vmatpush.msra.mxu0 0.0
    %1262 = vmatpush.msra.mxu0 0.0
    %1263 = vmatpush.msra.mxu0 0.0
    %1264 = vmatpush.msra.mxu0 0.0
    %1265 = vmatpush.msra.mxu0 0.0
    %1266 = vmatpush.msra.mxu0 0.0
    %1267 = vmatpush.msra.mxu0 0.0
    %1268 = vmatpush.msra.mxu0 0.0
    %1269 = vmatpush.msra.mxu0 0.0
    %1270 = vmatpush.msra.mxu0 0.0
    %1271 = vmatpush.msra.mxu0 0.0
    %1272 = vmatpush.msra.mxu0 %v1255
    %1273 = vmatmul.f32.gmra.mxu0 %v1253
    %v1274 = vpop.f32.mrf.mxu0
    %v1275 = vadd.f32 0.0, %v1274
    %1276 = vdwg.mxu0
    %1277 = vrot.lane.b32.xlu0 %v1082, 112
    %v1278 = vpop.permute.xlu0 %1277
    %1279 = vrot.lane.b32.xlu0 %v1116, 112
    %v1280 = vpop.permute.xlu0 %1279
    %v1281 = vsel %vm280, %v1278, 0
    %v1283 = vsel %vm280, %v1280, 0
    %1285 = vmatpush.xpose.msra.mxu0 0.0
    %1286 = vmatpush.xpose.msra.mxu0 0.0
    %1287 = vmatpush.xpose.msra.mxu0 0.0
    %1288 = vmatpush.xpose.msra.mxu0 0.0
    %1289 = vmatpush.xpose.msra.mxu0 0.0
    %1290 = vmatpush.xpose.msra.mxu0 0.0
    %1291 = vmatpush.xpose.msra.mxu0 0.0
    %1292 = vmatpush.xpose.msra.mxu0 0.0
    %1293 = vmatpush.xpose.msra.mxu0 0.0
    %1294 = vmatpush.xpose.msra.mxu0 0.0
    %1295 = vmatpush.xpose.msra.mxu0 0.0
    %1296 = vmatpush.xpose.msra.mxu0 0.0
    %1297 = vmatpush.xpose.msra.mxu0 0.0
    %1298 = vmatpush.xpose.msra.mxu0 0.0
    %1299 = vmatpush.xpose.msra.mxu0 0.0
    %1300 = vmatpush.xpose.msra.mxu0 %v1283
    %1301 = vmatmul.f32.gmra.mxu0 %v1281
    %v1302 = vpop.f32.mrf.mxu0
    %v1303 = vadd.f32 0.0, %v1302
    %1304 = vdwg.mxu0
    %v1305 = vmul.f32 %v1303, 0.35355338
    %v1306 = vsel %vm1145, %v1305, -inf
    %1307 = vmax.xlane.f32.xlu0 %v1306
    %v1308 = vpop.xlane.xlu0 %1307
    %v1309 = vsub.f32 %v1305, %v1308
    %v1310 = vmul.f32 %v1309, 1.442695
    %v1311 = vpow.pop %v1310
    %v1312 = vsel %vm1145, %v1311, 0.0
    %1313 = vadd.xlane.f32.xlu0 %v1312
    %v1314 = vpop.xlane.xlu0 %1313
    %v1315 = vrcp.pop %v1314
    %v1316 = vmul.f32 %v1314, %v1315
    %v1317 = vsub.f32 1.0, %v1316
    %v1318 = vmul.f32 %v1315, %v1317
    %v1319 = vadd.f32 %v1315, %v1318
    %vm1320 = vweird.f32 %v1314
    %vm1321 = vweird.f32 %v1315
    %vm1322 = vmor %vm1320, %vm1321
    %v1323 = vsel %vm1322, %v1315, %v1319
    %v1324 = vand.u32 2147483647, %v1314
    %vm1325 = vcmp.eq.f32.partialorder %v1324, 8.507059e+37
    %v1326 = vand.u32 %v1314, 2147483648
    %v1327 = vor.u32 1.1754944e-38, %v1326
    %v1328 = vsel %vm1325, %v1327, %v1323
    %v1329 = vmul.f32 %v1311, %v1328
    %1330 = vrot.lane.b32.xlu0 %v1116, 80
    %v1331 = vpop.permute.xlu0 %1330
    %v1333 = vsel %vm1145, %v1329, 0
    %v1335 = vsel %vm232, %v1331, 0
    %1337 = vmatpush.msra.mxu0 0.0
    %1338 = vmatpush.msra.mxu0 0.0
    %1339 = vmatpush.msra.mxu0 0.0
    %1340 = vmatpush.msra.mxu0 0.0
    %1341 = vmatpush.msra.mxu0 0.0
    %1342 = vmatpush.msra.mxu0 0.0
    %1343 = vmatpush.msra.mxu0 0.0
    %1344 = vmatpush.msra.mxu0 0.0
    %1345 = vmatpush.msra.mxu0 0.0
    %1346 = vmatpush.msra.mxu0 0.0
    %1347 = vmatpush.msra.mxu0 0.0
    %1348 = vmatpush.msra.mxu0 0.0
    %1349 = vmatpush.msra.mxu0 0.0
    %1350 = vmatpush.msra.mxu0 0.0
    %1351 = vmatpush.msra.mxu0 0.0
    %1352 = vmatpush.msra.mxu0 %v1335
    %1353 = vmatmul.f32.gmra.mxu0 %v1333
    %v1354 = vpop.f32.mrf.mxu0
    %v1355 = vadd.f32 0.0, %v1354
    %1356 = vdwg.mxu0
    %1357 = vrot.lane.b32.xlu0 %v1082, 104
    %v1358 = vpop.permute.xlu0 %1357
    %1359 = vrot.lane.b32.xlu0 %v1116, 104
    %v1360 = vpop.permute.xlu0 %1359
    %v1361 = vsel %vm280, %v1358, 0
    %v1363 = vsel %vm280, %v1360, 0
    %1365 = vmatpush.xpose.msra.mxu0 0.0
    %1366 = vmatpush.xpose.msra.mxu0 0.0
    %1367 = vmatpush.xpose.msra.mxu0 0.0
    %1368 = vmatpush.xpose.msra.mxu0 0.0
    %1369 = vmatpush.xpose.msra.mxu0 0.0
    %1370 = vmatpush.xpose.msra.mxu0 0.0
    %1371 = vmatpush.xpose.msra.mxu0 0.0
    %1372 = vmatpush.xpose.msra.mxu0 0.0
    %1373 = vmatpush.xpose.msra.mxu0 0.0
    %1374 = vmatpush.xpose.msra.mxu0 0.0
    %1375 = vmatpush.xpose.msra.mxu0 0.0
    %1376 = vmatpush.xpose.msra.mxu0 0.0
    %1377 = vmatpush.xpose.msra.mxu0 0.0
    %1378 = vmatpush.xpose.msra.mxu0 0.0
    %1379 = vmatpush.xpose.msra.mxu0 0.0
    %1380 = vmatpush.xpose.msra.mxu0 %v1363
    %1381 = vmatmul.f32.gmra.mxu0 %v1361
    %v1382 = vpop.f32.mrf.mxu0
    %v1383 = vadd.f32 0.0, %v1382
    %1384 = vdwg.mxu0
    %v1385 = vmul.f32 %v1383, 0.35355338
    %v1386 = vsel %vm1145, %v1385, -inf
    %1387 = vmax.xlane.f32.xlu0 %v1386
    %v1388 = vpop.xlane.xlu0 %1387
    %v1389 = vsub.f32 %v1385, %v1388
    %v1390 = vmul.f32 %v1389, 1.442695
    %v1391 = vpow.pop %v1390
    %v1392 = vsel %vm1145, %v1391, 0.0
    %1393 = vadd.xlane.f32.xlu0 %v1392
    %v1394 = vpop.xlane.xlu0 %1393
    %v1395 = vrcp.pop %v1394
    %v1396 = vmul.f32 %v1394, %v1395
    %v1397 = vsub.f32 1.0, %v1396
    %v1398 = vmul.f32 %v1395, %v1397
    %v1399 = vadd.f32 %v1395, %v1398
    %vm1400 = vweird.f32 %v1394
    %vm1401 = vweird.f32 %v1395
    %vm1402 = vmor %vm1400, %vm1401
    %v1403 = vsel %vm1402, %v1395, %v1399
    %v1404 = vand.u32 2147483647, %v1394
    %vm1405 = vcmp.eq.f32.partialorder %v1404, 8.507059e+37
    %v1406 = vand.u32 %v1394, 2147483648
    %v1407 = vor.u32 1.1754944e-38, %v1406
    %v1408 = vsel %vm1405, %v1407, %v1403
    %v1409 = vmul.f32 %v1391, %v1408
    %1410 = vrot.lane.b32.xlu0 %v1116, 72
    %v1411 = vpop.permute.xlu0 %1410
    %v1413 = vsel %vm1145, %v1409, 0
    %v1415 = vsel %vm232, %v1411, 0
    %1417 = vmatpush.msra.mxu0 0.0
    %1418 = vmatpush.msra.mxu0 0.0
    %1419 = vmatpush.msra.mxu0 0.0
    %1420 = vmatpush.msra.mxu0 0.0
    %1421 = vmatpush.msra.mxu0 0.0
    %1422 = vmatpush.msra.mxu0 0.0
    %1423 = vmatpush.msra.mxu0 0.0
    %1424 = vmatpush.msra.mxu0 0.0
    %1425 = vmatpush.msra.mxu0 0.0
    %1426 = vmatpush.msra.mxu0 0.0
    %1427 = vmatpush.msra.mxu0 0.0
    %1428 = vmatpush.msra.mxu0 0.0
    %1429 = vmatpush.msra.mxu0 0.0
    %1430 = vmatpush.msra.mxu0 0.0
    %1431 = vmatpush.msra.mxu0 0.0
    %1432 = vmatpush.msra.mxu0 %v1415
    %1433 = vmatmul.f32.gmra.mxu0 %v1413
    %v1434 = vpop.f32.mrf.mxu0
    %v1435 = vadd.f32 0.0, %v1434
    %1436 = vdwg.mxu0
    %1438 = vrot.lane.b32.xlu0 %v1275, 8
    %v1439 = vpop.permute.xlu0 %1438
    %1442 = vrot.lane.b32.xlu0 %v1355, 16
    %v1443 = vpop.permute.xlu0 %1442
    %1446 = vrot.lane.b32.xlu0 %v1435, 24
    %v1447 = vpop.permute.xlu0 %1446
    %v1449 = vsel %vm280, %v1195, %v1439
    %v1450 = vsel %vm610, %v1449, %v1443
    %v1451 = vsel %vm612, %v1450, %v1447
    %v1452 = vrot.slane %v1116, 2
    %v1454 = vsel %vm280, %v1085, 0
    %v1456 = vsel %vm280, %v1452, 0
    %1458 = vmatpush.xpose.msra.mxu0 0.0
    %1459 = vmatpush.xpose.msra.mxu0 0.0
    %1460 = vmatpush.xpose.msra.mxu0 0.0
    %1461 = vmatpush.xpose.msra.mxu0 0.0
    %1462 = vmatpush.xpose.msra.mxu0 0.0
    %1463 = vmatpush.xpose.msra.mxu0 0.0
    %1464 = vmatpush.xpose.msra.mxu0 0.0
    %1465 = vmatpush.xpose.msra.mxu0 0.0
    %1466 = vmatpush.xpose.msra.mxu0 0.0
    %1467 = vmatpush.xpose.msra.mxu0 0.0
    %1468 = vmatpush.xpose.msra.mxu0 0.0
    %1469 = vmatpush.xpose.msra.mxu0 0.0
    %1470 = vmatpush.xpose.msra.mxu0 0.0
    %1471 = vmatpush.xpose.msra.mxu0 0.0
    %1472 = vmatpush.xpose.msra.mxu0 0.0
    %1473 = vmatpush.xpose.msra.mxu0 %v1456
    %1474 = vmatmul.f32.gmra.mxu0 %v1454
    %v1475 = vpop.f32.mrf.mxu0
    %v1476 = vadd.f32 0.0, %v1475
    %1477 = vdwg.mxu0
    %v1478 = vmul.f32 %v1476, 0.35355338
    %v1479 = vsel %vm1145, %v1478, -inf
    %1480 = vmax.xlane.f32.xlu0 %v1479
    %v1481 = vpop.xlane.xlu0 %1480
    %v1482 = vsub.f32 %v1478, %v1481
    %v1483 = vmul.f32 %v1482, 1.442695
    %v1484 = vpow.pop %v1483
    %v1485 = vsel %vm1145, %v1484, 0.0
    %1486 = vadd.xlane.f32.xlu0 %v1485
    %v1487 = vpop.xlane.xlu0 %1486
    %v1488 = vrcp.pop %v1487
    %v1489 = vmul.f32 %v1487, %v1488
    %v1490 = vsub.f32 1.0, %v1489
    %v1491 = vmul.f32 %v1488, %v1490
    %v1492 = vadd.f32 %v1488, %v1491
    %vm1493 = vweird.f32 %v1487
    %vm1494 = vweird.f32 %v1488
    %vm1495 = vmor %vm1493, %vm1494
    %v1496 = vsel %vm1495, %v1488, %v1492
    %v1497 = vand.u32 2147483647, %v1487
    %vm1498 = vcmp.eq.f32.partialorder %v1497, 8.507059e+37
    %v1499 = vand.u32 %v1487, 2147483648
    %v1500 = vor.u32 1.1754944e-38, %v1499
    %v1501 = vsel %vm1498, %v1500, %v1496
    %v1502 = vmul.f32 %v1484, %v1501
    %1503 = vrot.lane.b32.xlu0 %v1452, 96
    %v1504 = vpop.permute.xlu0 %1503
    %v1506 = vsel %vm1145, %v1502, 0
    %v1508 = vsel %vm232, %v1504, 0
    %1510 = vmatpush.msra.mxu0 0.0
    %1511 = vmatpush.msra.mxu0 0.0
    %1512 = vmatpush.msra.mxu0 0.0
    %1513 = vmatpush.msra.mxu0 0.0
    %1514 = vmatpush.msra.mxu0 0.0
    %1515 = vmatpush.msra.mxu0 0.0
    %1516 = vmatpush.msra.mxu0 0.0
    %1517 = vmatpush.msra.mxu0 0.0
    %1518 = vmatpush.msra.mxu0 0.0
    %1519 = vmatpush.msra.mxu0 0.0
    %1520 = vmatpush.msra.mxu0 0.0
    %1521 = vmatpush.msra.mxu0 0.0
    %1522 = vmatpush.msra.mxu0 0.0
    %1523 = vmatpush.msra.mxu0 0.0
    %1524 = vmatpush.msra.mxu0 0.0
    %1525 = vmatpush.msra.mxu0 %v1508
    %1526 = vmatmul.f32.gmra.mxu0 %v1506
    %v1527 = vpop.f32.mrf.mxu0
    %v1528 = vadd.f32 0.0, %v1527
    %1529 = vdwg.mxu0
    %1530 = vrot.lane.b32.xlu0 %v1085, 120
    %v1531 = vpop.permute.xlu0 %1530
    %1532 = vrot.lane.b32.xlu0 %v1452, 120
    %v1533 = vpop.permute.xlu0 %1532
    %v1534 = vsel %vm280, %v1531, 0
    %v1536 = vsel %vm280, %v1533, 0
    %1538 = vmatpush.xpose.msra.mxu0 0.0
    %1539 = vmatpush.xpose.msra.mxu0 0.0
    %1540 = vmatpush.xpose.msra.mxu0 0.0
    %1541 = vmatpush.xpose.msra.mxu0 0.0
    %1542 = vmatpush.xpose.msra.mxu0 0.0
    %1543 = vmatpush.xpose.msra.mxu0 0.0
    %1544 = vmatpush.xpose.msra.mxu0 0.0
    %1545 = vmatpush.xpose.msra.mxu0 0.0
    %1546 = vmatpush.xpose.msra.mxu0 0.0
    %1547 = vmatpush.xpose.msra.mxu0 0.0
    %1548 = vmatpush.xpose.msra.mxu0 0.0
    %1549 = vmatpush.xpose.msra.mxu0 0.0
    %1550 = vmatpush.xpose.msra.mxu0 0.0
    %1551 = vmatpush.xpose.msra.mxu0 0.0
    %1552 = vmatpush.xpose.msra.mxu0 0.0
    %1553 = vmatpush.xpose.msra.mxu0 %v1536
    %1554 = vmatmul.f32.gmra.mxu0 %v1534
    %v1555 = vpop.f32.mrf.mxu0
    %v1556 = vadd.f32 0.0, %v1555
    %1557 = vdwg.mxu0
    %v1558 = vmul.f32 %v1556, 0.35355338
    %v1559 = vsel %vm1145, %v1558, -inf
    %1560 = vmax.xlane.f32.xlu0 %v1559
    %v1561 = vpop.xlane.xlu0 %1560
    %v1562 = vsub.f32 %v1558, %v1561
    %v1563 = vmul.f32 %v1562, 1.442695
    %v1564 = vpow.pop %v1563
    %v1565 = vsel %vm1145, %v1564, 0.0
    %1566 = vadd.xlane.f32.xlu0 %v1565
    %v1567 = vpop.xlane.xlu0 %1566
    %v1568 = vrcp.pop %v1567
    %v1569 = vmul.f32 %v1567, %v1568
    %v1570 = vsub.f32 1.0, %v1569
    %v1571 = vmul.f32 %v1568, %v1570
    %v1572 = vadd.f32 %v1568, %v1571
    %vm1573 = vweird.f32 %v1567
    %vm1574 = vweird.f32 %v1568
    %vm1575 = vmor %vm1573, %vm1574
    %v1576 = vsel %vm1575, %v1568, %v1572
    %v1577 = vand.u32 2147483647, %v1567
    %vm1578 = vcmp.eq.f32.partialorder %v1577, 8.507059e+37
    %v1579 = vand.u32 %v1567, 2147483648
    %v1580 = vor.u32 1.1754944e-38, %v1579
    %v1581 = vsel %vm1578, %v1580, %v1576
    %v1582 = vmul.f32 %v1564, %v1581
    %1583 = vrot.lane.b32.xlu0 %v1452, 88
    %v1584 = vpop.permute.xlu0 %1583
    %v1586 = vsel %vm1145, %v1582, 0
    %v1588 = vsel %vm232, %v1584, 0
    %1590 = vmatpush.msra.mxu0 0.0
    %1591 = vmatpush.msra.mxu0 0.0
    %1592 = vmatpush.msra.mxu0 0.0
    %1593 = vmatpush.msra.mxu0 0.0
    %1594 = vmatpush.msra.mxu0 0.0
    %1595 = vmatpush.msra.mxu0 0.0
    %1596 = vmatpush.msra.mxu0 0.0
    %1597 = vmatpush.msra.mxu0 0.0
    %1598 = vmatpush.msra.mxu0 0.0
    %1599 = vmatpush.msra.mxu0 0.0
    %1600 = vmatpush.msra.mxu0 0.0
    %1601 = vmatpush.msra.mxu0 0.0
    %1602 = vmatpush.msra.mxu0 0.0
    %1603 = vmatpush.msra.mxu0 0.0
    %1604 = vmatpush.msra.mxu0 0.0
    %1605 = vmatpush.msra.mxu0 %v1588
    %1606 = vmatmul.f32.gmra.mxu0 %v1586
    %v1607 = vpop.f32.mrf.mxu0
    %v1608 = vadd.f32 0.0, %v1607
    %1609 = vdwg.mxu0
    %1610 = vrot.lane.b32.xlu0 %v1085, 112
    %v1611 = vpop.permute.xlu0 %1610
    %1612 = vrot.lane.b32.xlu0 %v1452, 112
    %v1613 = vpop.permute.xlu0 %1612
    %v1614 = vsel %vm280, %v1611, 0
    %v1616 = vsel %vm280, %v1613, 0
    %1618 = vmatpush.xpose.msra.mxu0 0.0
    %1619 = vmatpush.xpose.msra.mxu0 0.0
    %1620 = vmatpush.xpose.msra.mxu0 0.0
    %1621 = vmatpush.xpose.msra.mxu0 0.0
    %1622 = vmatpush.xpose.msra.mxu0 0.0
    %1623 = vmatpush.xpose.msra.mxu0 0.0
    %1624 = vmatpush.xpose.msra.mxu0 0.0
    %1625 = vmatpush.xpose.msra.mxu0 0.0
    %1626 = vmatpush.xpose.msra.mxu0 0.0
    %1627 = vmatpush.xpose.msra.mxu0 0.0
    %1628 = vmatpush.xpose.msra.mxu0 0.0
    %1629 = vmatpush.xpose.msra.mxu0 0.0
    %1630 = vmatpush.xpose.msra.mxu0 0.0
    %1631 = vmatpush.xpose.msra.mxu0 0.0
    %1632 = vmatpush.xpose.msra.mxu0 0.0
    %1633 = vmatpush.xpose.msra.mxu0 %v1616
    %1634 = vmatmul.f32.gmra.mxu0 %v1614
    %v1635 = vpop.f32.mrf.mxu0
    %v1636 = vadd.f32 0.0, %v1635
    %1637 = vdwg.mxu0
    %v1638 = vmul.f32 %v1636, 0.35355338
    %v1639 = vsel %vm1145, %v1638, -inf
    %1640 = vmax.xlane.f32.xlu0 %v1639
    %v1641 = vpop.xlane.xlu0 %1640
    %v1642 = vsub.f32 %v1638, %v1641
    %v1643 = vmul.f32 %v1642, 1.442695
    %v1644 = vpow.pop %v1643
    %v1645 = vsel %vm1145, %v1644, 0.0
    %1646 = vadd.xlane.f32.xlu0 %v1645
    %v1647 = vpop.xlane.xlu0 %1646
    %v1648 = vrcp.pop %v1647
    %v1649 = vmul.f32 %v1647, %v1648
    %v1650 = vsub.f32 1.0, %v1649
    %v1651 = vmul.f32 %v1648, %v1650
    %v1652 = vadd.f32 %v1648, %v1651
    %vm1653 = vweird.f32 %v1647
    %vm1654 = vweird.f32 %v1648
    %vm1655 = vmor %vm1653, %vm1654
    %v1656 = vsel %vm1655, %v1648, %v1652
    %v1657 = vand.u32 2147483647, %v1647
    %vm1658 = vcmp.eq.f32.partialorder %v1657, 8.507059e+37
    %v1659 = vand.u32 %v1647, 2147483648
    %v1660 = vor.u32 1.1754944e-38, %v1659
    %v1661 = vsel %vm1658, %v1660, %v1656
    %v1662 = vmul.f32 %v1644, %v1661
    %1663 = vrot.lane.b32.xlu0 %v1452, 80
    %v1664 = vpop.permute.xlu0 %1663
    %v1666 = vsel %vm1145, %v1662, 0
    %v1668 = vsel %vm232, %v1664, 0
    %1670 = vmatpush.msra.mxu0 0.0
    %1671 = vmatpush.msra.mxu0 0.0
    %1672 = vmatpush.msra.mxu0 0.0
    %1673 = vmatpush.msra.mxu0 0.0
    %1674 = vmatpush.msra.mxu0 0.0
    %1675 = vmatpush.msra.mxu0 0.0
    %1676 = vmatpush.msra.mxu0 0.0
    %1677 = vmatpush.msra.mxu0 0.0
    %1678 = vmatpush.msra.mxu0 0.0
    %1679 = vmatpush.msra.mxu0 0.0
    %1680 = vmatpush.msra.mxu0 0.0
    %1681 = vmatpush.msra.mxu0 0.0
    %1682 = vmatpush.msra.mxu0 0.0
    %1683 = vmatpush.msra.mxu0 0.0
    %1684 = vmatpush.msra.mxu0 0.0
    %1685 = vmatpush.msra.mxu0 %v1668
    %1686 = vmatmul.f32.gmra.mxu0 %v1666
    %v1687 = vpop.f32.mrf.mxu0
    %v1688 = vadd.f32 0.0, %v1687
    %1689 = vdwg.mxu0
    %1690 = vrot.lane.b32.xlu0 %v1085, 104
    %v1691 = vpop.permute.xlu0 %1690
    %1692 = vrot.lane.b32.xlu0 %v1452, 104
    %v1693 = vpop.permute.xlu0 %1692
    %v1694 = vsel %vm280, %v1691, 0
    %v1696 = vsel %vm280, %v1693, 0
    %1698 = vmatpush.xpose.msra.mxu0 0.0
    %1699 = vmatpush.xpose.msra.mxu0 0.0
    %1700 = vmatpush.xpose.msra.mxu0 0.0
    %1701 = vmatpush.xpose.msra.mxu0 0.0
    %1702 = vmatpush.xpose.msra.mxu0 0.0
    %1703 = vmatpush.xpose.msra.mxu0 0.0
    %1704 = vmatpush.xpose.msra.mxu0 0.0
    %1705 = vmatpush.xpose.msra.mxu0 0.0
    %1706 = vmatpush.xpose.msra.mxu0 0.0
    %1707 = vmatpush.xpose.msra.mxu0 0.0
    %1708 = vmatpush.xpose.msra.mxu0 0.0
    %1709 = vmatpush.xpose.msra.mxu0 0.0
    %1710 = vmatpush.xpose.msra.mxu0 0.0
    %1711 = vmatpush.xpose.msra.mxu0 0.0
    %1712 = vmatpush.xpose.msra.mxu0 0.0
    %1713 = vmatpush.xpose.msra.mxu0 %v1696
    %1714 = vmatmul.f32.gmra.mxu0 %v1694
    %v1715 = vpop.f32.mrf.mxu0
    %v1716 = vadd.f32 0.0, %v1715
    %1717 = vdwg.mxu0
    %v1718 = vmul.f32 %v1716, 0.35355338
    %v1719 = vsel %vm1145, %v1718, -inf
    %1720 = vmax.xlane.f32.xlu0 %v1719
    %v1721 = vpop.xlane.xlu0 %1720
    %v1722 = vsub.f32 %v1718, %v1721
    %v1723 = vmul.f32 %v1722, 1.442695
    %v1724 = vpow.pop %v1723
    %v1725 = vsel %vm1145, %v1724, 0.0
    %1726 = vadd.xlane.f32.xlu0 %v1725
    %v1727 = vpop.xlane.xlu0 %1726
    %v1728 = vrcp.pop %v1727
    %v1729 = vmul.f32 %v1727, %v1728
    %v1730 = vsub.f32 1.0, %v1729
    %v1731 = vmul.f32 %v1728, %v1730
    %v1732 = vadd.f32 %v1728, %v1731
    %vm1733 = vweird.f32 %v1727
    %vm1734 = vweird.f32 %v1728
    %vm1735 = vmor %vm1733, %vm1734
    %v1736 = vsel %vm1735, %v1728, %v1732
    %v1737 = vand.u32 2147483647, %v1727
    %vm1738 = vcmp.eq.f32.partialorder %v1737, 8.507059e+37
    %v1739 = vand.u32 %v1727, 2147483648
    %v1740 = vor.u32 1.1754944e-38, %v1739
    %v1741 = vsel %vm1738, %v1740, %v1736
    %v1742 = vmul.f32 %v1724, %v1741
    %1743 = vrot.lane.b32.xlu0 %v1452, 72
    %v1744 = vpop.permute.xlu0 %1743
    %v1746 = vsel %vm1145, %v1742, 0
    %v1748 = vsel %vm232, %v1744, 0
    %1750 = vmatpush.msra.mxu0 0.0
    %1751 = vmatpush.msra.mxu0 0.0
    %1752 = vmatpush.msra.mxu0 0.0
    %1753 = vmatpush.msra.mxu0 0.0
    %1754 = vmatpush.msra.mxu0 0.0
    %1755 = vmatpush.msra.mxu0 0.0
    %1756 = vmatpush.msra.mxu0 0.0
    %1757 = vmatpush.msra.mxu0 0.0
    %1758 = vmatpush.msra.mxu0 0.0
    %1759 = vmatpush.msra.mxu0 0.0
    %1760 = vmatpush.msra.mxu0 0.0
    %1761 = vmatpush.msra.mxu0 0.0
    %1762 = vmatpush.msra.mxu0 0.0
    %1763 = vmatpush.msra.mxu0 0.0
    %1764 = vmatpush.msra.mxu0 0.0
    %1765 = vmatpush.msra.mxu0 %v1748
    %1766 = vmatmul.f32.gmra.mxu0 %v1746
    %v1767 = vpop.f32.mrf.mxu0
    %v1768 = vadd.f32 0.0, %v1767
    %1769 = vdwg.mxu0
    %1771 = vrot.lane.b32.xlu0 %v1608, 8
    %v1772 = vpop.permute.xlu0 %1771
    %1775 = vrot.lane.b32.xlu0 %v1688, 16
    %v1776 = vpop.permute.xlu0 %1775
    %1779 = vrot.lane.b32.xlu0 %v1768, 24
    %v1780 = vpop.permute.xlu0 %1779
    %v1782 = vsel %vm280, %v1528, %v1772
    %v1783 = vsel %vm610, %v1782, %v1776
    %v1784 = vsel %vm612, %v1783, %v1780
    %v1785 = vld [vmem:[%s13] sm:$0xff]
    %v1786 = vld [vmem:[%s13 + $0x8] sm:$0xff]
    %v1787 = vld [vmem:[%s13 + $0x10] sm:$0xff]
    %v1788 = vld [vmem:[%s13 + $0x18] sm:$0xff]
    %v1789 = vld [vmem:[%s14] sm:$0x1]
    %v1791 = vperm.slane %v1789, 0
    %v1794 = vsel %vm174, %v1451, 0
    %v1797 = vsel %vm174, %v1784, 0
    %1799 = vmatpush.msra.mxu0 0.0
    %1800 = vmatpush.msra.mxu0 0.0
    %1801 = vmatpush.msra.mxu0 0.0
    %1802 = vmatpush.msra.mxu0 0.0
    %1803 = vmatpush.msra.mxu0 0.0
    %1804 = vmatpush.msra.mxu0 0.0
    %1805 = vmatpush.msra.mxu0 0.0
    %1806 = vmatpush.msra.mxu0 0.0
    %1807 = vmatpush.msra.mxu0 0.0
    %1808 = vmatpush.msra.mxu0 0.0
    %1809 = vmatpush.msra.mxu0 0.0
    %1810 = vmatpush.msra.mxu0 0.0
    %1811 = vmatpush.msra.mxu0 %v1788
    %1812 = vmatpush.msra.mxu0 %v1787
    %1813 = vmatpush.msra.mxu0 %v1786
    %1814 = vmatpush.msra.mxu0 %v1785
    %1815 = vmatmul.f32.gmra.mxu0 %v1794
    %v1816 = vpop.f32.mrf.mxu0
    %v1817 = vadd.f32 %v1791, %v1816
    %1818 = vmatmul.f32.gmra.mxu0 %v1797
    %v1819 = vpop.f32.mrf.mxu0
    %v1820 = vadd.f32 %v1791, %v1819
    %1821 = vdwg.mxu0
    %v1822 = vadd.f32 %v1048, %v1817
    %v1823 = vadd.f32 %v1049, %v1820
    %v1824 = vld [vmem:[%s17] sm:$0x1]
    %v1825 = vld [vmem:[%s18] sm:$0x1]
    %v1826 = vsel %vm174, %v1822, 0.0
    %1827 = vadd.xlane.f32.xlu0 %v1826
    %v1828 = vpop.xlane.xlu0 %1827
    %v1829 = vsel %vm174, %v1823, 0.0
    %1830 = vadd.xlane.f32.xlu0 %v1829
    %v1831 = vpop.xlane.xlu0 %1830
    %v1832 = vmul.f32 %v1828, %v1001
    %v1833 = vmul.f32 %v1831, %v1001
    %v1834 = vsub.f32 %v1822, %v1832
    %v1835 = vsub.f32 %v1823, %v1833
    %v1836 = vmul.f32 %v1834, %v1834
    %v1837 = vmul.f32 %v1835, %v1835
    %v1838 = vsel %vm174, %v1836, 0.0
    %1839 = vadd.xlane.f32.xlu0 %v1838
    %v1840 = vpop.xlane.xlu0 %1839
    %v1841 = vsel %vm174, %v1837, 0.0
    %1842 = vadd.xlane.f32.xlu0 %v1841
    %v1843 = vpop.xlane.xlu0 %1842
    %v1844 = vmul.f32 %v1840, %v1001
    %v1845 = vmul.f32 %v1843, %v1001
    %v1846 = vadd.f32 %v1844, 1e-05
    %v1847 = vadd.f32 %v1845, 1e-05
    %v1848 = vrsqrt.pop %v1846
    %v1849 = vmul.f32 %v1848, %v1846
    %v1850 = vmul.f32 %v1849, %v1848
    %v1851 = vmul.f32 0.5, %v1850
    %v1852 = vsub.f32 1.5, %v1851
    %v1853 = vmul.f32 %v1848, %v1852
    %vm1854 = vweird.f32 %v1846
    %vm1855 = vweird.f32 %v1848
    %vm1856 = vmor %vm1854, %vm1855
    %v1857 = vsel %vm1856, %v1848, %v1853
    %v1858 = vrsqrt.pop %v1847
    %v1859 = vmul.f32 %v1858, %v1847
    %v1860 = vmul.f32 %v1859, %v1858
    %v1861 = vmul.f32 0.5, %v1860
    %v1862 = vsub.f32 1.5, %v1861
    %v1863 = vmul.f32 %v1858, %v1862
    %vm1864 = vweird.f32 %v1847
    %vm1865 = vweird.f32 %v1858
    %vm1866 = vmor %vm1864, %vm1865
    %v1867 = vsel %vm1866, %v1858, %v1863
    %v1868 = vmul.f32 %v1834, %v1857
    %v1869 = vmul.f32 %v1835, %v1867
    %v1871 = vperm.slane %v1824, 0
    %v1873 = vmul.f32 %v1868, %v1871
    %v1874 = vmul.f32 %v1869, %v1871
    %v1876 = vperm.slane %v1825, 0
    %v1878 = vadd.f32 %v1873, %v1876
    %v1879 = vadd.f32 %v1874, %v1876
    %v1880 = vld [vmem:[%s21] sm:$0xff]
    %v1881 = vld [vmem:[%s21 + $0x8] sm:$0xff]
    %v1882 = vld [vmem:[%s21 + $0x10] sm:$0xff]
    %v1883 = vld [vmem:[%s21 + $0x18] sm:$0xff]
    %v1884 = vld [vmem:[%s22] sm:$0x1]
    %v1886 = vperm.slane %v1884, 0
    %v1889 = vsel %vm174, %v1878, 0
    %v1892 = vsel %vm174, %v1879, 0
    %1894 = vmatpush.msra.mxu0 0.0
    %1895 = vmatpush.msra.mxu0 0.0
    %1896 = vmatpush.msra.mxu0 0.0
    %1897 = vmatpush.msra.mxu0 0.0
    %1898 = vmatpush.msra.mxu0 0.0
    %1899 = vmatpush.msra.mxu0 0.0
    %1900 = vmatpush.msra.mxu0 0.0
    %1901 = vmatpush.msra.mxu0 0.0
    %1902 = vmatpush.msra.mxu0 0.0
    %1903 = vmatpush.msra.mxu0 0.0
    %1904 = vmatpush.msra.mxu0 0.0
    %1905 = vmatpush.msra.mxu0 0.0
    %1906 = vmatpush.msra.mxu0 %v1883
    %1907 = vmatpush.msra.mxu0 %v1882
    %1908 = vmatpush.msra.mxu0 %v1881
    %1909 = vmatpush.msra.mxu0 %v1880
    %1910 = vmatmul.f32.gmra.mxu0 %v1889
    %v1911 = vpop.f32.mrf.mxu0
    %v1912 = vadd.f32 %v1886, %v1911
    %1913 = vmatmul.f32.gmra.mxu0 %v1892
    %v1914 = vpop.f32.mrf.mxu0
    %v1915 = vadd.f32 %v1886, %v1914
    %1916 = vdwg.mxu0
    %v1917 = vmax.f32 %v1912, 0.0
    %v1918 = vmax.f32 %v1915, 0.0
    %v1919 = vld [vmem:[%s23] sm:$0xff]
    %v1920 = vld [vmem:[%s23 + $0x8] sm:$0xff]
    %v1921 = vld [vmem:[%s23 + $0x10] sm:$0xff]
    %v1922 = vld [vmem:[%s23 + $0x18] sm:$0xff]
    %v1923 = vld [vmem:[%s23 + $0x20] sm:$0xff]
    %v1924 = vld [vmem:[%s23 + $0x28] sm:$0xff]
    %v1925 = vld [vmem:[%s23 + $0x30] sm:$0xff]
    %v1926 = vld [vmem:[%s23 + $0x38] sm:$0xff]
    %v1927 = vld [vmem:[%s24] sm:$0x1]
    %v1929 = vperm.slane %v1927, 0
    %vm1931 = vcmask 523264
    %v1933 = vsel %vm1931, %v1917, 0
    %v1936 = vsel %vm1931, %v1918, 0
    %1938 = vmatpush.msra.mxu0 0.0
    %1939 = vmatpush.msra.mxu0 0.0
    %1940 = vmatpush.msra.mxu0 0.0
    %1941 = vmatpush.msra.mxu0 0.0
    %1942 = vmatpush.msra.mxu0 0.0
    %1943 = vmatpush.msra.mxu0 0.0
    %1944 = vmatpush.msra.mxu0 0.0
    %1945 = vmatpush.msra.mxu0 0.0
    %1946 = vmatpush.msra.mxu0 %v1926
    %1947 = vmatpush.msra.mxu0 %v1925
    %1948 = vmatpush.msra.mxu0 %v1924
    %1949 = vmatpush.msra.mxu0 %v1923
    %1950 = vmatpush.msra.mxu0 %v1922
    %1951 = vmatpush.msra.mxu0 %v1921
    %1952 = vmatpush.msra.mxu0 %v1920
    %1953 = vmatpush.msra.mxu0 %v1919
    %1954 = vmatmul.f32.gmra.mxu0 %v1933
    %v1955 = vpop.f32.mrf.mxu0
    %v1956 = vadd.f32 %v1929, %v1955
    %1957 = vmatmul.f32.gmra.mxu0 %v1936
    %v1958 = vpop.f32.mrf.mxu0
    %v1959 = vadd.f32 %v1929, %v1958
    %1960 = vdwg.mxu0
    %v1961 = vadd.f32 %v1878, %v1956
    %v1962 = vadd.f32 %v1879, %v1959
    %v1963 = vld [vmem:[%s19] sm:$0x1]
    %v1964 = vld [vmem:[%s20] sm:$0x1]
    %v1965 = vsel %vm174, %v1961, 0.0
    %1966 = vadd.xlane.f32.xlu0 %v1965
    %v1967 = vpop.xlane.xlu0 %1966
    %v1968 = vsel %vm174, %v1962, 0.0
    %1969 = vadd.xlane.f32.xlu0 %v1968
    %v1970 = vpop.xlane.xlu0 %1969
    %v1971 = vmul.f32 %v1967, %v1001
    %v1972 = vmul.f32 %v1970, %v1001
    %v1973 = vsub.f32 %v1961, %v1971
    %v1974 = vsub.f32 %v1962, %v1972
    %v1975 = vmul.f32 %v1973, %v1973
    %v1976 = vmul.f32 %v1974, %v1974
    %v1977 = vsel %vm174, %v1975, 0.0
    %1978 = vadd.xlane.f32.xlu0 %v1977
    %v1979 = vpop.xlane.xlu0 %1978
    %v1980 = vsel %vm174, %v1976, 0.0
    %1981 = vadd.xlane.f32.xlu0 %v1980
    %v1982 = vpop.xlane.xlu0 %1981
    %v1983 = vmul.f32 %v1979, %v1001
    %v1984 = vmul.f32 %v1982, %v1001
    %v1985 = vadd.f32 %v1983, 1e-05
    %v1986 = vadd.f32 %v1984, 1e-05
    %v1987 = vrsqrt.pop %v1985
    %v1988 = vmul.f32 %v1987, %v1985
    %v1989 = vmul.f32 %v1988, %v1987
    %v1990 = vmul.f32 0.5, %v1989
    %v1991 = vsub.f32 1.5, %v1990
    %v1992 = vmul.f32 %v1987, %v1991
    %vm1993 = vweird.f32 %v1985
    %vm1994 = vweird.f32 %v1987
    %vm1995 = vmor %vm1993, %vm1994
    %v1996 = vsel %vm1995, %v1987, %v1992
    %v1997 = vrsqrt.pop %v1986
    %v1998 = vmul.f32 %v1997, %v1986
    %v1999 = vmul.f32 %v1998, %v1997
    %v2000 = vmul.f32 0.5, %v1999
    %v2001 = vsub.f32 1.5, %v2000
    %v2002 = vmul.f32 %v1997, %v2001
    %vm2003 = vweird.f32 %v1986
    %vm2004 = vweird.f32 %v1997
    %vm2005 = vmor %vm2003, %vm2004
    %v2006 = vsel %vm2005, %v1997, %v2002
    %v2007 = vmul.f32 %v1973, %v1996
    %v2008 = vmul.f32 %v1974, %v2006
    %v2010 = vperm.slane %v1963, 0
    %v2012 = vmul.f32 %v2007, %v2010
    %v2013 = vmul.f32 %v2008, %v2010
    %v2015 = vperm.slane %v1964, 0
    %v2017 = vadd.f32 %v2012, %v2015
    %v2018 = vadd.f32 %v2013, %v2015
    %s2019 = scalar_lea.vmem %s5, 32
    %v2020 = vld [vmem:[%s2019] sm:$0xff]
    %v2021 = vld [vmem:[%s2019 + $0x8] sm:$0xff]
    %v2022 = vld [vmem:[%s2019 + $0x10] sm:$0xff]
    %v2023 = vld [vmem:[%s2019 + $0x18] sm:$0xff]
    %s2024 = scalar_lea.vmem %s6, 1
    %v2025 = vld [vmem:[%s2024] sm:$0x1]
    %v2027 = vperm.slane %v2025, 0
    %v2030 = vsel %vm174, %v2017, 0
    %v2033 = vsel %vm174, %v2018, 0
    %2035 = vmatpush.msra.mxu0 0.0
    %2036 = vmatpush.msra.mxu0 0.0
    %2037 = vmatpush.msra.mxu0 0.0
    %2038 = vmatpush.msra.mxu0 0.0
    %2039 = vmatpush.msra.mxu0 0.0
    %2040 = vmatpush.msra.mxu0 0.0
    %2041 = vmatpush.msra.mxu0 0.0
    %2042 = vmatpush.msra.mxu0 0.0
    %2043 = vmatpush.msra.mxu0 0.0
    %2044 = vmatpush.msra.mxu0 0.0
    %2045 = vmatpush.msra.mxu0 0.0
    %2046 = vmatpush.msra.mxu0 0.0
    %2047 = vmatpush.msra.mxu0 %v2023
    %2048 = vmatpush.msra.mxu0 %v2022
    %2049 = vmatpush.msra.mxu0 %v2021
    %2050 = vmatpush.msra.mxu0 %v2020
    %2051 = vmatmul.f32.gmra.mxu0 %v2030
    %v2052 = vpop.f32.mrf.mxu0
    %v2053 = vadd.f32 %v2027, %v2052
    %2054 = vmatmul.f32.gmra.mxu0 %v2033
    %v2055 = vpop.f32.mrf.mxu0
    %v2056 = vadd.f32 %v2027, %v2055
    %2057 = vdwg.mxu0
    %2059 = vrot.lane.b32.xlu0 %v2053, 96
    %v2060 = vpop.permute.xlu0 %2059
    %v2061 = vsel %vm280, %v2053, 0
    %v2063 = vsel %vm280, %v2060, 0
    %2065 = vmatpush.xpose.msra.mxu0 0.0
    %2066 = vmatpush.xpose.msra.mxu0 0.0
    %2067 = vmatpush.xpose.msra.mxu0 0.0
    %2068 = vmatpush.xpose.msra.mxu0 0.0
    %2069 = vmatpush.xpose.msra.mxu0 0.0
    %2070 = vmatpush.xpose.msra.mxu0 0.0
    %2071 = vmatpush.xpose.msra.mxu0 0.0
    %2072 = vmatpush.xpose.msra.mxu0 0.0
    %2073 = vmatpush.xpose.msra.mxu0 0.0
    %2074 = vmatpush.xpose.msra.mxu0 0.0
    %2075 = vmatpush.xpose.msra.mxu0 0.0
    %2076 = vmatpush.xpose.msra.mxu0 0.0
    %2077 = vmatpush.xpose.msra.mxu0 0.0
    %2078 = vmatpush.xpose.msra.mxu0 0.0
    %2079 = vmatpush.xpose.msra.mxu0 0.0
    %2080 = vmatpush.xpose.msra.mxu0 %v2063
    %2081 = vmatmul.f32.gmra.mxu0 %v2061
    %v2082 = vpop.f32.mrf.mxu0
    %v2083 = vadd.f32 0.0, %v2082
    %2084 = vdwg.mxu0
    %v2085 = vmul.f32 %v2083, 0.35355338
    %v2086 = vadd.f32 %v2085, %v236
    %v2087 = vsel %vm280, %v2086, -inf
    %2088 = vmax.xlane.f32.xlu0 %v2087
    %v2089 = vpop.xlane.xlu0 %2088
    %v2090 = vsub.f32 %v2086, %v2089
    %v2091 = vmul.f32 %v2090, 1.442695
    %v2092 = vpow.pop %v2091
    %v2093 = vsel %vm280, %v2092, 0.0
    %2094 = vadd.xlane.f32.xlu0 %v2093
    %v2095 = vpop.xlane.xlu0 %2094
    %v2096 = vrcp.pop %v2095
    %v2097 = vmul.f32 %v2095, %v2096
    %v2098 = vsub.f32 1.0, %v2097
    %v2099 = vmul.f32 %v2096, %v2098
    %v2100 = vadd.f32 %v2096, %v2099
    %vm2101 = vweird.f32 %v2095
    %vm2102 = vweird.f32 %v2096
    %vm2103 = vmor %vm2101, %vm2102
    %v2104 = vsel %vm2103, %v2096, %v2100
    %v2105 = vand.u32 2147483647, %v2095
    %vm2106 = vcmp.eq.f32.partialorder %v2105, 8.507059e+37
    %v2107 = vand.u32 %v2095, 2147483648
    %v2108 = vor.u32 1.1754944e-38, %v2107
    %v2109 = vsel %vm2106, %v2108, %v2104
    %v2110 = vmul.f32 %v2092, %v2109
    %2111 = vrot.lane.b32.xlu0 %v2053, 64
    %v2112 = vpop.permute.xlu0 %2111
    %v2115 = vsel %vm280, %v2110, 0
    %2117 = vmatpush.msra.mxu0 0.0
    %2118 = vmatpush.msra.mxu0 0.0
    %2119 = vmatpush.msra.mxu0 0.0
    %2120 = vmatpush.msra.mxu0 0.0
    %2121 = vmatpush.msra.mxu0 0.0
    %2122 = vmatpush.msra.mxu0 0.0
    %2123 = vmatpush.msra.mxu0 0.0
    %2124 = vmatpush.msra.mxu0 0.0
    %2125 = vmatpush.msra.mxu0 0.0
    %2126 = vmatpush.msra.mxu0 0.0
    %2127 = vmatpush.msra.mxu0 0.0
    %2128 = vmatpush.msra.mxu0 0.0
    %2129 = vmatpush.msra.mxu0 0.0
    %2130 = vmatpush.msra.mxu0 0.0
    %2131 = vmatpush.msra.mxu0 0.0
    %2132 = vmatpush.msra.mxu0 %v2112
    %2133 = vmatmul.f32.gmra.mxu0 %v2115
    %v2134 = vpop.f32.mrf.mxu0
    %v2135 = vadd.f32 0.0, %v2134
    %2136 = vdwg.mxu0
    %2137 = vrot.lane.b32.xlu0 %v2053, 120
    %v2138 = vpop.permute.xlu0 %2137
    %2139 = vrot.lane.b32.xlu0 %v2053, 88
    %v2140 = vpop.permute.xlu0 %2139
    %v2141 = vsel %vm280, %v2138, 0
    %v2143 = vsel %vm280, %v2140, 0
    %2145 = vmatpush.xpose.msra.mxu0 0.0
    %2146 = vmatpush.xpose.msra.mxu0 0.0
    %2147 = vmatpush.xpose.msra.mxu0 0.0
    %2148 = vmatpush.xpose.msra.mxu0 0.0
    %2149 = vmatpush.xpose.msra.mxu0 0.0
    %2150 = vmatpush.xpose.msra.mxu0 0.0
    %2151 = vmatpush.xpose.msra.mxu0 0.0
    %2152 = vmatpush.xpose.msra.mxu0 0.0
    %2153 = vmatpush.xpose.msra.mxu0 0.0
    %2154 = vmatpush.xpose.msra.mxu0 0.0
    %2155 = vmatpush.xpose.msra.mxu0 0.0
    %2156 = vmatpush.xpose.msra.mxu0 0.0
    %2157 = vmatpush.xpose.msra.mxu0 0.0
    %2158 = vmatpush.xpose.msra.mxu0 0.0
    %2159 = vmatpush.xpose.msra.mxu0 0.0
    %2160 = vmatpush.xpose.msra.mxu0 %v2143
    %2161 = vmatmul.f32.gmra.mxu0 %v2141
    %v2162 = vpop.f32.mrf.mxu0
    %v2163 = vadd.f32 0.0, %v2162
    %2164 = vdwg.mxu0
    %v2165 = vmul.f32 %v2163, 0.35355338
    %v2166 = vadd.f32 %v2165, %v236
    %v2167 = vsel %vm280, %v2166, -inf
    %2168 = vmax.xlane.f32.xlu0 %v2167
    %v2169 = vpop.xlane.xlu0 %2168
    %v2170 = vsub.f32 %v2166, %v2169
    %v2171 = vmul.f32 %v2170, 1.442695
    %v2172 = vpow.pop %v2171
    %v2173 = vsel %vm280, %v2172, 0.0
    %2174 = vadd.xlane.f32.xlu0 %v2173
    %v2175 = vpop.xlane.xlu0 %2174
    %v2176 = vrcp.pop %v2175
    %v2177 = vmul.f32 %v2175, %v2176
    %v2178 = vsub.f32 1.0, %v2177
    %v2179 = vmul.f32 %v2176, %v2178
    %v2180 = vadd.f32 %v2176, %v2179
    %vm2181 = vweird.f32 %v2175
    %vm2182 = vweird.f32 %v2176
    %vm2183 = vmor %vm2181, %vm2182
    %v2184 = vsel %vm2183, %v2176, %v2180
    %v2185 = vand.u32 2147483647, %v2175
    %vm2186 = vcmp.eq.f32.partialorder %v2185, 8.507059e+37
    %v2187 = vand.u32 %v2175, 2147483648
    %v2188 = vor.u32 1.1754944e-38, %v2187
    %v2189 = vsel %vm2186, %v2188, %v2184
    %v2190 = vmul.f32 %v2172, %v2189
    %2191 = vrot.lane.b32.xlu0 %v2053, 56
    %v2192 = vpop.permute.xlu0 %2191
    %v2195 = vsel %vm280, %v2190, 0
    %2197 = vmatpush.msra.mxu0 0.0
    %2198 = vmatpush.msra.mxu0 0.0
    %2199 = vmatpush.msra.mxu0 0.0
    %2200 = vmatpush.msra.mxu0 0.0
    %2201 = vmatpush.msra.mxu0 0.0
    %2202 = vmatpush.msra.mxu0 0.0
    %2203 = vmatpush.msra.mxu0 0.0
    %2204 = vmatpush.msra.mxu0 0.0
    %2205 = vmatpush.msra.mxu0 0.0
    %2206 = vmatpush.msra.mxu0 0.0
    %2207 = vmatpush.msra.mxu0 0.0
    %2208 = vmatpush.msra.mxu0 0.0
    %2209 = vmatpush.msra.mxu0 0.0
    %2210 = vmatpush.msra.mxu0 0.0
    %2211 = vmatpush.msra.mxu0 0.0
    %2212 = vmatpush.msra.mxu0 %v2192
    %2213 = vmatmul.f32.gmra.mxu0 %v2195
    %v2214 = vpop.f32.mrf.mxu0
    %v2215 = vadd.f32 0.0, %v2214
    %2216 = vdwg.mxu0
    %2217 = vrot.lane.b32.xlu0 %v2053, 112
    %v2218 = vpop.permute.xlu0 %2217
    %2219 = vrot.lane.b32.xlu0 %v2053, 80
    %v2220 = vpop.permute.xlu0 %2219
    %v2221 = vsel %vm280, %v2218, 0
    %v2223 = vsel %vm280, %v2220, 0
    %2225 = vmatpush.xpose.msra.mxu0 0.0
    %2226 = vmatpush.xpose.msra.mxu0 0.0
    %2227 = vmatpush.xpose.msra.mxu0 0.0
    %2228 = vmatpush.xpose.msra.mxu0 0.0
    %2229 = vmatpush.xpose.msra.mxu0 0.0
    %2230 = vmatpush.xpose.msra.mxu0 0.0
    %2231 = vmatpush.xpose.msra.mxu0 0.0
    %2232 = vmatpush.xpose.msra.mxu0 0.0
    %2233 = vmatpush.xpose.msra.mxu0 0.0
    %2234 = vmatpush.xpose.msra.mxu0 0.0
    %2235 = vmatpush.xpose.msra.mxu0 0.0
    %2236 = vmatpush.xpose.msra.mxu0 0.0
    %2237 = vmatpush.xpose.msra.mxu0 0.0
    %2238 = vmatpush.xpose.msra.mxu0 0.0
    %2239 = vmatpush.xpose.msra.mxu0 0.0
    %2240 = vmatpush.xpose.msra.mxu0 %v2223
    %2241 = vmatmul.f32.gmra.mxu0 %v2221
    %v2242 = vpop.f32.mrf.mxu0
    %v2243 = vadd.f32 0.0, %v2242
    %2244 = vdwg.mxu0
    %v2245 = vmul.f32 %v2243, 0.35355338
    %v2246 = vadd.f32 %v2245, %v236
    %v2247 = vsel %vm280, %v2246, -inf
    %2248 = vmax.xlane.f32.xlu0 %v2247
    %v2249 = vpop.xlane.xlu0 %2248
    %v2250 = vsub.f32 %v2246, %v2249
    %v2251 = vmul.f32 %v2250, 1.442695
    %v2252 = vpow.pop %v2251
    %v2253 = vsel %vm280, %v2252, 0.0
    %2254 = vadd.xlane.f32.xlu0 %v2253
    %v2255 = vpop.xlane.xlu0 %2254
    %v2256 = vrcp.pop %v2255
    %v2257 = vmul.f32 %v2255, %v2256
    %v2258 = vsub.f32 1.0, %v2257
    %v2259 = vmul.f32 %v2256, %v2258
    %v2260 = vadd.f32 %v2256, %v2259
    %vm2261 = vweird.f32 %v2255
    %vm2262 = vweird.f32 %v2256
    %vm2263 = vmor %vm2261, %vm2262
    %v2264 = vsel %vm2263, %v2256, %v2260
    %v2265 = vand.u32 2147483647, %v2255
    %vm2266 = vcmp.eq.f32.partialorder %v2265, 8.507059e+37
    %v2267 = vand.u32 %v2255, 2147483648
    %v2268 = vor.u32 1.1754944e-38, %v2267
    %v2269 = vsel %vm2266, %v2268, %v2264
    %v2270 = vmul.f32 %v2252, %v2269
    %2271 = vrot.lane.b32.xlu0 %v2053, 48
    %v2272 = vpop.permute.xlu0 %2271
    %v2275 = vsel %vm280, %v2270, 0
    %2277 = vmatpush.msra.mxu0 0.0
    %2278 = vmatpush.msra.mxu0 0.0
    %2279 = vmatpush.msra.mxu0 0.0
    %2280 = vmatpush.msra.mxu0 0.0
    %2281 = vmatpush.msra.mxu0 0.0
    %2282 = vmatpush.msra.mxu0 0.0
    %2283 = vmatpush.msra.mxu0 0.0
    %2284 = vmatpush.msra.mxu0 0.0
    %2285 = vmatpush.msra.mxu0 0.0
    %2286 = vmatpush.msra.mxu0 0.0
    %2287 = vmatpush.msra.mxu0 0.0
    %2288 = vmatpush.msra.mxu0 0.0
    %2289 = vmatpush.msra.mxu0 0.0
    %2290 = vmatpush.msra.mxu0 0.0
    %2291 = vmatpush.msra.mxu0 0.0
    %2292 = vmatpush.msra.mxu0 %v2272
    %2293 = vmatmul.f32.gmra.mxu0 %v2275
    %v2294 = vpop.f32.mrf.mxu0
    %v2295 = vadd.f32 0.0, %v2294
    %2296 = vdwg.mxu0
    %2297 = vrot.lane.b32.xlu0 %v2053, 104
    %v2298 = vpop.permute.xlu0 %2297
    %2299 = vrot.lane.b32.xlu0 %v2053, 72
    %v2300 = vpop.permute.xlu0 %2299
    %v2301 = vsel %vm280, %v2298, 0
    %v2303 = vsel %vm280, %v2300, 0
    %2305 = vmatpush.xpose.msra.mxu0 0.0
    %2306 = vmatpush.xpose.msra.mxu0 0.0
    %2307 = vmatpush.xpose.msra.mxu0 0.0
    %2308 = vmatpush.xpose.msra.mxu0 0.0
    %2309 = vmatpush.xpose.msra.mxu0 0.0
    %2310 = vmatpush.xpose.msra.mxu0 0.0
    %2311 = vmatpush.xpose.msra.mxu0 0.0
    %2312 = vmatpush.xpose.msra.mxu0 0.0
    %2313 = vmatpush.xpose.msra.mxu0 0.0
    %2314 = vmatpush.xpose.msra.mxu0 0.0
    %2315 = vmatpush.xpose.msra.mxu0 0.0
    %2316 = vmatpush.xpose.msra.mxu0 0.0
    %2317 = vmatpush.xpose.msra.mxu0 0.0
    %2318 = vmatpush.xpose.msra.mxu0 0.0
    %2319 = vmatpush.xpose.msra.mxu0 0.0
    %2320 = vmatpush.xpose.msra.mxu0 %v2303
    %2321 = vmatmul.f32.gmra.mxu0 %v2301
    %v2322 = vpop.f32.mrf.mxu0
    %v2323 = vadd.f32 0.0, %v2322
    %2324 = vdwg.mxu0
    %v2325 = vmul.f32 %v2323, 0.35355338
    %v2326 = vadd.f32 %v2325, %v236
    %v2327 = vsel %vm280, %v2326, -inf
    %2328 = vmax.xlane.f32.xlu0 %v2327
    %v2329 = vpop.xlane.xlu0 %2328
    %v2330 = vsub.f32 %v2326, %v2329
    %v2331 = vmul.f32 %v2330, 1.442695
    %v2332 = vpow.pop %v2331
    %v2333 = vsel %vm280, %v2332, 0.0
    %2334 = vadd.xlane.f32.xlu0 %v2333
    %v2335 = vpop.xlane.xlu0 %2334
    %v2336 = vrcp.pop %v2335
    %v2337 = vmul.f32 %v2335, %v2336
    %v2338 = vsub.f32 1.0, %v2337
    %v2339 = vmul.f32 %v2336, %v2338
    %v2340 = vadd.f32 %v2336, %v2339
    %vm2341 = vweird.f32 %v2335
    %vm2342 = vweird.f32 %v2336
    %vm2343 = vmor %vm2341, %vm2342
    %v2344 = vsel %vm2343, %v2336, %v2340
    %v2345 = vand.u32 2147483647, %v2335
    %vm2346 = vcmp.eq.f32.partialorder %v2345, 8.507059e+37
    %v2347 = vand.u32 %v2335, 2147483648
    %v2348 = vor.u32 1.1754944e-38, %v2347
    %v2349 = vsel %vm2346, %v2348, %v2344
    %v2350 = vmul.f32 %v2332, %v2349
    %2351 = vrot.lane.b32.xlu0 %v2053, 40
    %v2352 = vpop.permute.xlu0 %2351
    %v2355 = vsel %vm280, %v2350, 0
    %2357 = vmatpush.msra.mxu0 0.0
    %2358 = vmatpush.msra.mxu0 0.0
    %2359 = vmatpush.msra.mxu0 0.0
    %2360 = vmatpush.msra.mxu0 0.0
    %2361 = vmatpush.msra.mxu0 0.0
    %2362 = vmatpush.msra.mxu0 0.0
    %2363 = vmatpush.msra.mxu0 0.0
    %2364 = vmatpush.msra.mxu0 0.0
    %2365 = vmatpush.msra.mxu0 0.0
    %2366 = vmatpush.msra.mxu0 0.0
    %2367 = vmatpush.msra.mxu0 0.0
    %2368 = vmatpush.msra.mxu0 0.0
    %2369 = vmatpush.msra.mxu0 0.0
    %2370 = vmatpush.msra.mxu0 0.0
    %2371 = vmatpush.msra.mxu0 0.0
    %2372 = vmatpush.msra.mxu0 %v2352
    %2373 = vmatmul.f32.gmra.mxu0 %v2355
    %v2374 = vpop.f32.mrf.mxu0
    %v2375 = vadd.f32 0.0, %v2374
    %2376 = vdwg.mxu0
    %2378 = vrot.lane.b32.xlu0 %v2215, 8
    %v2379 = vpop.permute.xlu0 %2378
    %2382 = vrot.lane.b32.xlu0 %v2295, 16
    %v2383 = vpop.permute.xlu0 %2382
    %2386 = vrot.lane.b32.xlu0 %v2375, 24
    %v2387 = vpop.permute.xlu0 %2386
    %v2389 = vsel %vm280, %v2135, %v2379
    %v2390 = vsel %vm610, %v2389, %v2383
    %v2391 = vsel %vm612, %v2390, %v2387
    %2393 = vrot.lane.b32.xlu0 %v2056, 96
    %v2394 = vpop.permute.xlu0 %2393
    %v2395 = vsel %vm280, %v2056, 0
    %v2397 = vsel %vm280, %v2394, 0
    %2399 = vmatpush.xpose.msra.mxu0 0.0
    %2400 = vmatpush.xpose.msra.mxu0 0.0
    %2401 = vmatpush.xpose.msra.mxu0 0.0
    %2402 = vmatpush.xpose.msra.mxu0 0.0
    %2403 = vmatpush.xpose.msra.mxu0 0.0
    %2404 = vmatpush.xpose.msra.mxu0 0.0
    %2405 = vmatpush.xpose.msra.mxu0 0.0
    %2406 = vmatpush.xpose.msra.mxu0 0.0
    %2407 = vmatpush.xpose.msra.mxu0 0.0
    %2408 = vmatpush.xpose.msra.mxu0 0.0
    %2409 = vmatpush.xpose.msra.mxu0 0.0
    %2410 = vmatpush.xpose.msra.mxu0 0.0
    %2411 = vmatpush.xpose.msra.mxu0 0.0
    %2412 = vmatpush.xpose.msra.mxu0 0.0
    %2413 = vmatpush.xpose.msra.mxu0 0.0
    %2414 = vmatpush.xpose.msra.mxu0 %v2397
    %2415 = vmatmul.f32.gmra.mxu0 %v2395
    %v2416 = vpop.f32.mrf.mxu0
    %v2417 = vadd.f32 0.0, %v2416
    %2418 = vdwg.mxu0
    %v2419 = vmul.f32 %v2417, 0.35355338
    %v2420 = vadd.f32 %v2419, %v237
    %v2421 = vsel %vm280, %v2420, -inf
    %2422 = vmax.xlane.f32.xlu0 %v2421
    %v2423 = vpop.xlane.xlu0 %2422
    %v2424 = vsub.f32 %v2420, %v2423
    %v2425 = vmul.f32 %v2424, 1.442695
    %v2426 = vpow.pop %v2425
    %v2427 = vsel %vm280, %v2426, 0.0
    %2428 = vadd.xlane.f32.xlu0 %v2427
    %v2429 = vpop.xlane.xlu0 %2428
    %v2430 = vrcp.pop %v2429
    %v2431 = vmul.f32 %v2429, %v2430
    %v2432 = vsub.f32 1.0, %v2431
    %v2433 = vmul.f32 %v2430, %v2432
    %v2434 = vadd.f32 %v2430, %v2433
    %vm2435 = vweird.f32 %v2429
    %vm2436 = vweird.f32 %v2430
    %vm2437 = vmor %vm2435, %vm2436
    %v2438 = vsel %vm2437, %v2430, %v2434
    %v2439 = vand.u32 2147483647, %v2429
    %vm2440 = vcmp.eq.f32.partialorder %v2439, 8.507059e+37
    %v2441 = vand.u32 %v2429, 2147483648
    %v2442 = vor.u32 1.1754944e-38, %v2441
    %v2443 = vsel %vm2440, %v2442, %v2438
    %v2444 = vmul.f32 %v2426, %v2443
    %2445 = vrot.lane.b32.xlu0 %v2056, 64
    %v2446 = vpop.permute.xlu0 %2445
    %v2449 = vsel %vm280, %v2444, 0
    %2451 = vmatpush.msra.mxu0 0.0
    %2452 = vmatpush.msra.mxu0 0.0
    %2453 = vmatpush.msra.mxu0 0.0
    %2454 = vmatpush.msra.mxu0 0.0
    %2455 = vmatpush.msra.mxu0 0.0
    %2456 = vmatpush.msra.mxu0 0.0
    %2457 = vmatpush.msra.mxu0 0.0
    %2458 = vmatpush.msra.mxu0 0.0
    %2459 = vmatpush.msra.mxu0 0.0
    %2460 = vmatpush.msra.mxu0 0.0
    %2461 = vmatpush.msra.mxu0 0.0
    %2462 = vmatpush.msra.mxu0 0.0
    %2463 = vmatpush.msra.mxu0 0.0
    %2464 = vmatpush.msra.mxu0 0.0
    %2465 = vmatpush.msra.mxu0 0.0
    %2466 = vmatpush.msra.mxu0 %v2446
    %2467 = vmatmul.f32.gmra.mxu0 %v2449
    %v2468 = vpop.f32.mrf.mxu0
    %v2469 = vadd.f32 0.0, %v2468
    %2470 = vdwg.mxu0
    %2471 = vrot.lane.b32.xlu0 %v2056, 120
    %v2472 = vpop.permute.xlu0 %2471
    %2473 = vrot.lane.b32.xlu0 %v2056, 88
    %v2474 = vpop.permute.xlu0 %2473
    %v2475 = vsel %vm280, %v2472, 0
    %v2477 = vsel %vm280, %v2474, 0
    %2479 = vmatpush.xpose.msra.mxu0 0.0
    %2480 = vmatpush.xpose.msra.mxu0 0.0
    %2481 = vmatpush.xpose.msra.mxu0 0.0
    %2482 = vmatpush.xpose.msra.mxu0 0.0
    %2483 = vmatpush.xpose.msra.mxu0 0.0
    %2484 = vmatpush.xpose.msra.mxu0 0.0
    %2485 = vmatpush.xpose.msra.mxu0 0.0
    %2486 = vmatpush.xpose.msra.mxu0 0.0
    %2487 = vmatpush.xpose.msra.mxu0 0.0
    %2488 = vmatpush.xpose.msra.mxu0 0.0
    %2489 = vmatpush.xpose.msra.mxu0 0.0
    %2490 = vmatpush.xpose.msra.mxu0 0.0
    %2491 = vmatpush.xpose.msra.mxu0 0.0
    %2492 = vmatpush.xpose.msra.mxu0 0.0
    %2493 = vmatpush.xpose.msra.mxu0 0.0
    %2494 = vmatpush.xpose.msra.mxu0 %v2477
    %2495 = vmatmul.f32.gmra.mxu0 %v2475
    %v2496 = vpop.f32.mrf.mxu0
    %v2497 = vadd.f32 0.0, %v2496
    %2498 = vdwg.mxu0
    %v2499 = vmul.f32 %v2497, 0.35355338
    %v2500 = vadd.f32 %v2499, %v237
    %v2501 = vsel %vm280, %v2500, -inf
    %2502 = vmax.xlane.f32.xlu0 %v2501
    %v2503 = vpop.xlane.xlu0 %2502
    %v2504 = vsub.f32 %v2500, %v2503
    %v2505 = vmul.f32 %v2504, 1.442695
    %v2506 = vpow.pop %v2505
    %v2507 = vsel %vm280, %v2506, 0.0
    %2508 = vadd.xlane.f32.xlu0 %v2507
    %v2509 = vpop.xlane.xlu0 %2508
    %v2510 = vrcp.pop %v2509
    %v2511 = vmul.f32 %v2509, %v2510
    %v2512 = vsub.f32 1.0, %v2511
    %v2513 = vmul.f32 %v2510, %v2512
    %v2514 = vadd.f32 %v2510, %v2513
    %vm2515 = vweird.f32 %v2509
    %vm2516 = vweird.f32 %v2510
    %vm2517 = vmor %vm2515, %vm2516
    %v2518 = vsel %vm2517, %v2510, %v2514
    %v2519 = vand.u32 2147483647, %v2509
    %vm2520 = vcmp.eq.f32.partialorder %v2519, 8.507059e+37
    %v2521 = vand.u32 %v2509, 2147483648
    %v2522 = vor.u32 1.1754944e-38, %v2521
    %v2523 = vsel %vm2520, %v2522, %v2518
    %v2524 = vmul.f32 %v2506, %v2523
    %2525 = vrot.lane.b32.xlu0 %v2056, 56
    %v2526 = vpop.permute.xlu0 %2525
    %v2529 = vsel %vm280, %v2524, 0
    %2531 = vmatpush.msra.mxu0 0.0
    %2532 = vmatpush.msra.mxu0 0.0
    %2533 = vmatpush.msra.mxu0 0.0
    %2534 = vmatpush.msra.mxu0 0.0
    %2535 = vmatpush.msra.mxu0 0.0
    %2536 = vmatpush.msra.mxu0 0.0
    %2537 = vmatpush.msra.mxu0 0.0
    %2538 = vmatpush.msra.mxu0 0.0
    %2539 = vmatpush.msra.mxu0 0.0
    %2540 = vmatpush.msra.mxu0 0.0
    %2541 = vmatpush.msra.mxu0 0.0
    %2542 = vmatpush.msra.mxu0 0.0
    %2543 = vmatpush.msra.mxu0 0.0
    %2544 = vmatpush.msra.mxu0 0.0
    %2545 = vmatpush.msra.mxu0 0.0
    %2546 = vmatpush.msra.mxu0 %v2526
    %2547 = vmatmul.f32.gmra.mxu0 %v2529
    %v2548 = vpop.f32.mrf.mxu0
    %v2549 = vadd.f32 0.0, %v2548
    %2550 = vdwg.mxu0
    %2551 = vrot.lane.b32.xlu0 %v2056, 112
    %v2552 = vpop.permute.xlu0 %2551
    %2553 = vrot.lane.b32.xlu0 %v2056, 80
    %v2554 = vpop.permute.xlu0 %2553
    %v2555 = vsel %vm280, %v2552, 0
    %v2557 = vsel %vm280, %v2554, 0
    %2559 = vmatpush.xpose.msra.mxu0 0.0
    %2560 = vmatpush.xpose.msra.mxu0 0.0
    %2561 = vmatpush.xpose.msra.mxu0 0.0
    %2562 = vmatpush.xpose.msra.mxu0 0.0
    %2563 = vmatpush.xpose.msra.mxu0 0.0
    %2564 = vmatpush.xpose.msra.mxu0 0.0
    %2565 = vmatpush.xpose.msra.mxu0 0.0
    %2566 = vmatpush.xpose.msra.mxu0 0.0
    %2567 = vmatpush.xpose.msra.mxu0 0.0
    %2568 = vmatpush.xpose.msra.mxu0 0.0
    %2569 = vmatpush.xpose.msra.mxu0 0.0
    %2570 = vmatpush.xpose.msra.mxu0 0.0
    %2571 = vmatpush.xpose.msra.mxu0 0.0
    %2572 = vmatpush.xpose.msra.mxu0 0.0
    %2573 = vmatpush.xpose.msra.mxu0 0.0
    %2574 = vmatpush.xpose.msra.mxu0 %v2557
    %2575 = vmatmul.f32.gmra.mxu0 %v2555
    %v2576 = vpop.f32.mrf.mxu0
    %v2577 = vadd.f32 0.0, %v2576
    %2578 = vdwg.mxu0
    %v2579 = vmul.f32 %v2577, 0.35355338
    %v2580 = vadd.f32 %v2579, %v237
    %v2581 = vsel %vm280, %v2580, -inf
    %2582 = vmax.xlane.f32.xlu0 %v2581
    %v2583 = vpop.xlane.xlu0 %2582
    %v2584 = vsub.f32 %v2580, %v2583
    %v2585 = vmul.f32 %v2584, 1.442695
    %v2586 = vpow.pop %v2585
    %v2587 = vsel %vm280, %v2586, 0.0
    %2588 = vadd.xlane.f32.xlu0 %v2587
    %v2589 = vpop.xlane.xlu0 %2588
    %v2590 = vrcp.pop %v2589
    %v2591 = vmul.f32 %v2589, %v2590
    %v2592 = vsub.f32 1.0, %v2591
    %v2593 = vmul.f32 %v2590, %v2592
    %v2594 = vadd.f32 %v2590, %v2593
    %vm2595 = vweird.f32 %v2589
    %vm2596 = vweird.f32 %v2590
    %vm2597 = vmor %vm2595, %vm2596
    %v2598 = vsel %vm2597, %v2590, %v2594
    %v2599 = vand.u32 2147483647, %v2589
    %vm2600 = vcmp.eq.f32.partialorder %v2599, 8.507059e+37
    %v2601 = vand.u32 %v2589, 2147483648
    %v2602 = vor.u32 1.1754944e-38, %v2601
    %v2603 = vsel %vm2600, %v2602, %v2598
    %v2604 = vmul.f32 %v2586, %v2603
    %2605 = vrot.lane.b32.xlu0 %v2056, 48
    %v2606 = vpop.permute.xlu0 %2605
    %v2609 = vsel %vm280, %v2604, 0
    %2611 = vmatpush.msra.mxu0 0.0
    %2612 = vmatpush.msra.mxu0 0.0
    %2613 = vmatpush.msra.mxu0 0.0
    %2614 = vmatpush.msra.mxu0 0.0
    %2615 = vmatpush.msra.mxu0 0.0
    %2616 = vmatpush.msra.mxu0 0.0
    %2617 = vmatpush.msra.mxu0 0.0
    %2618 = vmatpush.msra.mxu0 0.0
    %2619 = vmatpush.msra.mxu0 0.0
    %2620 = vmatpush.msra.mxu0 0.0
    %2621 = vmatpush.msra.mxu0 0.0
    %2622 = vmatpush.msra.mxu0 0.0
    %2623 = vmatpush.msra.mxu0 0.0
    %2624 = vmatpush.msra.mxu0 0.0
    %2625 = vmatpush.msra.mxu0 0.0
    %2626 = vmatpush.msra.mxu0 %v2606
    %2627 = vmatmul.f32.gmra.mxu0 %v2609
    %v2628 = vpop.f32.mrf.mxu0
    %v2629 = vadd.f32 0.0, %v2628
    %2630 = vdwg.mxu0
    %2631 = vrot.lane.b32.xlu0 %v2056, 104
    %v2632 = vpop.permute.xlu0 %2631
    %2633 = vrot.lane.b32.xlu0 %v2056, 72
    %v2634 = vpop.permute.xlu0 %2633
    %v2635 = vsel %vm280, %v2632, 0
    %v2637 = vsel %vm280, %v2634, 0
    %2639 = vmatpush.xpose.msra.mxu0 0.0
    %2640 = vmatpush.xpose.msra.mxu0 0.0
    %2641 = vmatpush.xpose.msra.mxu0 0.0
    %2642 = vmatpush.xpose.msra.mxu0 0.0
    %2643 = vmatpush.xpose.msra.mxu0 0.0
    %2644 = vmatpush.xpose.msra.mxu0 0.0
    %2645 = vmatpush.xpose.msra.mxu0 0.0
    %2646 = vmatpush.xpose.msra.mxu0 0.0
    %2647 = vmatpush.xpose.msra.mxu0 0.0
    %2648 = vmatpush.xpose.msra.mxu0 0.0
    %2649 = vmatpush.xpose.msra.mxu0 0.0
    %2650 = vmatpush.xpose.msra.mxu0 0.0
    %2651 = vmatpush.xpose.msra.mxu0 0.0
    %2652 = vmatpush.xpose.msra.mxu0 0.0
    %2653 = vmatpush.xpose.msra.mxu0 0.0
    %2654 = vmatpush.xpose.msra.mxu0 %v2637
    %2655 = vmatmul.f32.gmra.mxu0 %v2635
    %v2656 = vpop.f32.mrf.mxu0
    %v2657 = vadd.f32 0.0, %v2656
    %2658 = vdwg.mxu0
    %v2659 = vmul.f32 %v2657, 0.35355338
    %v2660 = vadd.f32 %v2659, %v237
    %v2661 = vsel %vm280, %v2660, -inf
    %2662 = vmax.xlane.f32.xlu0 %v2661
    %v2663 = vpop.xlane.xlu0 %2662
    %v2664 = vsub.f32 %v2660, %v2663
    %v2665 = vmul.f32 %v2664, 1.442695
    %v2666 = vpow.pop %v2665
    %v2667 = vsel %vm280, %v2666, 0.0
    %2668 = vadd.xlane.f32.xlu0 %v2667
    %v2669 = vpop.xlane.xlu0 %2668
    %v2670 = vrcp.pop %v2669
    %v2671 = vmul.f32 %v2669, %v2670
    %v2672 = vsub.f32 1.0, %v2671
    %v2673 = vmul.f32 %v2670, %v2672
    %v2674 = vadd.f32 %v2670, %v2673
    %vm2675 = vweird.f32 %v2669
    %vm2676 = vweird.f32 %v2670
    %vm2677 = vmor %vm2675, %vm2676
    %v2678 = vsel %vm2677, %v2670, %v2674
    %v2679 = vand.u32 2147483647, %v2669
    %vm2680 = vcmp.eq.f32.partialorder %v2679, 8.507059e+37
    %v2681 = vand.u32 %v2669, 2147483648
    %v2682 = vor.u32 1.1754944e-38, %v2681
    %v2683 = vsel %vm2680, %v2682, %v2678
    %v2684 = vmul.f32 %v2666, %v2683
    %2685 = vrot.lane.b32.xlu0 %v2056, 40
    %v2686 = vpop.permute.xlu0 %2685
    %v2689 = vsel %vm280, %v2684, 0
    %2691 = vmatpush.msra.mxu0 0.0
    %2692 = vmatpush.msra.mxu0 0.0
    %2693 = vmatpush.msra.mxu0 0.0
    %2694 = vmatpush.msra.mxu0 0.0
    %2695 = vmatpush.msra.mxu0 0.0
    %2696 = vmatpush.msra.mxu0 0.0
    %2697 = vmatpush.msra.mxu0 0.0
    %2698 = vmatpush.msra.mxu0 0.0
    %2699 = vmatpush.msra.mxu0 0.0
    %2700 = vmatpush.msra.mxu0 0.0
    %2701 = vmatpush.msra.mxu0 0.0
    %2702 = vmatpush.msra.mxu0 0.0
    %2703 = vmatpush.msra.mxu0 0.0
    %2704 = vmatpush.msra.mxu0 0.0
    %2705 = vmatpush.msra.mxu0 0.0
    %2706 = vmatpush.msra.mxu0 %v2686
    %2707 = vmatmul.f32.gmra.mxu0 %v2689
    %v2708 = vpop.f32.mrf.mxu0
    %v2709 = vadd.f32 0.0, %v2708
    %2710 = vdwg.mxu0
    %2712 = vrot.lane.b32.xlu0 %v2549, 8
    %v2713 = vpop.permute.xlu0 %2712
    %2716 = vrot.lane.b32.xlu0 %v2629, 16
    %v2717 = vpop.permute.xlu0 %2716
    %2720 = vrot.lane.b32.xlu0 %v2709, 24
    %v2721 = vpop.permute.xlu0 %2720
    %v2723 = vsel %vm280, %v2469, %v2713
    %v2724 = vsel %vm610, %v2723, %v2717
    %v2725 = vsel %vm612, %v2724, %v2721
    %s2726 = scalar_lea.vmem %s7, 32
    %v2727 = vld [vmem:[%s2726] sm:$0xff]
    %v2728 = vld [vmem:[%s2726 + $0x8] sm:$0xff]
    %v2729 = vld [vmem:[%s2726 + $0x10] sm:$0xff]
    %v2730 = vld [vmem:[%s2726 + $0x18] sm:$0xff]
    %s2731 = scalar_lea.vmem %s8, 1
    %v2732 = vld [vmem:[%s2731] sm:$0x1]
    %v2734 = vperm.slane %v2732, 0
    %v2737 = vsel %vm174, %v2391, 0
    %v2740 = vsel %vm174, %v2725, 0
    %2742 = vmatpush.msra.mxu0 0.0
    %2743 = vmatpush.msra.mxu0 0.0
    %2744 = vmatpush.msra.mxu0 0.0
    %2745 = vmatpush.msra.mxu0 0.0
    %2746 = vmatpush.msra.mxu0 0.0
    %2747 = vmatpush.msra.mxu0 0.0
    %2748 = vmatpush.msra.mxu0 0.0
    %2749 = vmatpush.msra.mxu0 0.0
    %2750 = vmatpush.msra.mxu0 0.0
    %2751 = vmatpush.msra.mxu0 0.0
    %2752 = vmatpush.msra.mxu0 0.0
    %2753 = vmatpush.msra.mxu0 0.0
    %2754 = vmatpush.msra.mxu0 %v2730
    %2755 = vmatpush.msra.mxu0 %v2729
    %2756 = vmatpush.msra.mxu0 %v2728
    %2757 = vmatpush.msra.mxu0 %v2727
    %2758 = vmatmul.f32.gmra.mxu0 %v2737
    %v2759 = vpop.f32.mrf.mxu0
    %v2760 = vadd.f32 %v2734, %v2759
    %2761 = vmatmul.f32.gmra.mxu0 %v2740
    %v2762 = vpop.f32.mrf.mxu0
    %v2763 = vadd.f32 %v2734, %v2762
    %2764 = vdwg.mxu0
    %v2765 = vadd.f32 %v2017, %v2760
    %v2766 = vadd.f32 %v2018, %v2763
    %s2767 = scalar_lea.vmem %s15, 1
    %v2768 = vld [vmem:[%s2767] sm:$0x1]
    %s2769 = scalar_lea.vmem %s16, 1
    %v2770 = vld [vmem:[%s2769] sm:$0x1]
    %v2771 = vsel %vm174, %v2765, 0.0
    %2772 = vadd.xlane.f32.xlu0 %v2771
    %v2773 = vpop.xlane.xlu0 %2772
    %v2774 = vsel %vm174, %v2766, 0.0
    %2775 = vadd.xlane.f32.xlu0 %v2774
    %v2776 = vpop.xlane.xlu0 %2775
    %v2777 = vmul.f32 %v2773, %v1001
    %v2778 = vmul.f32 %v2776, %v1001
    %v2779 = vsub.f32 %v2765, %v2777
    %v2780 = vsub.f32 %v2766, %v2778
    %v2781 = vmul.f32 %v2779, %v2779
    %v2782 = vmul.f32 %v2780, %v2780
    %v2783 = vsel %vm174, %v2781, 0.0
    %2784 = vadd.xlane.f32.xlu0 %v2783
    %v2785 = vpop.xlane.xlu0 %2784
    %v2786 = vsel %vm174, %v2782, 0.0
    %2787 = vadd.xlane.f32.xlu0 %v2786
    %v2788 = vpop.xlane.xlu0 %2787
    %v2789 = vmul.f32 %v2785, %v1001
    %v2790 = vmul.f32 %v2788, %v1001
    %v2791 = vadd.f32 %v2789, 1e-05
    %v2792 = vadd.f32 %v2790, 1e-05
    %v2793 = vrsqrt.pop %v2791
    %v2794 = vmul.f32 %v2793, %v2791
    %v2795 = vmul.f32 %v2794, %v2793
    %v2796 = vmul.f32 0.5, %v2795
    %v2797 = vsub.f32 1.5, %v2796
    %v2798 = vmul.f32 %v2793, %v2797
    %vm2799 = vweird.f32 %v2791
    %vm2800 = vweird.f32 %v2793
    %vm2801 = vmor %vm2799, %vm2800
    %v2802 = vsel %vm2801, %v2793, %v2798
    %v2803 = vrsqrt.pop %v2792
    %v2804 = vmul.f32 %v2803, %v2792
    %v2805 = vmul.f32 %v2804, %v2803
    %v2806 = vmul.f32 0.5, %v2805
    %v2807 = vsub.f32 1.5, %v2806
    %v2808 = vmul.f32 %v2803, %v2807
    %vm2809 = vweird.f32 %v2792
    %vm2810 = vweird.f32 %v2803
    %vm2811 = vmor %vm2809, %vm2810
    %v2812 = vsel %vm2811, %v2803, %v2808
    %v2813 = vmul.f32 %v2779, %v2802
    %v2814 = vmul.f32 %v2780, %v2812
    %v2816 = vperm.slane %v2768, 0
    %v2818 = vmul.f32 %v2813, %v2816
    %v2819 = vmul.f32 %v2814, %v2816
    %v2821 = vperm.slane %v2770, 0
    %v2823 = vadd.f32 %v2818, %v2821
    %v2824 = vadd.f32 %v2819, %v2821
    %s2825 = scalar_lea.vmem %s9, 32
    %v2826 = vld [vmem:[%s2825] sm:$0xff]
    %v2827 = vld [vmem:[%s2825 + $0x8] sm:$0xff]
    %v2828 = vld [vmem:[%s2825 + $0x10] sm:$0xff]
    %v2829 = vld [vmem:[%s2825 + $0x18] sm:$0xff]
    %s2830 = scalar_lea.vmem %s10, 1
    %v2831 = vld [vmem:[%s2830] sm:$0x1]
    %v2833 = vperm.slane %v2831, 0
    %v2836 = vsel %vm174, %v2823, 0
    %v2839 = vsel %vm174, %v2824, 0
    %2841 = vmatpush.msra.mxu0 0.0
    %2842 = vmatpush.msra.mxu0 0.0
    %2843 = vmatpush.msra.mxu0 0.0
    %2844 = vmatpush.msra.mxu0 0.0
    %2845 = vmatpush.msra.mxu0 0.0
    %2846 = vmatpush.msra.mxu0 0.0
    %2847 = vmatpush.msra.mxu0 0.0
    %2848 = vmatpush.msra.mxu0 0.0
    %2849 = vmatpush.msra.mxu0 0.0
    %2850 = vmatpush.msra.mxu0 0.0
    %2851 = vmatpush.msra.mxu0 0.0
    %2852 = vmatpush.msra.mxu0 0.0
    %2853 = vmatpush.msra.mxu0 %v2829
    %2854 = vmatpush.msra.mxu0 %v2828
    %2855 = vmatpush.msra.mxu0 %v2827
    %2856 = vmatpush.msra.mxu0 %v2826
    %2857 = vmatmul.f32.gmra.mxu0 %v2836
    %v2858 = vpop.f32.mrf.mxu0
    %v2859 = vadd.f32 %v2833, %v2858
    %2860 = vmatmul.f32.gmra.mxu0 %v2839
    %v2861 = vpop.f32.mrf.mxu0
    %v2862 = vadd.f32 %v2833, %v2861
    %2863 = vdwg.mxu0
    %s2864 = scalar_lea.vmem %s11, 32
    %v2865 = vld [vmem:[%s2864] sm:$0xff]
    %v2866 = vld [vmem:[%s2864 + $0x8] sm:$0xff]
    %v2867 = vld [vmem:[%s2864 + $0x10] sm:$0xff]
    %v2868 = vld [vmem:[%s2864 + $0x18] sm:$0xff]
    %s2869 = scalar_lea.vmem %s12, 1
    %v2870 = vld [vmem:[%s2869] sm:$0x1]
    %v2872 = vperm.slane %v2870, 0
    %2874 = vmatpush.msra.mxu0 0.0
    %2875 = vmatpush.msra.mxu0 0.0
    %2876 = vmatpush.msra.mxu0 0.0
    %2877 = vmatpush.msra.mxu0 0.0
    %2878 = vmatpush.msra.mxu0 0.0
    %2879 = vmatpush.msra.mxu0 0.0
    %2880 = vmatpush.msra.mxu0 0.0
    %2881 = vmatpush.msra.mxu0 0.0
    %2882 = vmatpush.msra.mxu0 0.0
    %2883 = vmatpush.msra.mxu0 0.0
    %2884 = vmatpush.msra.mxu0 0.0
    %2885 = vmatpush.msra.mxu0 0.0
    %2886 = vmatpush.msra.mxu0 %v2868
    %2887 = vmatpush.msra.mxu0 %v2867
    %2888 = vmatpush.msra.mxu0 %v2866
    %2889 = vmatpush.msra.mxu0 %v2865
    %2890 = vmatmul.f32.gmra.mxu0 %v1096
    %v2891 = vpop.f32.mrf.mxu0
    %v2892 = vadd.f32 %v2872, %v2891
    %2893 = vdwg.mxu0
    %v2895 = vsel %vm280, %v2859, 0
    %v2898 = vsel %vm280, %v2892, 0
    %2900 = vmatpush.xpose.msra.mxu0 0.0
    %2901 = vmatpush.xpose.msra.mxu0 0.0
    %2902 = vmatpush.xpose.msra.mxu0 0.0
    %2903 = vmatpush.xpose.msra.mxu0 0.0
    %2904 = vmatpush.xpose.msra.mxu0 0.0
    %2905 = vmatpush.xpose.msra.mxu0 0.0
    %2906 = vmatpush.xpose.msra.mxu0 0.0
    %2907 = vmatpush.xpose.msra.mxu0 0.0
    %2908 = vmatpush.xpose.msra.mxu0 0.0
    %2909 = vmatpush.xpose.msra.mxu0 0.0
    %2910 = vmatpush.xpose.msra.mxu0 0.0
    %2911 = vmatpush.xpose.msra.mxu0 0.0
    %2912 = vmatpush.xpose.msra.mxu0 0.0
    %2913 = vmatpush.xpose.msra.mxu0 0.0
    %2914 = vmatpush.xpose.msra.mxu0 0.0
    %2915 = vmatpush.xpose.msra.mxu0 %v2898
    %2916 = vmatmul.f32.gmra.mxu0 %v2895
    %v2917 = vpop.f32.mrf.mxu0
    %v2918 = vadd.f32 0.0, %v2917
    %2919 = vdwg.mxu0
    %v2920 = vmul.f32 %v2918, 0.35355338
    %v2921 = vsel %vm1145, %v2920, -inf
    %2922 = vmax.xlane.f32.xlu0 %v2921
    %v2923 = vpop.xlane.xlu0 %2922
    %v2924 = vsub.f32 %v2920, %v2923
    %v2925 = vmul.f32 %v2924, 1.442695
    %v2926 = vpow.pop %v2925
    %v2927 = vsel %vm1145, %v2926, 0.0
    %2928 = vadd.xlane.f32.xlu0 %v2927
    %v2929 = vpop.xlane.xlu0 %2928
    %v2930 = vrcp.pop %v2929
    %v2931 = vmul.f32 %v2929, %v2930
    %v2932 = vsub.f32 1.0, %v2931
    %v2933 = vmul.f32 %v2930, %v2932
    %v2934 = vadd.f32 %v2930, %v2933
    %vm2935 = vweird.f32 %v2929
    %vm2936 = vweird.f32 %v2930
    %vm2937 = vmor %vm2935, %vm2936
    %v2938 = vsel %vm2937, %v2930, %v2934
    %v2939 = vand.u32 2147483647, %v2929
    %vm2940 = vcmp.eq.f32.partialorder %v2939, 8.507059e+37
    %v2941 = vand.u32 %v2929, 2147483648
    %v2942 = vor.u32 1.1754944e-38, %v2941
    %v2943 = vsel %vm2940, %v2942, %v2938
    %v2944 = vmul.f32 %v2926, %v2943
    %2945 = vrot.lane.b32.xlu0 %v2892, 96
    %v2946 = vpop.permute.xlu0 %2945
    %v2948 = vsel %vm1145, %v2944, 0
    %v2950 = vsel %vm232, %v2946, 0
    %2952 = vmatpush.msra.mxu0 0.0
    %2953 = vmatpush.msra.mxu0 0.0
    %2954 = vmatpush.msra.mxu0 0.0
    %2955 = vmatpush.msra.mxu0 0.0
    %2956 = vmatpush.msra.mxu0 0.0
    %2957 = vmatpush.msra.mxu0 0.0
    %2958 = vmatpush.msra.mxu0 0.0
    %2959 = vmatpush.msra.mxu0 0.0
    %2960 = vmatpush.msra.mxu0 0.0
    %2961 = vmatpush.msra.mxu0 0.0
    %2962 = vmatpush.msra.mxu0 0.0
    %2963 = vmatpush.msra.mxu0 0.0
    %2964 = vmatpush.msra.mxu0 0.0
    %2965 = vmatpush.msra.mxu0 0.0
    %2966 = vmatpush.msra.mxu0 0.0
    %2967 = vmatpush.msra.mxu0 %v2950
    %2968 = vmatmul.f32.gmra.mxu0 %v2948
    %v2969 = vpop.f32.mrf.mxu0
    %v2970 = vadd.f32 0.0, %v2969
    %2971 = vdwg.mxu0
    %2972 = vrot.lane.b32.xlu0 %v2859, 120
    %v2973 = vpop.permute.xlu0 %2972
    %2974 = vrot.lane.b32.xlu0 %v2892, 120
    %v2975 = vpop.permute.xlu0 %2974
    %v2976 = vsel %vm280, %v2973, 0
    %v2978 = vsel %vm280, %v2975, 0
    %2980 = vmatpush.xpose.msra.mxu0 0.0
    %2981 = vmatpush.xpose.msra.mxu0 0.0
    %2982 = vmatpush.xpose.msra.mxu0 0.0
    %2983 = vmatpush.xpose.msra.mxu0 0.0
    %2984 = vmatpush.xpose.msra.mxu0 0.0
    %2985 = vmatpush.xpose.msra.mxu0 0.0
    %2986 = vmatpush.xpose.msra.mxu0 0.0
    %2987 = vmatpush.xpose.msra.mxu0 0.0
    %2988 = vmatpush.xpose.msra.mxu0 0.0
    %2989 = vmatpush.xpose.msra.mxu0 0.0
    %2990 = vmatpush.xpose.msra.mxu0 0.0
    %2991 = vmatpush.xpose.msra.mxu0 0.0
    %2992 = vmatpush.xpose.msra.mxu0 0.0
    %2993 = vmatpush.xpose.msra.mxu0 0.0
    %2994 = vmatpush.xpose.msra.mxu0 0.0
    %2995 = vmatpush.xpose.msra.mxu0 %v2978
    %2996 = vmatmul.f32.gmra.mxu0 %v2976
    %v2997 = vpop.f32.mrf.mxu0
    %v2998 = vadd.f32 0.0, %v2997
    %2999 = vdwg.mxu0
    %v3000 = vmul.f32 %v2998, 0.35355338
    %v3001 = vsel %vm1145, %v3000, -inf
    %3002 = vmax.xlane.f32.xlu0 %v3001
    %v3003 = vpop.xlane.xlu0 %3002
    %v3004 = vsub.f32 %v3000, %v3003
    %v3005 = vmul.f32 %v3004, 1.442695
    %v3006 = vpow.pop %v3005
    %v3007 = vsel %vm1145, %v3006, 0.0
    %3008 = vadd.xlane.f32.xlu0 %v3007
    %v3009 = vpop.xlane.xlu0 %3008
    %v3010 = vrcp.pop %v3009
    %v3011 = vmul.f32 %v3009, %v3010
    %v3012 = vsub.f32 1.0, %v3011
    %v3013 = vmul.f32 %v3010, %v3012
    %v3014 = vadd.f32 %v3010, %v3013
    %vm3015 = vweird.f32 %v3009
    %vm3016 = vweird.f32 %v3010
    %vm3017 = vmor %vm3015, %vm3016
    %v3018 = vsel %vm3017, %v3010, %v3014
    %v3019 = vand.u32 2147483647, %v3009
    %vm3020 = vcmp.eq.f32.partialorder %v3019, 8.507059e+37
    %v3021 = vand.u32 %v3009, 2147483648
    %v3022 = vor.u32 1.1754944e-38, %v3021
    %v3023 = vsel %vm3020, %v3022, %v3018
    %v3024 = vmul.f32 %v3006, %v3023
    %3025 = vrot.lane.b32.xlu0 %v2892, 88
    %v3026 = vpop.permute.xlu0 %3025
    %v3028 = vsel %vm1145, %v3024, 0
    %v3030 = vsel %vm232, %v3026, 0
    %3032 = vmatpush.msra.mxu0 0.0
    %3033 = vmatpush.msra.mxu0 0.0
    %3034 = vmatpush.msra.mxu0 0.0
    %3035 = vmatpush.msra.mxu0 0.0
    %3036 = vmatpush.msra.mxu0 0.0
    %3037 = vmatpush.msra.mxu0 0.0
    %3038 = vmatpush.msra.mxu0 0.0
    %3039 = vmatpush.msra.mxu0 0.0
    %3040 = vmatpush.msra.mxu0 0.0
    %3041 = vmatpush.msra.mxu0 0.0
    %3042 = vmatpush.msra.mxu0 0.0
    %3043 = vmatpush.msra.mxu0 0.0
    %3044 = vmatpush.msra.mxu0 0.0
    %3045 = vmatpush.msra.mxu0 0.0
    %3046 = vmatpush.msra.mxu0 0.0
    %3047 = vmatpush.msra.mxu0 %v3030
    %3048 = vmatmul.f32.gmra.mxu0 %v3028
    %v3049 = vpop.f32.mrf.mxu0
    %v3050 = vadd.f32 0.0, %v3049
    %3051 = vdwg.mxu0
    %3052 = vrot.lane.b32.xlu0 %v2859, 112
    %v3053 = vpop.permute.xlu0 %3052
    %3054 = vrot.lane.b32.xlu0 %v2892, 112
    %v3055 = vpop.permute.xlu0 %3054
    %v3056 = vsel %vm280, %v3053, 0
    %v3058 = vsel %vm280, %v3055, 0
    %3060 = vmatpush.xpose.msra.mxu0 0.0
    %3061 = vmatpush.xpose.msra.mxu0 0.0
    %3062 = vmatpush.xpose.msra.mxu0 0.0
    %3063 = vmatpush.xpose.msra.mxu0 0.0
    %3064 = vmatpush.xpose.msra.mxu0 0.0
    %3065 = vmatpush.xpose.msra.mxu0 0.0
    %3066 = vmatpush.xpose.msra.mxu0 0.0
    %3067 = vmatpush.xpose.msra.mxu0 0.0
    %3068 = vmatpush.xpose.msra.mxu0 0.0
    %3069 = vmatpush.xpose.msra.mxu0 0.0
    %3070 = vmatpush.xpose.msra.mxu0 0.0
    %3071 = vmatpush.xpose.msra.mxu0 0.0
    %3072 = vmatpush.xpose.msra.mxu0 0.0
    %3073 = vmatpush.xpose.msra.mxu0 0.0
    %3074 = vmatpush.xpose.msra.mxu0 0.0
    %3075 = vmatpush.xpose.msra.mxu0 %v3058
    %3076 = vmatmul.f32.gmra.mxu0 %v3056
    %v3077 = vpop.f32.mrf.mxu0
    %v3078 = vadd.f32 0.0, %v3077
    %3079 = vdwg.mxu0
    %v3080 = vmul.f32 %v3078, 0.35355338
    %v3081 = vsel %vm1145, %v3080, -inf
    %3082 = vmax.xlane.f32.xlu0 %v3081
    %v3083 = vpop.xlane.xlu0 %3082
    %v3084 = vsub.f32 %v3080, %v3083
    %v3085 = vmul.f32 %v3084, 1.442695
    %v3086 = vpow.pop %v3085
    %v3087 = vsel %vm1145, %v3086, 0.0
    %3088 = vadd.xlane.f32.xlu0 %v3087
    %v3089 = vpop.xlane.xlu0 %3088
    %v3090 = vrcp.pop %v3089
    %v3091 = vmul.f32 %v3089, %v3090
    %v3092 = vsub.f32 1.0, %v3091
    %v3093 = vmul.f32 %v3090, %v3092
    %v3094 = vadd.f32 %v3090, %v3093
    %vm3095 = vweird.f32 %v3089
    %vm3096 = vweird.f32 %v3090
    %vm3097 = vmor %vm3095, %vm3096
    %v3098 = vsel %vm3097, %v3090, %v3094
    %v3099 = vand.u32 2147483647, %v3089
    %vm3100 = vcmp.eq.f32.partialorder %v3099, 8.507059e+37
    %v3101 = vand.u32 %v3089, 2147483648
    %v3102 = vor.u32 1.1754944e-38, %v3101
    %v3103 = vsel %vm3100, %v3102, %v3098
    %v3104 = vmul.f32 %v3086, %v3103
    %3105 = vrot.lane.b32.xlu0 %v2892, 80
    %v3106 = vpop.permute.xlu0 %3105
    %v3108 = vsel %vm1145, %v3104, 0
    %v3110 = vsel %vm232, %v3106, 0
    %3112 = vmatpush.msra.mxu0 0.0
    %3113 = vmatpush.msra.mxu0 0.0
    %3114 = vmatpush.msra.mxu0 0.0
    %3115 = vmatpush.msra.mxu0 0.0
    %3116 = vmatpush.msra.mxu0 0.0
    %3117 = vmatpush.msra.mxu0 0.0
    %3118 = vmatpush.msra.mxu0 0.0
    %3119 = vmatpush.msra.mxu0 0.0
    %3120 = vmatpush.msra.mxu0 0.0
    %3121 = vmatpush.msra.mxu0 0.0
    %3122 = vmatpush.msra.mxu0 0.0
    %3123 = vmatpush.msra.mxu0 0.0
    %3124 = vmatpush.msra.mxu0 0.0
    %3125 = vmatpush.msra.mxu0 0.0
    %3126 = vmatpush.msra.mxu0 0.0
    %3127 = vmatpush.msra.mxu0 %v3110
    %3128 = vmatmul.f32.gmra.mxu0 %v3108
    %v3129 = vpop.f32.mrf.mxu0
    %v3130 = vadd.f32 0.0, %v3129
    %3131 = vdwg.mxu0
    %3132 = vrot.lane.b32.xlu0 %v2859, 104
    %v3133 = vpop.permute.xlu0 %3132
    %3134 = vrot.lane.b32.xlu0 %v2892, 104
    %v3135 = vpop.permute.xlu0 %3134
    %v3136 = vsel %vm280, %v3133, 0
    %v3138 = vsel %vm280, %v3135, 0
    %3140 = vmatpush.xpose.msra.mxu0 0.0
    %3141 = vmatpush.xpose.msra.mxu0 0.0
    %3142 = vmatpush.xpose.msra.mxu0 0.0
    %3143 = vmatpush.xpose.msra.mxu0 0.0
    %3144 = vmatpush.xpose.msra.mxu0 0.0
    %3145 = vmatpush.xpose.msra.mxu0 0.0
    %3146 = vmatpush.xpose.msra.mxu0 0.0
    %3147 = vmatpush.xpose.msra.mxu0 0.0
    %3148 = vmatpush.xpose.msra.mxu0 0.0
    %3149 = vmatpush.xpose.msra.mxu0 0.0
    %3150 = vmatpush.xpose.msra.mxu0 0.0
    %3151 = vmatpush.xpose.msra.mxu0 0.0
    %3152 = vmatpush.xpose.msra.mxu0 0.0
    %3153 = vmatpush.xpose.msra.mxu0 0.0
    %3154 = vmatpush.xpose.msra.mxu0 0.0
    %3155 = vmatpush.xpose.msra.mxu0 %v3138
    %3156 = vmatmul.f32.gmra.mxu0 %v3136
    %v3157 = vpop.f32.mrf.mxu0
    %v3158 = vadd.f32 0.0, %v3157
    %3159 = vdwg.mxu0
    %v3160 = vmul.f32 %v3158, 0.35355338
    %v3161 = vsel %vm1145, %v3160, -inf
    %3162 = vmax.xlane.f32.xlu0 %v3161
    %v3163 = vpop.xlane.xlu0 %3162
    %v3164 = vsub.f32 %v3160, %v3163
    %v3165 = vmul.f32 %v3164, 1.442695
    %v3166 = vpow.pop %v3165
    %v3167 = vsel %vm1145, %v3166, 0.0
    %3168 = vadd.xlane.f32.xlu0 %v3167
    %v3169 = vpop.xlane.xlu0 %3168
    %v3170 = vrcp.pop %v3169
    %v3171 = vmul.f32 %v3169, %v3170
    %v3172 = vsub.f32 1.0, %v3171
    %v3173 = vmul.f32 %v3170, %v3172
    %v3174 = vadd.f32 %v3170, %v3173
    %vm3175 = vweird.f32 %v3169
    %vm3176 = vweird.f32 %v3170
    %vm3177 = vmor %vm3175, %vm3176
    %v3178 = vsel %vm3177, %v3170, %v3174
    %v3179 = vand.u32 2147483647, %v3169
    %vm3180 = vcmp.eq.f32.partialorder %v3179, 8.507059e+37
    %v3181 = vand.u32 %v3169, 2147483648
    %v3182 = vor.u32 1.1754944e-38, %v3181
    %v3183 = vsel %vm3180, %v3182, %v3178
    %v3184 = vmul.f32 %v3166, %v3183
    %3185 = vrot.lane.b32.xlu0 %v2892, 72
    %v3186 = vpop.permute.xlu0 %3185
    %v3188 = vsel %vm1145, %v3184, 0
    %v3190 = vsel %vm232, %v3186, 0
    %3192 = vmatpush.msra.mxu0 0.0
    %3193 = vmatpush.msra.mxu0 0.0
    %3194 = vmatpush.msra.mxu0 0.0
    %3195 = vmatpush.msra.mxu0 0.0
    %3196 = vmatpush.msra.mxu0 0.0
    %3197 = vmatpush.msra.mxu0 0.0
    %3198 = vmatpush.msra.mxu0 0.0
    %3199 = vmatpush.msra.mxu0 0.0
    %3200 = vmatpush.msra.mxu0 0.0
    %3201 = vmatpush.msra.mxu0 0.0
    %3202 = vmatpush.msra.mxu0 0.0
    %3203 = vmatpush.msra.mxu0 0.0
    %3204 = vmatpush.msra.mxu0 0.0
    %3205 = vmatpush.msra.mxu0 0.0
    %3206 = vmatpush.msra.mxu0 0.0
    %3207 = vmatpush.msra.mxu0 %v3190
    %3208 = vmatmul.f32.gmra.mxu0 %v3188
    %v3209 = vpop.f32.mrf.mxu0
    %v3210 = vadd.f32 0.0, %v3209
    %3211 = vdwg.mxu0
    %3213 = vrot.lane.b32.xlu0 %v3050, 8
    %v3214 = vpop.permute.xlu0 %3213
    %3217 = vrot.lane.b32.xlu0 %v3130, 16
    %v3218 = vpop.permute.xlu0 %3217
    %3221 = vrot.lane.b32.xlu0 %v3210, 24
    %v3222 = vpop.permute.xlu0 %3221
    %v3224 = vsel %vm280, %v2970, %v3214
    %v3225 = vsel %vm610, %v3224, %v3218
    %v3226 = vsel %vm612, %v3225, %v3222
    %v3227 = vrot.slane %v2892, 2
    %v3229 = vsel %vm280, %v2862, 0
    %v3231 = vsel %vm280, %v3227, 0
    %3233 = vmatpush.xpose.msra.mxu0 0.0
    %3234 = vmatpush.xpose.msra.mxu0 0.0
    %3235 = vmatpush.xpose.msra.mxu0 0.0
    %3236 = vmatpush.xpose.msra.mxu0 0.0
    %3237 = vmatpush.xpose.msra.mxu0 0.0
    %3238 = vmatpush.xpose.msra.mxu0 0.0
    %3239 = vmatpush.xpose.msra.mxu0 0.0
    %3240 = vmatpush.xpose.msra.mxu0 0.0
    %3241 = vmatpush.xpose.msra.mxu0 0.0
    %3242 = vmatpush.xpose.msra.mxu0 0.0
    %3243 = vmatpush.xpose.msra.mxu0 0.0
    %3244 = vmatpush.xpose.msra.mxu0 0.0
    %3245 = vmatpush.xpose.msra.mxu0 0.0
    %3246 = vmatpush.xpose.msra.mxu0 0.0
    %3247 = vmatpush.xpose.msra.mxu0 0.0
    %3248 = vmatpush.xpose.msra.mxu0 %v3231
    %3249 = vmatmul.f32.gmra.mxu0 %v3229
    %v3250 = vpop.f32.mrf.mxu0
    %v3251 = vadd.f32 0.0, %v3250
    %3252 = vdwg.mxu0
    %v3253 = vmul.f32 %v3251, 0.35355338
    %v3254 = vsel %vm1145, %v3253, -inf
    %3255 = vmax.xlane.f32.xlu0 %v3254
    %v3256 = vpop.xlane.xlu0 %3255
    %v3257 = vsub.f32 %v3253, %v3256
    %v3258 = vmul.f32 %v3257, 1.442695
    %v3259 = vpow.pop %v3258
    %v3260 = vsel %vm1145, %v3259, 0.0
    %3261 = vadd.xlane.f32.xlu0 %v3260
    %v3262 = vpop.xlane.xlu0 %3261
    %v3263 = vrcp.pop %v3262
    %v3264 = vmul.f32 %v3262, %v3263
    %v3265 = vsub.f32 1.0, %v3264
    %v3266 = vmul.f32 %v3263, %v3265
    %v3267 = vadd.f32 %v3263, %v3266
    %vm3268 = vweird.f32 %v3262
    %vm3269 = vweird.f32 %v3263
    %vm3270 = vmor %vm3268, %vm3269
    %v3271 = vsel %vm3270, %v3263, %v3267
    %v3272 = vand.u32 2147483647, %v3262
    %vm3273 = vcmp.eq.f32.partialorder %v3272, 8.507059e+37
    %v3274 = vand.u32 %v3262, 2147483648
    %v3275 = vor.u32 1.1754944e-38, %v3274
    %v3276 = vsel %vm3273, %v3275, %v3271
    %v3277 = vmul.f32 %v3259, %v3276
    %3278 = vrot.lane.b32.xlu0 %v3227, 96
    %v3279 = vpop.permute.xlu0 %3278
    %v3281 = vsel %vm1145, %v3277, 0
    %v3283 = vsel %vm232, %v3279, 0
    %3285 = vmatpush.msra.mxu0 0.0
    %3286 = vmatpush.msra.mxu0 0.0
    %3287 = vmatpush.msra.mxu0 0.0
    %3288 = vmatpush.msra.mxu0 0.0
    %3289 = vmatpush.msra.mxu0 0.0
    %3290 = vmatpush.msra.mxu0 0.0
    %3291 = vmatpush.msra.mxu0 0.0
    %3292 = vmatpush.msra.mxu0 0.0
    %3293 = vmatpush.msra.mxu0 0.0
    %3294 = vmatpush.msra.mxu0 0.0
    %3295 = vmatpush.msra.mxu0 0.0
    %3296 = vmatpush.msra.mxu0 0.0
    %3297 = vmatpush.msra.mxu0 0.0
    %3298 = vmatpush.msra.mxu0 0.0
    %3299 = vmatpush.msra.mxu0 0.0
    %3300 = vmatpush.msra.mxu0 %v3283
    %3301 = vmatmul.f32.gmra.mxu0 %v3281
    %v3302 = vpop.f32.mrf.mxu0
    %v3303 = vadd.f32 0.0, %v3302
    %3304 = vdwg.mxu0
    %3305 = vrot.lane.b32.xlu0 %v2862, 120
    %v3306 = vpop.permute.xlu0 %3305
    %3307 = vrot.lane.b32.xlu0 %v3227, 120
    %v3308 = vpop.permute.xlu0 %3307
    %v3309 = vsel %vm280, %v3306, 0
    %v3311 = vsel %vm280, %v3308, 0
    %3313 = vmatpush.xpose.msra.mxu0 0.0
    %3314 = vmatpush.xpose.msra.mxu0 0.0
    %3315 = vmatpush.xpose.msra.mxu0 0.0
    %3316 = vmatpush.xpose.msra.mxu0 0.0
    %3317 = vmatpush.xpose.msra.mxu0 0.0
    %3318 = vmatpush.xpose.msra.mxu0 0.0
    %3319 = vmatpush.xpose.msra.mxu0 0.0
    %3320 = vmatpush.xpose.msra.mxu0 0.0
    %3321 = vmatpush.xpose.msra.mxu0 0.0
    %3322 = vmatpush.xpose.msra.mxu0 0.0
    %3323 = vmatpush.xpose.msra.mxu0 0.0
    %3324 = vmatpush.xpose.msra.mxu0 0.0
    %3325 = vmatpush.xpose.msra.mxu0 0.0
    %3326 = vmatpush.xpose.msra.mxu0 0.0
    %3327 = vmatpush.xpose.msra.mxu0 0.0
    %3328 = vmatpush.xpose.msra.mxu0 %v3311
    %3329 = vmatmul.f32.gmra.mxu0 %v3309
    %v3330 = vpop.f32.mrf.mxu0
    %v3331 = vadd.f32 0.0, %v3330
    %3332 = vdwg.mxu0
    %v3333 = vmul.f32 %v3331, 0.35355338
    %v3334 = vsel %vm1145, %v3333, -inf
    %3335 = vmax.xlane.f32.xlu0 %v3334
    %v3336 = vpop.xlane.xlu0 %3335
    %v3337 = vsub.f32 %v3333, %v3336
    %v3338 = vmul.f32 %v3337, 1.442695
    %v3339 = vpow.pop %v3338
    %v3340 = vsel %vm1145, %v3339, 0.0
    %3341 = vadd.xlane.f32.xlu0 %v3340
    %v3342 = vpop.xlane.xlu0 %3341
    %v3343 = vrcp.pop %v3342
    %v3344 = vmul.f32 %v3342, %v3343
    %v3345 = vsub.f32 1.0, %v3344
    %v3346 = vmul.f32 %v3343, %v3345
    %v3347 = vadd.f32 %v3343, %v3346
    %vm3348 = vweird.f32 %v3342
    %vm3349 = vweird.f32 %v3343
    %vm3350 = vmor %vm3348, %vm3349
    %v3351 = vsel %vm3350, %v3343, %v3347
    %v3352 = vand.u32 2147483647, %v3342
    %vm3353 = vcmp.eq.f32.partialorder %v3352, 8.507059e+37
    %v3354 = vand.u32 %v3342, 2147483648
    %v3355 = vor.u32 1.1754944e-38, %v3354
    %v3356 = vsel %vm3353, %v3355, %v3351
    %v3357 = vmul.f32 %v3339, %v3356
    %3358 = vrot.lane.b32.xlu0 %v3227, 88
    %v3359 = vpop.permute.xlu0 %3358
    %v3361 = vsel %vm1145, %v3357, 0
    %v3363 = vsel %vm232, %v3359, 0
    %3365 = vmatpush.msra.mxu0 0.0
    %3366 = vmatpush.msra.mxu0 0.0
    %3367 = vmatpush.msra.mxu0 0.0
    %3368 = vmatpush.msra.mxu0 0.0
    %3369 = vmatpush.msra.mxu0 0.0
    %3370 = vmatpush.msra.mxu0 0.0
    %3371 = vmatpush.msra.mxu0 0.0
    %3372 = vmatpush.msra.mxu0 0.0
    %3373 = vmatpush.msra.mxu0 0.0
    %3374 = vmatpush.msra.mxu0 0.0
    %3375 = vmatpush.msra.mxu0 0.0
    %3376 = vmatpush.msra.mxu0 0.0
    %3377 = vmatpush.msra.mxu0 0.0
    %3378 = vmatpush.msra.mxu0 0.0
    %3379 = vmatpush.msra.mxu0 0.0
    %3380 = vmatpush.msra.mxu0 %v3363
    %3381 = vmatmul.f32.gmra.mxu0 %v3361
    %v3382 = vpop.f32.mrf.mxu0
    %v3383 = vadd.f32 0.0, %v3382
    %3384 = vdwg.mxu0
    %3385 = vrot.lane.b32.xlu0 %v2862, 112
    %v3386 = vpop.permute.xlu0 %3385
    %3387 = vrot.lane.b32.xlu0 %v3227, 112
    %v3388 = vpop.permute.xlu0 %3387
    %v3389 = vsel %vm280, %v3386, 0
    %v3391 = vsel %vm280, %v3388, 0
    %3393 = vmatpush.xpose.msra.mxu0 0.0
    %3394 = vmatpush.xpose.msra.mxu0 0.0
    %3395 = vmatpush.xpose.msra.mxu0 0.0
    %3396 = vmatpush.xpose.msra.mxu0 0.0
    %3397 = vmatpush.xpose.msra.mxu0 0.0
    %3398 = vmatpush.xpose.msra.mxu0 0.0
    %3399 = vmatpush.xpose.msra.mxu0 0.0
    %3400 = vmatpush.xpose.msra.mxu0 0.0
    %3401 = vmatpush.xpose.msra.mxu0 0.0
    %3402 = vmatpush.xpose.msra.mxu0 0.0
    %3403 = vmatpush.xpose.msra.mxu0 0.0
    %3404 = vmatpush.xpose.msra.mxu0 0.0
    %3405 = vmatpush.xpose.msra.mxu0 0.0
    %3406 = vmatpush.xpose.msra.mxu0 0.0
    %3407 = vmatpush.xpose.msra.mxu0 0.0
    %3408 = vmatpush.xpose.msra.mxu0 %v3391
    %3409 = vmatmul.f32.gmra.mxu0 %v3389
    %v3410 = vpop.f32.mrf.mxu0
    %v3411 = vadd.f32 0.0, %v3410
    %3412 = vdwg.mxu0
    %v3413 = vmul.f32 %v3411, 0.35355338
    %v3414 = vsel %vm1145, %v3413, -inf
    %3415 = vmax.xlane.f32.xlu0 %v3414
    %v3416 = vpop.xlane.xlu0 %3415
    %v3417 = vsub.f32 %v3413, %v3416
    %v3418 = vmul.f32 %v3417, 1.442695
    %v3419 = vpow.pop %v3418
    %v3420 = vsel %vm1145, %v3419, 0.0
    %3421 = vadd.xlane.f32.xlu0 %v3420
    %v3422 = vpop.xlane.xlu0 %3421
    %v3423 = vrcp.pop %v3422
    %v3424 = vmul.f32 %v3422, %v3423
    %v3425 = vsub.f32 1.0, %v3424
    %v3426 = vmul.f32 %v3423, %v3425
    %v3427 = vadd.f32 %v3423, %v3426
    %vm3428 = vweird.f32 %v3422
    %vm3429 = vweird.f32 %v3423
    %vm3430 = vmor %vm3428, %vm3429
    %v3431 = vsel %vm3430, %v3423, %v3427
    %v3432 = vand.u32 2147483647, %v3422
    %vm3433 = vcmp.eq.f32.partialorder %v3432, 8.507059e+37
    %v3434 = vand.u32 %v3422, 2147483648
    %v3435 = vor.u32 1.1754944e-38, %v3434
    %v3436 = vsel %vm3433, %v3435, %v3431
    %v3437 = vmul.f32 %v3419, %v3436
    %3438 = vrot.lane.b32.xlu0 %v3227, 80
    %v3439 = vpop.permute.xlu0 %3438
    %v3441 = vsel %vm1145, %v3437, 0
    %v3443 = vsel %vm232, %v3439, 0
    %3445 = vmatpush.msra.mxu0 0.0
    %3446 = vmatpush.msra.mxu0 0.0
    %3447 = vmatpush.msra.mxu0 0.0
    %3448 = vmatpush.msra.mxu0 0.0
    %3449 = vmatpush.msra.mxu0 0.0
    %3450 = vmatpush.msra.mxu0 0.0
    %3451 = vmatpush.msra.mxu0 0.0
    %3452 = vmatpush.msra.mxu0 0.0
    %3453 = vmatpush.msra.mxu0 0.0
    %3454 = vmatpush.msra.mxu0 0.0
    %3455 = vmatpush.msra.mxu0 0.0
    %3456 = vmatpush.msra.mxu0 0.0
    %3457 = vmatpush.msra.mxu0 0.0
    %3458 = vmatpush.msra.mxu0 0.0
    %3459 = vmatpush.msra.mxu0 0.0
    %3460 = vmatpush.msra.mxu0 %v3443
    %3461 = vmatmul.f32.gmra.mxu0 %v3441
    %v3462 = vpop.f32.mrf.mxu0
    %v3463 = vadd.f32 0.0, %v3462
    %3464 = vdwg.mxu0
    %3465 = vrot.lane.b32.xlu0 %v2862, 104
    %v3466 = vpop.permute.xlu0 %3465
    %3467 = vrot.lane.b32.xlu0 %v3227, 104
    %v3468 = vpop.permute.xlu0 %3467
    %v3469 = vsel %vm280, %v3466, 0
    %v3471 = vsel %vm280, %v3468, 0
    %3473 = vmatpush.xpose.msra.mxu0 0.0
    %3474 = vmatpush.xpose.msra.mxu0 0.0
    %3475 = vmatpush.xpose.msra.mxu0 0.0
    %3476 = vmatpush.xpose.msra.mxu0 0.0
    %3477 = vmatpush.xpose.msra.mxu0 0.0
    %3478 = vmatpush.xpose.msra.mxu0 0.0
    %3479 = vmatpush.xpose.msra.mxu0 0.0
    %3480 = vmatpush.xpose.msra.mxu0 0.0
    %3481 = vmatpush.xpose.msra.mxu0 0.0
    %3482 = vmatpush.xpose.msra.mxu0 0.0
    %3483 = vmatpush.xpose.msra.mxu0 0.0
    %3484 = vmatpush.xpose.msra.mxu0 0.0
    %3485 = vmatpush.xpose.msra.mxu0 0.0
    %3486 = vmatpush.xpose.msra.mxu0 0.0
    %3487 = vmatpush.xpose.msra.mxu0 0.0
    %3488 = vmatpush.xpose.msra.mxu0 %v3471
    %3489 = vmatmul.f32.gmra.mxu0 %v3469
    %v3490 = vpop.f32.mrf.mxu0
    %v3491 = vadd.f32 0.0, %v3490
    %3492 = vdwg.mxu0
    %v3493 = vmul.f32 %v3491, 0.35355338
    %v3494 = vsel %vm1145, %v3493, -inf
    %3495 = vmax.xlane.f32.xlu0 %v3494
    %v3496 = vpop.xlane.xlu0 %3495
    %v3497 = vsub.f32 %v3493, %v3496
    %v3498 = vmul.f32 %v3497, 1.442695
    %v3499 = vpow.pop %v3498
    %v3500 = vsel %vm1145, %v3499, 0.0
    %3501 = vadd.xlane.f32.xlu0 %v3500
    %v3502 = vpop.xlane.xlu0 %3501
    %v3503 = vrcp.pop %v3502
    %v3504 = vmul.f32 %v3502, %v3503
    %v3505 = vsub.f32 1.0, %v3504
    %v3506 = vmul.f32 %v3503, %v3505
    %v3507 = vadd.f32 %v3503, %v3506
    %vm3508 = vweird.f32 %v3502
    %vm3509 = vweird.f32 %v3503
    %vm3510 = vmor %vm3508, %vm3509
    %v3511 = vsel %vm3510, %v3503, %v3507
    %v3512 = vand.u32 2147483647, %v3502
    %vm3513 = vcmp.eq.f32.partialorder %v3512, 8.507059e+37
    %v3514 = vand.u32 %v3502, 2147483648
    %v3515 = vor.u32 1.1754944e-38, %v3514
    %v3516 = vsel %vm3513, %v3515, %v3511
    %v3517 = vmul.f32 %v3499, %v3516
    %3518 = vrot.lane.b32.xlu0 %v3227, 72
    %v3519 = vpop.permute.xlu0 %3518
    %v3521 = vsel %vm1145, %v3517, 0
    %v3523 = vsel %vm232, %v3519, 0
    %3525 = vmatpush.msra.mxu0 0.0
    %3526 = vmatpush.msra.mxu0 0.0
    %3527 = vmatpush.msra.mxu0 0.0
    %3528 = vmatpush.msra.mxu0 0.0
    %3529 = vmatpush.msra.mxu0 0.0
    %3530 = vmatpush.msra.mxu0 0.0
    %3531 = vmatpush.msra.mxu0 0.0
    %3532 = vmatpush.msra.mxu0 0.0
    %3533 = vmatpush.msra.mxu0 0.0
    %3534 = vmatpush.msra.mxu0 0.0
    %3535 = vmatpush.msra.mxu0 0.0
    %3536 = vmatpush.msra.mxu0 0.0
    %3537 = vmatpush.msra.mxu0 0.0
    %3538 = vmatpush.msra.mxu0 0.0
    %3539 = vmatpush.msra.mxu0 0.0
    %3540 = vmatpush.msra.mxu0 %v3523
    %3541 = vmatmul.f32.gmra.mxu0 %v3521
    %v3542 = vpop.f32.mrf.mxu0
    %v3543 = vadd.f32 0.0, %v3542
    %3544 = vdwg.mxu0
    %3546 = vrot.lane.b32.xlu0 %v3383, 8
    %v3547 = vpop.permute.xlu0 %3546
    %3550 = vrot.lane.b32.xlu0 %v3463, 16
    %v3551 = vpop.permute.xlu0 %3550
    %3554 = vrot.lane.b32.xlu0 %v3543, 24
    %v3555 = vpop.permute.xlu0 %3554
    %v3557 = vsel %vm280, %v3303, %v3547
    %v3558 = vsel %vm610, %v3557, %v3551
    %v3559 = vsel %vm612, %v3558, %v3555
    %s3560 = scalar_lea.vmem %s13, 32
    %v3561 = vld [vmem:[%s3560] sm:$0xff]
    %v3562 = vld [vmem:[%s3560 + $0x8] sm:$0xff]
    %v3563 = vld [vmem:[%s3560 + $0x10] sm:$0xff]
    %v3564 = vld [vmem:[%s3560 + $0x18] sm:$0xff]
    %s3565 = scalar_lea.vmem %s14, 1
    %v3566 = vld [vmem:[%s3565] sm:$0x1]
    %v3568 = vperm.slane %v3566, 0
    %v3571 = vsel %vm174, %v3226, 0
    %v3574 = vsel %vm174, %v3559, 0
    %3576 = vmatpush.msra.mxu0 0.0
    %3577 = vmatpush.msra.mxu0 0.0
    %3578 = vmatpush.msra.mxu0 0.0
    %3579 = vmatpush.msra.mxu0 0.0
    %3580 = vmatpush.msra.mxu0 0.0
    %3581 = vmatpush.msra.mxu0 0.0
    %3582 = vmatpush.msra.mxu0 0.0
    %3583 = vmatpush.msra.mxu0 0.0
    %3584 = vmatpush.msra.mxu0 0.0
    %3585 = vmatpush.msra.mxu0 0.0
    %3586 = vmatpush.msra.mxu0 0.0
    %3587 = vmatpush.msra.mxu0 0.0
    %3588 = vmatpush.msra.mxu0 %v3564
    %3589 = vmatpush.msra.mxu0 %v3563
    %3590 = vmatpush.msra.mxu0 %v3562
    %3591 = vmatpush.msra.mxu0 %v3561
    %3592 = vmatmul.f32.gmra.mxu0 %v3571
    %v3593 = vpop.f32.mrf.mxu0
    %v3594 = vadd.f32 %v3568, %v3593
    %3595 = vmatmul.f32.gmra.mxu0 %v3574
    %v3596 = vpop.f32.mrf.mxu0
    %v3597 = vadd.f32 %v3568, %v3596
    %3598 = vdwg.mxu0
    %v3599 = vadd.f32 %v2823, %v3594
    %v3600 = vadd.f32 %v2824, %v3597
    %s3601 = scalar_lea.vmem %s17, 1
    %v3602 = vld [vmem:[%s3601] sm:$0x1]
    %s3603 = scalar_lea.vmem %s18, 1
    %v3604 = vld [vmem:[%s3603] sm:$0x1]
    %v3605 = vsel %vm174, %v3599, 0.0
    %3606 = vadd.xlane.f32.xlu0 %v3605
    %v3607 = vpop.xlane.xlu0 %3606
    %v3608 = vsel %vm174, %v3600, 0.0
    %3609 = vadd.xlane.f32.xlu0 %v3608
    %v3610 = vpop.xlane.xlu0 %3609
    %v3611 = vmul.f32 %v3607, %v1001
    %v3612 = vmul.f32 %v3610, %v1001
    %v3613 = vsub.f32 %v3599, %v3611
    %v3614 = vsub.f32 %v3600, %v3612
    %v3615 = vmul.f32 %v3613, %v3613
    %v3616 = vmul.f32 %v3614, %v3614
    %v3617 = vsel %vm174, %v3615, 0.0
    %3618 = vadd.xlane.f32.xlu0 %v3617
    %v3619 = vpop.xlane.xlu0 %3618
    %v3620 = vsel %vm174, %v3616, 0.0
    %3621 = vadd.xlane.f32.xlu0 %v3620
    %v3622 = vpop.xlane.xlu0 %3621
    %v3623 = vmul.f32 %v3619, %v1001
    %v3624 = vmul.f32 %v3622, %v1001
    %v3625 = vadd.f32 %v3623, 1e-05
    %v3626 = vadd.f32 %v3624, 1e-05
    %v3627 = vrsqrt.pop %v3625
    %v3628 = vmul.f32 %v3627, %v3625
    %v3629 = vmul.f32 %v3628, %v3627
    %v3630 = vmul.f32 0.5, %v3629
    %v3631 = vsub.f32 1.5, %v3630
    %v3632 = vmul.f32 %v3627, %v3631
    %vm3633 = vweird.f32 %v3625
    %vm3634 = vweird.f32 %v3627
    %vm3635 = vmor %vm3633, %vm3634
    %v3636 = vsel %vm3635, %v3627, %v3632
    %v3637 = vrsqrt.pop %v3626
    %v3638 = vmul.f32 %v3637, %v3626
    %v3639 = vmul.f32 %v3638, %v3637
    %v3640 = vmul.f32 0.5, %v3639
    %v3641 = vsub.f32 1.5, %v3640
    %v3642 = vmul.f32 %v3637, %v3641
    %vm3643 = vweird.f32 %v3626
    %vm3644 = vweird.f32 %v3637
    %vm3645 = vmor %vm3643, %vm3644
    %v3646 = vsel %vm3645, %v3637, %v3642
    %v3647 = vmul.f32 %v3613, %v3636
    %v3648 = vmul.f32 %v3614, %v3646
    %v3650 = vperm.slane %v3602, 0
    %v3652 = vmul.f32 %v3647, %v3650
    %v3653 = vmul.f32 %v3648, %v3650
    %v3655 = vperm.slane %v3604, 0
    %v3657 = vadd.f32 %v3652, %v3655
    %v3658 = vadd.f32 %v3653, %v3655
    %s3659 = scalar_lea.vmem %s21, 32
    %v3660 = vld [vmem:[%s3659] sm:$0xff]
    %v3661 = vld [vmem:[%s3659 + $0x8] sm:$0xff]
    %v3662 = vld [vmem:[%s3659 + $0x10] sm:$0xff]
    %v3663 = vld [vmem:[%s3659 + $0x18] sm:$0xff]
    %s3664 = scalar_lea.vmem %s22, 1
    %v3665 = vld [vmem:[%s3664] sm:$0x1]
    %v3667 = vperm.slane %v3665, 0
    %v3670 = vsel %vm174, %v3657, 0
    %v3673 = vsel %vm174, %v3658, 0
    %3675 = vmatpush.msra.mxu0 0.0
    %3676 = vmatpush.msra.mxu0 0.0
    %3677 = vmatpush.msra.mxu0 0.0
    %3678 = vmatpush.msra.mxu0 0.0
    %3679 = vmatpush.msra.mxu0 0.0
    %3680 = vmatpush.msra.mxu0 0.0
    %3681 = vmatpush.msra.mxu0 0.0
    %3682 = vmatpush.msra.mxu0 0.0
    %3683 = vmatpush.msra.mxu0 0.0
    %3684 = vmatpush.msra.mxu0 0.0
    %3685 = vmatpush.msra.mxu0 0.0
    %3686 = vmatpush.msra.mxu0 0.0
    %3687 = vmatpush.msra.mxu0 %v3663
    %3688 = vmatpush.msra.mxu0 %v3662
    %3689 = vmatpush.msra.mxu0 %v3661
    %3690 = vmatpush.msra.mxu0 %v3660
    %3691 = vmatmul.f32.gmra.mxu0 %v3670
    %v3692 = vpop.f32.mrf.mxu0
    %v3693 = vadd.f32 %v3667, %v3692
    %3694 = vmatmul.f32.gmra.mxu0 %v3673
    %v3695 = vpop.f32.mrf.mxu0
    %v3696 = vadd.f32 %v3667, %v3695
    %3697 = vdwg.mxu0
    %v3698 = vmax.f32 %v3693, 0.0
    %v3699 = vmax.f32 %v3696, 0.0
    %s3700 = scalar_lea.vmem %s23, 64
    %v3701 = vld [vmem:[%s3700] sm:$0xff]
    %v3702 = vld [vmem:[%s3700 + $0x8] sm:$0xff]
    %v3703 = vld [vmem:[%s3700 + $0x10] sm:$0xff]
    %v3704 = vld [vmem:[%s3700 + $0x18] sm:$0xff]
    %v3705 = vld [vmem:[%s3700 + $0x20] sm:$0xff]
    %v3706 = vld [vmem:[%s3700 + $0x28] sm:$0xff]
    %v3707 = vld [vmem:[%s3700 + $0x30] sm:$0xff]
    %v3708 = vld [vmem:[%s3700 + $0x38] sm:$0xff]
    %s3709 = scalar_lea.vmem %s24, 1
    %v3710 = vld [vmem:[%s3709] sm:$0x1]
    %v3712 = vperm.slane %v3710, 0
    %v3715 = vsel %vm1931, %v3698, 0
    %v3718 = vsel %vm1931, %v3699, 0
    %3720 = vmatpush.msra.mxu0 0.0
    %3721 = vmatpush.msra.mxu0 0.0
    %3722 = vmatpush.msra.mxu0 0.0
    %3723 = vmatpush.msra.mxu0 0.0
    %3724 = vmatpush.msra.mxu0 0.0
    %3725 = vmatpush.msra.mxu0 0.0
    %3726 = vmatpush.msra.mxu0 0.0
    %3727 = vmatpush.msra.mxu0 0.0
    %3728 = vmatpush.msra.mxu0 %v3708
    %3729 = vmatpush.msra.mxu0 %v3707
    %3730 = vmatpush.msra.mxu0 %v3706
    %3731 = vmatpush.msra.mxu0 %v3705
    %3732 = vmatpush.msra.mxu0 %v3704
    %3733 = vmatpush.msra.mxu0 %v3703
    %3734 = vmatpush.msra.mxu0 %v3702
    %3735 = vmatpush.msra.mxu0 %v3701
    %3736 = vmatmul.f32.gmra.mxu0 %v3715
    %v3737 = vpop.f32.mrf.mxu0
    %v3738 = vadd.f32 %v3712, %v3737
    %3739 = vmatmul.f32.gmra.mxu0 %v3718
    %v3740 = vpop.f32.mrf.mxu0
    %v3741 = vadd.f32 %v3712, %v3740
    %3742 = vdwg.mxu0
    %v3743 = vadd.f32 %v3657, %v3738
    %v3744 = vadd.f32 %v3658, %v3741
    %s3745 = scalar_lea.vmem %s19, 1
    %v3746 = vld [vmem:[%s3745] sm:$0x1]
    %s3747 = scalar_lea.vmem %s20, 1
    %v3748 = vld [vmem:[%s3747] sm:$0x1]
    %v3749 = vsel %vm174, %v3743, 0.0
    %3750 = vadd.xlane.f32.xlu0 %v3749
    %v3751 = vpop.xlane.xlu0 %3750
    %v3752 = vsel %vm174, %v3744, 0.0
    %3753 = vadd.xlane.f32.xlu0 %v3752
    %v3754 = vpop.xlane.xlu0 %3753
    %v3755 = vmul.f32 %v3751, %v1001
    %v3756 = vmul.f32 %v3754, %v1001
    %v3757 = vsub.f32 %v3743, %v3755
    %v3758 = vsub.f32 %v3744, %v3756
    %v3759 = vmul.f32 %v3757, %v3757
    %v3760 = vmul.f32 %v3758, %v3758
    %v3761 = vsel %vm174, %v3759, 0.0
    %3762 = vadd.xlane.f32.xlu0 %v3761
    %v3763 = vpop.xlane.xlu0 %3762
    %v3764 = vsel %vm174, %v3760, 0.0
    %3765 = vadd.xlane.f32.xlu0 %v3764
    %v3766 = vpop.xlane.xlu0 %3765
    %v3767 = vmul.f32 %v3763, %v1001
    %v3768 = vmul.f32 %v3766, %v1001
    %v3769 = vadd.f32 %v3767, 1e-05
    %v3770 = vadd.f32 %v3768, 1e-05
    %v3771 = vrsqrt.pop %v3769
    %v3772 = vmul.f32 %v3771, %v3769
    %v3773 = vmul.f32 %v3772, %v3771
    %v3774 = vmul.f32 0.5, %v3773
    %v3775 = vsub.f32 1.5, %v3774
    %v3776 = vmul.f32 %v3771, %v3775
    %vm3777 = vweird.f32 %v3769
    %vm3778 = vweird.f32 %v3771
    %vm3779 = vmor %vm3777, %vm3778
    %v3780 = vsel %vm3779, %v3771, %v3776
    %v3781 = vrsqrt.pop %v3770
    %v3782 = vmul.f32 %v3781, %v3770
    %v3783 = vmul.f32 %v3782, %v3781
    %v3784 = vmul.f32 0.5, %v3783
    %v3785 = vsub.f32 1.5, %v3784
    %v3786 = vmul.f32 %v3781, %v3785
    %vm3787 = vweird.f32 %v3770
    %vm3788 = vweird.f32 %v3781
    %vm3789 = vmor %vm3787, %vm3788
    %v3790 = vsel %vm3789, %v3781, %v3786
    %v3791 = vmul.f32 %v3757, %v3780
    %v3792 = vmul.f32 %v3758, %v3790
    %v3794 = vperm.slane %v3746, 0
    %v3796 = vmul.f32 %v3791, %v3794
    %v3797 = vmul.f32 %v3792, %v3794
    %v3799 = vperm.slane %v3748, 0
    %v3801 = vadd.f32 %v3796, %v3799
    %v3802 = vadd.f32 %v3797, %v3799
    %v3803 = vld [vmem:[%s25] sm:$0xff]
    %v3804 = vld [vmem:[%s25 + $0x8] sm:$0xff]
    %v3805 = vld [vmem:[%s25 + $0x10] sm:$0xff]
    %v3806 = vld [vmem:[%s25 + $0x18] sm:$0xff]
    %v3807 = vld [vmem:[%s26] sm:$0x1]
    %v3809 = vperm.slane %v3807, 0
    %v3812 = vsel %vm174, %v3801, 0
    %v3815 = vsel %vm174, %v3802, 0
    %3817 = vmatpush.msra.mxu0 0.0
    %3818 = vmatpush.msra.mxu0 0.0
    %3819 = vmatpush.msra.mxu0 0.0
    %3820 = vmatpush.msra.mxu0 0.0
    %3821 = vmatpush.msra.mxu0 0.0
    %3822 = vmatpush.msra.mxu0 0.0
    %3823 = vmatpush.msra.mxu0 0.0
    %3824 = vmatpush.msra.mxu0 0.0
    %3825 = vmatpush.msra.mxu0 0.0
    %3826 = vmatpush.msra.mxu0 0.0
    %3827 = vmatpush.msra.mxu0 0.0
    %3828 = vmatpush.msra.mxu0 0.0
    %3829 = vmatpush.msra.mxu0 %v3806
    %3830 = vmatpush.msra.mxu0 %v3805
    %3831 = vmatpush.msra.mxu0 %v3804
    %3832 = vmatpush.msra.mxu0 %v3803
    %3833 = vmatmul.f32.gmra.mxu0 %v3812
    %v3834 = vpop.f32.mrf.mxu0
    %v3835 = vadd.f32 %v3809, %v3834
    %3836 = vmatmul.f32.gmra.mxu0 %v3815
    %v3837 = vpop.f32.mrf.mxu0
    %v3838 = vadd.f32 %v3809, %v3837
    %3839 = vdwg.mxu0
    %3840 = vst.msk [vmem:[#allocation4] sm:$0xff] %vm1931, %v3835
    %3841 = vst.msk [vmem:[#allocation4 + $0x8] sm:$0xff] %vm1931, %v3838
    // Predicated region
    $region110: #{student_candidate_v1_forward.1} parent=1 // pred_check
      _
    $region111: #{student_candidate_v1_forward.1} parent=1 // pred_check_branch
      %3843 = sbr.rel (0) target = $region113
    $region112: #{student_candidate_v1_forward.1} parent=1 // pred_region
      %3845 = vsyncadd [#allocation3], 0
      %s3846 = sshll.u32 [#allocation2], 4
      %s3847 = int_to_ptr.vmem [resolvable:$true] %s3846
      %s3848 = sshll.u32 %s27, 4
      %s3849 = int_to_ptr.hbm [resolvable:$true] %s3848
      %3854 = dma.vmem_to_hbm [thread:$0]  %s3847, 1024, %s3849, [#allocation3], 128, 128, 8
    $region113: #{student_candidate_v1_forward.1} parent=1 // pred_fallthru
      _
    // Predicated region
    $region114: #{student_candidate_v1_forward.1} parent=1 // pred_check
      _
    $region115: #{student_candidate_v1_forward.1} parent=1 // pred_check_branch
      %3856 = sbr.rel (0) target = $region117
    $region116: #{student_candidate_v1_forward.1} parent=1 // pred_region
      %3858 = vsyncadd [#allocation5], 0
      %s3859 = sshll.u32 [#allocation4], 4
      %s3860 = int_to_ptr.vmem [resolvable:$true] %s3859
      %s3861 = sshll.u32 %s28, 4
      %s3862 = int_to_ptr.hbm [resolvable:$true] %s3861
      %3867 = dma.vmem_to_hbm [thread:$0]  %s3860, 256, %s3862, [#allocation5], 128, 128, 8
    $region117: #{student_candidate_v1_forward.1} parent=1 // pred_fallthru
      _
    // Predicated region
    $region118: #{student_candidate_v1_forward.1} parent=1 // pred_check
      _
    $region119: #{student_candidate_v1_forward.1} parent=1 // pred_check_branch
      %3869 = sbr.rel (0) target = $region121
    $region120: #{student_candidate_v1_forward.1} parent=1 // pred_region
      %3871 = dma.done [#allocation3], 1024
    $region121: #{student_candidate_v1_forward.1} parent=1 // pred_fallthru
      _
    // Predicated region
    $region122: #{student_candidate_v1_forward.1} parent=1 // pred_check
      _
    $region123: #{student_candidate_v1_forward.1} parent=1 // pred_check_branch
      %3873 = sbr.rel (0) target = $region125
    $region124: #{student_candidate_v1_forward.1} parent=1 // pred_region
      %3875 = dma.done [#allocation5], 256
    $region125: #{student_candidate_v1_forward.1} parent=1 // pred_fallthru
      _
    %3876 = vsyncpa [#allocation3], 1
    %3877 = vsyncpa [#allocation5], 1

</llo_original>
